<compile_context>
chip_gen: v7x
topology: tpu7x:2x2x1
jax: 0.10.0
libtpu: 0.0.40
codegen_flags: <defaults>
</compile_context>

<pallas_src>
import math
import numpy as np

import jax
import jax.numpy as jnp
from jax.experimental import pallas as pl
from jax.experimental.pallas import tpu as pltpu

WIN_SIZE = 11          # ssim default window_size
SIGMA = 1.5            # ssim default sigma
C1 = 0.01 ** 2
C2 = 0.03 ** 2
NOPS = 11              # gaussian-conv operands per image: f,f2,a,a2,af,b,b2,bf,c,c2,cf


def _gauss_1d():
    g = np.array(
        [math.exp(-((x - WIN_SIZE // 2) ** 2) / (2.0 * SIGMA ** 2)) for x in range(WIN_SIZE)],
        dtype=np.float64)
    return (g / g.sum()).astype(np.float32)


def _band_left(n, taps):
    """L with (L @ X)[i,:] = sum_d taps[d] * X[i+d-c,:]  (zero padded)."""
    taps = np.asarray(taps, np.float32)
    c = len(taps) // 2
    m = np.zeros((n, n), np.float32)
    for i in range(n):
        for d, t in enumerate(taps):
            j = i + d - c
            if 0 <= j < n:
                m[i, j] = t
    return m


def _band_right(n, taps):
    """R with (X @ R)[:,j] = sum_d taps[d] * X[:,j+d-c]  (zero padded)."""
    return np.ascontiguousarray(_band_left(n, taps).T)


def _pick_batch(nc, h, w):
    """Images per grid step, capped by a conservative slab-VMEM budget."""
    per_img = (NOPS + 3) * h * w * 4
    for b in (8, 4, 2, 1):
        if nc % b == 0 and b * per_img <= (6 << 20):
            return b
    return 1


def _make_kernel(H, W, nimg):
    def kernel(gl_ref, gr_ref, sl_ref, dl_ref, sr_ref, dr_ref,
               a_ref, b_ref, c_ref, f_ref, out_ref, gslab, sslab):
        GL, GR = gl_ref[...], gr_ref[...]     # gaussian  vertical / horizontal
        SL, DL = sl_ref[...], dl_ref[...]     # sobel smooth / diff, vertical
        SR, DR = sr_ref[...], dr_ref[...]     # sobel smooth / diff, horizontal

        # ---- stage operands sublane-stacked (tile-aligned static slices).
        #      Every element is overwritten each step -> no zero fill needed. ----
        for bi in range(nimg):
            a, b, c, f = a_ref[bi], b_ref[bi], c_ref[bi], f_ref[bi]
            g_ops = (f, f * f, a, a * a, a * f,
                     b, b * b, b * f,
                     c, c * c, c * f)
            for k, op in enumerate(g_ops):
                idx = bi * NOPS + k
                gslab[idx * H:(idx + 1) * H, :] = op
            for k, op in enumerate((a, b, c)):
                idx = bi * 3 + k
                sslab[idx * H:(idx + 1) * H, :] = op

        # ---- batched horizontal (lane-axis) passes: one MXU matmul each ----
        ghor = jnp.dot(gslab[...], GR, preferred_element_type=jnp.float32)
        sx_h = jnp.dot(sslab[...], DR, preferred_element_type=jnp.float32)  # sobel-x: horiz diff
        sy_h = jnp.dot(sslab[...], SR, preferred_element_type=jnp.float32)  # sobel-y: horiz smooth

        def vpass(L, slab, idx):
            # vertical pass on one operand: aligned sublane slice -> small matmul
            return jnp.dot(L, slab[idx * H:(idx + 1) * H, :],
                           preferred_element_type=jnp.float32)

        sums = [jnp.float32(0.0)] * 6   # grad_a, grad_b, grad_c, ssim_a, ssim_b, ssim_c

        for bi in range(nimg):
            # Sobel gradient-magnitude sums (numerators of torch.mean).
            for t in range(3):
                idx = bi * 3 + t
                gx = vpass(SL, sx_h, idx)   # vertical smooth  o horizontal diff
                gy = vpass(DL, sy_h, idx)   # vertical diff    o horizontal smooth
                sums[t] = sums[t] + jnp.sum(jnp.abs(gx) + jnp.abs(gy))

            # SSIM vs the fused image; fused-side stats shared across A/B/C.
            base = bi * NOPS
            mu2 = vpass(GL, ghor, base + 0)
            sig2 = vpass(GL, ghor, base + 1) - mu2 * mu2
            for t in range(3):
                k0 = base + 2 + 3 * t
                mu1 = vpass(GL, ghor, k0)
                sig1 = vpass(GL, ghor, k0 + 1) - mu1 * mu1
                sig12 = vpass(GL, ghor, k0 + 2) - mu1 * mu2
                ssim_map = ((2.0 * mu1 * mu2 + C1) * (2.0 * sig12 + C2)) / (
                    (mu1 * mu1 + mu2 * mu2 + C1) * (sig1 + sig2 + C2))
                sums[3 + t] = sums[3 + t] + jnp.sum(ssim_map)

        # ---- per-step lane-dense (8,128) partial-sum tile ----
        row = jax.lax.broadcasted_iota(jnp.int32, (8, 128), 0)
        lane = jax.lax.broadcasted_iota(jnp.int32, (8, 128), 1)
        tile = jnp.zeros((8, 128), jnp.float32)
        for k in range(6):
            tile = jnp.where((row == 0) & (lane == k), sums[k], tile)
        out_ref[0] = tile

    return kernel


@jax.jit
def l_ssim(image_A, image_B, image_C, image_fused):
    N, C, H, W = image_A.shape
    NC = N * C
    flat = lambda x: x.reshape(NC, H, W).astype(jnp.float32)
    a, b, c, f = flat(image_A), flat(image_B), flat(image_C), flat(image_fused)

    nimg = _pick_batch(NC, H, W)        # images per grid step
    steps = NC // nimg

    g = _gauss_1d()
    GL = jnp.asarray(_band_left(H, g))
    GR = jnp.asarray(_band_right(W, g))
    SL = jnp.asarray(_band_left(H, [1.0, 2.0, 1.0]))
    DL = jnp.asarray(_band_left(H, [1.0, 0.0, -1.0]))
    SR = jnp.asarray(_band_right(W, [1.0, 2.0, 1.0]))
    DR = jnp.asarray(_band_right(W, [-1.0, 0.0, 1.0]))

    mat_h = pl.BlockSpec((H, H), lambda i: (0, 0))
    mat_w = pl.BlockSpec((W, W), lambda i: (0, 0))
    img = pl.BlockSpec((nimg, H, W), lambda i: (i, 0, 0))

    partial = pl.pallas_call(
        _make_kernel(H, W, nimg),
        out_shape=jax.ShapeDtypeStruct((steps, 8, 128), jnp.float32),
        grid=(steps,),
        in_specs=[mat_h, mat_w, mat_h, mat_h, mat_w, mat_w, img, img, img, img],
        out_specs=pl.BlockSpec((1, 8, 128), lambda i: (i, 0, 0)),
        scratch_shapes=[
            pltpu.VMEM((nimg * NOPS * H, W), jnp.float32),   # gaussian operand slab
            pltpu.VMEM((nimg * 3 * H, W), jnp.float32),      # sobel operand slab
        ],
        compiler_params=pltpu.CompilerParams(dimension_semantics=("parallel",)),
    )(GL, GR, SL, DL, SR, DR, a, b, c, f)

    sums = jnp.sum(partial, axis=0)[0, :6]        # tree-reduce partials in XLA
    n = jnp.float32(NC * H * W)
    m_a, m_b, m_c = sums[0] / n, sums[1] / n, sums[2] / n
    ssim_a, ssim_b, ssim_c = sums[3] / n, sums[4] / n, sums[5] / n

    # Reproduce the reference weight formula exactly (division binds before '+'):
    denom = m_a + m_b
    w_a = m_a / denom + m_c
    w_b = m_b / denom + m_c
    w_c = m_c / denom + m_c
    return w_a * ssim_a + w_b * ssim_b + w_c * ssim_c


# ------------------ pure-JAX reference (self-check only) ------------------
def _ref_l_ssim(a, b, c, f):
    def conv(x, k):
        kh, kw = k.shape
        return jax.lax.conv_general_dilated(
            x[:, None, :, :], k[None, None, :, :], (1, 1),
            ((kh // 2, kh // 2), (kw // 2, kw // 2)),
            dimension_numbers=("NCHW", "OIHW", "NCHW"))[:, 0]

    kx = jnp.asarray([[-1., 0., 1.], [-2., 0., 2.], [-1., 0., 1.]], jnp.float32)
    ky = jnp.asarray([[1., 2., 1.], [0., 0., 0.], [-1., -2., -1.]], jnp.float32)
    g = _gauss_1d()
    win = jnp.asarray(np.outer(g, g).astype(np.float32))

    def grad(x):
        return jnp.abs(conv(x, kx)) + jnp.abs(conv(x, ky))

    def ssim(x, y):
        mu1, mu2 = conv(x, win), conv(y, win)
        s1 = conv(x * x, win) - mu1 * mu1
        s2 = conv(y * y, win) - mu2 * mu2
        s12 = conv(x * y, win) - mu1 * mu2
        m = ((2 * mu1 * mu2 + C1) * (2 * s12 + C2)) / (
            (mu1 * mu1 + mu2 * mu2 + C1) * (s1 + s2 + C2))
        return jnp.mean(m)

    ma, mb, mc = jnp.mean(grad(a)), jnp.mean(grad(b)), jnp.mean(grad(c))
    wa = ma / (ma + mb) + mc
    wb = mb / (ma + mb) + mc
    wc = mc / (ma + mb) + mc
    return wa * ssim(a, f) + wb * ssim(b, f) + wc * ssim(c, f)


if __name__ == "__main__":
    key = jax.random.PRNGKey(0)
    k1, k2, k3, k4 = jax.random.split(key, 4)
    # Single channel, matching the (1,1,3,3) Sobel weight of the module.
    shape = (2, 1, 16, 16)
    image_A = jax.random.uniform(k1, shape, jnp.float32)
    image_B = jax.random.uniform(k2, shape, jnp.float32)
    image_C = jax.random.uniform(k3, shape, jnp.float32)
    image_F = jax.random.uniform(k4, shape, jnp.float32)

    loss = l_ssim(image_A, image_B, image_C, image_F)
    jax.block_until_ready(loss)

    # Lightweight correctness check against a pure-JAX reference.
    flat = lambda x: x.reshape(-1, 16, 16).astype(jnp.float32)
    ref = _ref_l_ssim(flat(image_A), flat(image_B), flat(image_C), flat(image_F))
    np.testing.assert_allclose(np.asarray(loss), np.asarray(ref), rtol=2e-3, atol=2e-4)

    print("KERNEL_OK")
</pallas_src>

<mosaic_0001>
module attributes {stable_mosaic.version = 11 : i64} {
  func.func @kernel(%arg0: i32, %arg1: memref<16x16xf32, #tpu.memory_space<vmem>>, %arg2: memref<16x16xf32, #tpu.memory_space<vmem>>, %arg3: memref<16x16xf32, #tpu.memory_space<vmem>>, %arg4: memref<16x16xf32, #tpu.memory_space<vmem>>, %arg5: memref<16x16xf32, #tpu.memory_space<vmem>>, %arg6: memref<16x16xf32, #tpu.memory_space<vmem>>, %arg7: memref<2x16x16xf32, #tpu.memory_space<vmem>>, %arg8: memref<2x16x16xf32, #tpu.memory_space<vmem>>, %arg9: memref<2x16x16xf32, #tpu.memory_space<vmem>>, %arg10: memref<2x16x16xf32, #tpu.memory_space<vmem>>, %arg11: memref<1x8x128xf32, #tpu.memory_space<vmem>>, %arg12: memref<352x16xf32, #tpu.memory_space<vmem>>, %arg13: memref<96x16xf32, #tpu.memory_space<vmem>>) attributes {dimension_semantics = [#tpu.dimension_semantics<parallel>], iteration_bounds = array<i64: 1>, scalar_prefetch = 0 : i64, scratch_operands = 2 : i64, tpu.core_type = #tpu.core_type<tc>, window_params = [{pipeline_mode = #tpu.pipeline_mode<synchronous>, transform_indices = @transform_0, window_bounds = array<i64: 16, 16>}, {pipeline_mode = #tpu.pipeline_mode<synchronous>, transform_indices = @transform_1, window_bounds = array<i64: 16, 16>}, {pipeline_mode = #tpu.pipeline_mode<synchronous>, transform_indices = @transform_2, window_bounds = array<i64: 16, 16>}, {pipeline_mode = #tpu.pipeline_mode<synchronous>, transform_indices = @transform_3, window_bounds = array<i64: 16, 16>}, {pipeline_mode = #tpu.pipeline_mode<synchronous>, transform_indices = @transform_4, window_bounds = array<i64: 16, 16>}, {pipeline_mode = #tpu.pipeline_mode<synchronous>, transform_indices = @transform_5, window_bounds = array<i64: 16, 16>}, {transform_indices = @transform_6, window_bounds = array<i64: 2, 16, 16>}, {transform_indices = @transform_7, window_bounds = array<i64: 2, 16, 16>}, {transform_indices = @transform_8, window_bounds = array<i64: 2, 16, 16>}, {transform_indices = @transform_9, window_bounds = array<i64: 2, 16, 16>}, {transform_indices = @transform_10, window_bounds = array<i64: 1, 8, 128>}]} {
    %c0 = arith.constant 0 : index
    %c0_0 = arith.constant 0 : index
    %0 = vector.load %arg1[%c0, %c0_0] : memref<16x16xf32, #tpu.memory_space<vmem>>, vector<16x16xf32>
    %c0_1 = arith.constant 0 : index
    %c0_2 = arith.constant 0 : index
    %1 = vector.load %arg2[%c0_1, %c0_2] : memref<16x16xf32, #tpu.memory_space<vmem>>, vector<16x16xf32>
    %c0_3 = arith.constant 0 : index
    %c0_4 = arith.constant 0 : index
    %2 = vector.load %arg3[%c0_3, %c0_4] : memref<16x16xf32, #tpu.memory_space<vmem>>, vector<16x16xf32>
    %c0_5 = arith.constant 0 : index
    %c0_6 = arith.constant 0 : index
    %3 = vector.load %arg4[%c0_5, %c0_6] : memref<16x16xf32, #tpu.memory_space<vmem>>, vector<16x16xf32>
    %c0_7 = arith.constant 0 : index
    %c0_8 = arith.constant 0 : index
    %4 = vector.load %arg5[%c0_7, %c0_8] : memref<16x16xf32, #tpu.memory_space<vmem>>, vector<16x16xf32>
    %c0_9 = arith.constant 0 : index
    %c0_10 = arith.constant 0 : index
    %5 = vector.load %arg6[%c0_9, %c0_10] : memref<16x16xf32, #tpu.memory_space<vmem>>, vector<16x16xf32>
    %c0_11 = arith.constant 0 : index
    %c0_12 = arith.constant 0 : index
    %c0_13 = arith.constant 0 : index
    %6 = vector.load %arg7[%c0_11, %c0_12, %c0_13] : memref<2x16x16xf32, #tpu.memory_space<vmem>>, vector<1x16x16xf32>
    %7 = vector.shape_cast %6 : vector<1x16x16xf32> to vector<16x16xf32>
    %c0_14 = arith.constant 0 : index
    %c0_15 = arith.constant 0 : index
    %c0_16 = arith.constant 0 : index
    %8 = vector.load %arg8[%c0_14, %c0_15, %c0_16] : memref<2x16x16xf32, #tpu.memory_space<vmem>>, vector<1x16x16xf32>
    %9 = vector.shape_cast %8 : vector<1x16x16xf32> to vector<16x16xf32>
    %c0_17 = arith.constant 0 : index
    %c0_18 = arith.constant 0 : index
    %c0_19 = arith.constant 0 : index
    %10 = vector.load %arg9[%c0_17, %c0_18, %c0_19] : memref<2x16x16xf32, #tpu.memory_space<vmem>>, vector<1x16x16xf32>
    %11 = vector.shape_cast %10 : vector<1x16x16xf32> to vector<16x16xf32>
    %c0_20 = arith.constant 0 : index
    %c0_21 = arith.constant 0 : index
    %c0_22 = arith.constant 0 : index
    %12 = vector.load %arg10[%c0_20, %c0_21, %c0_22] : memref<2x16x16xf32, #tpu.memory_space<vmem>>, vector<1x16x16xf32>
    %13 = vector.shape_cast %12 : vector<1x16x16xf32> to vector<16x16xf32>
    %14 = arith.mulf %13, %13 : vector<16x16xf32>
    %15 = arith.mulf %7, %7 : vector<16x16xf32>
    %16 = arith.mulf %7, %13 : vector<16x16xf32>
    %17 = arith.mulf %9, %9 : vector<16x16xf32>
    %18 = arith.mulf %9, %13 : vector<16x16xf32>
    %19 = arith.mulf %11, %11 : vector<16x16xf32>
    %20 = arith.mulf %11, %13 : vector<16x16xf32>
    %c0_23 = arith.constant 0 : index
    %c0_24 = arith.constant 0 : index
    %21 = vector.load %arg12[%c0_23, %c0_24] : memref<352x16xf32, #tpu.memory_space<vmem>>, vector<16x16xf32>
    tpu.vector_store %arg12[%c0_23, %c0_24], %13 {strides = array<i32>} : memref<352x16xf32, #tpu.memory_space<vmem>>, vector<16x16xf32>,
    %c16 = arith.constant 16 : index
    %c0_25 = arith.constant 0 : index
    %22 = vector.load %arg12[%c16, %c0_25] : memref<352x16xf32, #tpu.memory_space<vmem>>, vector<16x16xf32>
    tpu.vector_store %arg12[%c16, %c0_25], %14 {strides = array<i32>} : memref<352x16xf32, #tpu.memory_space<vmem>>, vector<16x16xf32>,
    %c32 = arith.constant 32 : index
    %c0_26 = arith.constant 0 : index
    %23 = vector.load %arg12[%c32, %c0_26] : memref<352x16xf32, #tpu.memory_space<vmem>>, vector<16x16xf32>
    tpu.vector_store %arg12[%c32, %c0_26], %7 {strides = array<i32>} : memref<352x16xf32, #tpu.memory_space<vmem>>, vector<16x16xf32>,
    %c48 = arith.constant 48 : index
    %c0_27 = arith.constant 0 : index
    %24 = vector.load %arg12[%c48, %c0_27] : memref<352x16xf32, #tpu.memory_space<vmem>>, vector<16x16xf32>
    tpu.vector_store %arg12[%c48, %c0_27], %15 {strides = array<i32>} : memref<352x16xf32, #tpu.memory_space<vmem>>, vector<16x16xf32>,
    %c64 = arith.constant 64 : index
    %c0_28 = arith.constant 0 : index
    %25 = vector.load %arg12[%c64, %c0_28] : memref<352x16xf32, #tpu.memory_space<vmem>>, vector<16x16xf32>
    tpu.vector_store %arg12[%c64, %c0_28], %16 {strides = array<i32>} : memref<352x16xf32, #tpu.memory_space<vmem>>, vector<16x16xf32>,
    %c80 = arith.constant 80 : index
    %c0_29 = arith.constant 0 : index
    %26 = vector.load %arg12[%c80, %c0_29] : memref<352x16xf32, #tpu.memory_space<vmem>>, vector<16x16xf32>
    tpu.vector_store %arg12[%c80, %c0_29], %9 {strides = array<i32>} : memref<352x16xf32, #tpu.memory_space<vmem>>, vector<16x16xf32>,
    %c96 = arith.constant 96 : index
    %c0_30 = arith.constant 0 : index
    %27 = vector.load %arg12[%c96, %c0_30] : memref<352x16xf32, #tpu.memory_space<vmem>>, vector<16x16xf32>
    tpu.vector_store %arg12[%c96, %c0_30], %17 {strides = array<i32>} : memref<352x16xf32, #tpu.memory_space<vmem>>, vector<16x16xf32>,
    %c112 = arith.constant 112 : index
    %c0_31 = arith.constant 0 : index
    %28 = vector.load %arg12[%c112, %c0_31] : memref<352x16xf32, #tpu.memory_space<vmem>>, vector<16x16xf32>
    tpu.vector_store %arg12[%c112, %c0_31], %18 {strides = array<i32>} : memref<352x16xf32, #tpu.memory_space<vmem>>, vector<16x16xf32>,
    %c128 = arith.constant 128 : index
    %c0_32 = arith.constant 0 : index
    %29 = vector.load %arg12[%c128, %c0_32] : memref<352x16xf32, #tpu.memory_space<vmem>>, vector<16x16xf32>
    tpu.vector_store %arg12[%c128, %c0_32], %11 {strides = array<i32>} : memref<352x16xf32, #tpu.memory_space<vmem>>, vector<16x16xf32>,
    %c144 = arith.constant 144 : index
    %c0_33 = arith.constant 0 : index
    %30 = vector.load %arg12[%c144, %c0_33] : memref<352x16xf32, #tpu.memory_space<vmem>>, vector<16x16xf32>
    tpu.vector_store %arg12[%c144, %c0_33], %19 {strides = array<i32>} : memref<352x16xf32, #tpu.memory_space<vmem>>, vector<16x16xf32>,
    %c160 = arith.constant 160 : index
    %c0_34 = arith.constant 0 : index
    %31 = vector.load %arg12[%c160, %c0_34] : memref<352x16xf32, #tpu.memory_space<vmem>>, vector<16x16xf32>
    tpu.vector_store %arg12[%c160, %c0_34], %20 {strides = array<i32>} : memref<352x16xf32, #tpu.memory_space<vmem>>, vector<16x16xf32>,
    %c0_35 = arith.constant 0 : index
    %c0_36 = arith.constant 0 : index
    %32 = vector.load %arg13[%c0_35, %c0_36] : memref<96x16xf32, #tpu.memory_space<vmem>>, vector<16x16xf32>
    tpu.vector_store %arg13[%c0_35, %c0_36], %7 {strides = array<i32>} : memref<96x16xf32, #tpu.memory_space<vmem>>, vector<16x16xf32>,
    %c16_37 = arith.constant 16 : index
    %c0_38 = arith.constant 0 : index
    %33 = vector.load %arg13[%c16_37, %c0_38] : memref<96x16xf32, #tpu.memory_space<vmem>>, vector<16x16xf32>
    tpu.vector_store %arg13[%c16_37, %c0_38], %9 {strides = array<i32>} : memref<96x16xf32, #tpu.memory_space<vmem>>, vector<16x16xf32>,
    %c32_39 = arith.constant 32 : index
    %c0_40 = arith.constant 0 : index
    %34 = vector.load %arg13[%c32_39, %c0_40] : memref<96x16xf32, #tpu.memory_space<vmem>>, vector<16x16xf32>
    tpu.vector_store %arg13[%c32_39, %c0_40], %11 {strides = array<i32>} : memref<96x16xf32, #tpu.memory_space<vmem>>, vector<16x16xf32>,
    %c1 = arith.constant 1 : index
    %c0_41 = arith.constant 0 : index
    %c0_42 = arith.constant 0 : index
    %35 = vector.load %arg7[%c1, %c0_41, %c0_42] : memref<2x16x16xf32, #tpu.memory_space<vmem>>, vector<1x16x16xf32>
    %36 = vector.shape_cast %35 : vector<1x16x16xf32> to vector<16x16xf32>
    %c1_43 = arith.constant 1 : index
    %c0_44 = arith.constant 0 : index
    %c0_45 = arith.constant 0 : index
    %37 = vector.load %arg8[%c1_43, %c0_44, %c0_45] : memref<2x16x16xf32, #tpu.memory_space<vmem>>, vector<1x16x16xf32>
    %38 = vector.shape_cast %37 : vector<1x16x16xf32> to vector<16x16xf32>
    %c1_46 = arith.constant 1 : index
    %c0_47 = arith.constant 0 : index
    %c0_48 = arith.constant 0 : index
    %39 = vector.load %arg9[%c1_46, %c0_47, %c0_48] : memref<2x16x16xf32, #tpu.memory_space<vmem>>, vector<1x16x16xf32>
    %40 = vector.shape_cast %39 : vector<1x16x16xf32> to vector<16x16xf32>
    %c1_49 = arith.constant 1 : index
    %c0_50 = arith.constant 0 : index
    %c0_51 = arith.constant 0 : index
    %41 = vector.load %arg10[%c1_49, %c0_50, %c0_51] : memref<2x16x16xf32, #tpu.memory_space<vmem>>, vector<1x16x16xf32>
    %42 = vector.shape_cast %41 : vector<1x16x16xf32> to vector<16x16xf32>
    %43 = arith.mulf %42, %42 : vector<16x16xf32>
    %44 = arith.mulf %36, %36 : vector<16x16xf32>
    %45 = arith.mulf %36, %42 : vector<16x16xf32>
    %46 = arith.mulf %38, %38 : vector<16x16xf32>
    %47 = arith.mulf %38, %42 : vector<16x16xf32>
    %48 = arith.mulf %40, %40 : vector<16x16xf32>
    %49 = arith.mulf %40, %42 : vector<16x16xf32>
    %c176 = arith.constant 176 : index
    %c0_52 = arith.constant 0 : index
    %50 = vector.load %arg12[%c176, %c0_52] : memref<352x16xf32, #tpu.memory_space<vmem>>, vector<16x16xf32>
    tpu.vector_store %arg12[%c176, %c0_52], %42 {strides = array<i32>} : memref<352x16xf32, #tpu.memory_space<vmem>>, vector<16x16xf32>,
    %c192 = arith.constant 192 : index
    %c0_53 = arith.constant 0 : index
    %51 = vector.load %arg12[%c192, %c0_53] : memref<352x16xf32, #tpu.memory_space<vmem>>, vector<16x16xf32>
    tpu.vector_store %arg12[%c192, %c0_53], %43 {strides = array<i32>} : memref<352x16xf32, #tpu.memory_space<vmem>>, vector<16x16xf32>,
    %c208 = arith.constant 208 : index
    %c0_54 = arith.constant 0 : index
    %52 = vector.load %arg12[%c208, %c0_54] : memref<352x16xf32, #tpu.memory_space<vmem>>, vector<16x16xf32>
    tpu.vector_store %arg12[%c208, %c0_54], %36 {strides = array<i32>} : memref<352x16xf32, #tpu.memory_space<vmem>>, vector<16x16xf32>,
    %c224 = arith.constant 224 : index
    %c0_55 = arith.constant 0 : index
    %53 = vector.load %arg12[%c224, %c0_55] : memref<352x16xf32, #tpu.memory_space<vmem>>, vector<16x16xf32>
    tpu.vector_store %arg12[%c224, %c0_55], %44 {strides = array<i32>} : memref<352x16xf32, #tpu.memory_space<vmem>>, vector<16x16xf32>,
    %c240 = arith.constant 240 : index
    %c0_56 = arith.constant 0 : index
    %54 = vector.load %arg12[%c240, %c0_56] : memref<352x16xf32, #tpu.memory_space<vmem>>, vector<16x16xf32>
    tpu.vector_store %arg12[%c240, %c0_56], %45 {strides = array<i32>} : memref<352x16xf32, #tpu.memory_space<vmem>>, vector<16x16xf32>,
    %c256 = arith.constant 256 : index
    %c0_57 = arith.constant 0 : index
    %55 = vector.load %arg12[%c256, %c0_57] : memref<352x16xf32, #tpu.memory_space<vmem>>, vector<16x16xf32>
    tpu.vector_store %arg12[%c256, %c0_57], %38 {strides = array<i32>} : memref<352x16xf32, #tpu.memory_space<vmem>>, vector<16x16xf32>,
    %c272 = arith.constant 272 : index
    %c0_58 = arith.constant 0 : index
    %56 = vector.load %arg12[%c272, %c0_58] : memref<352x16xf32, #tpu.memory_space<vmem>>, vector<16x16xf32>
    tpu.vector_store %arg12[%c272, %c0_58], %46 {strides = array<i32>} : memref<352x16xf32, #tpu.memory_space<vmem>>, vector<16x16xf32>,
    %c288 = arith.constant 288 : index
    %c0_59 = arith.constant 0 : index
    %57 = vector.load %arg12[%c288, %c0_59] : memref<352x16xf32, #tpu.memory_space<vmem>>, vector<16x16xf32>
    tpu.vector_store %arg12[%c288, %c0_59], %47 {strides = array<i32>} : memref<352x16xf32, #tpu.memory_space<vmem>>, vector<16x16xf32>,
    %c304 = arith.constant 304 : index
    %c0_60 = arith.constant 0 : index
    %58 = vector.load %arg12[%c304, %c0_60] : memref<352x16xf32, #tpu.memory_space<vmem>>, vector<16x16xf32>
    tpu.vector_store %arg12[%c304, %c0_60], %40 {strides = array<i32>} : memref<352x16xf32, #tpu.memory_space<vmem>>, vector<16x16xf32>,
    %c320 = arith.constant 320 : index
    %c0_61 = arith.constant 0 : index
    %59 = vector.load %arg12[%c320, %c0_61] : memref<352x16xf32, #tpu.memory_space<vmem>>, vector<16x16xf32>
    tpu.vector_store %arg12[%c320, %c0_61], %48 {strides = array<i32>} : memref<352x16xf32, #tpu.memory_space<vmem>>, vector<16x16xf32>,
    %c336 = arith.constant 336 : index
    %c0_62 = arith.constant 0 : index
    %60 = vector.load %arg12[%c336, %c0_62] : memref<352x16xf32, #tpu.memory_space<vmem>>, vector<16x16xf32>
    tpu.vector_store %arg12[%c336, %c0_62], %49 {strides = array<i32>} : memref<352x16xf32, #tpu.memory_space<vmem>>, vector<16x16xf32>,
    %c48_63 = arith.constant 48 : index
    %c0_64 = arith.constant 0 : index
    %61 = vector.load %arg13[%c48_63, %c0_64] : memref<96x16xf32, #tpu.memory_space<vmem>>, vector<16x16xf32>
    tpu.vector_store %arg13[%c48_63, %c0_64], %36 {strides = array<i32>} : memref<96x16xf32, #tpu.memory_space<vmem>>, vector<16x16xf32>,
    %c64_65 = arith.constant 64 : index
    %c0_66 = arith.constant 0 : index
    %62 = vector.load %arg13[%c64_65, %c0_66] : memref<96x16xf32, #tpu.memory_space<vmem>>, vector<16x16xf32>
    tpu.vector_store %arg13[%c64_65, %c0_66], %38 {strides = array<i32>} : memref<96x16xf32, #tpu.memory_space<vmem>>, vector<16x16xf32>,
    %c80_67 = arith.constant 80 : index
    %c0_68 = arith.constant 0 : index
    %63 = vector.load %arg13[%c80_67, %c0_68] : memref<96x16xf32, #tpu.memory_space<vmem>>, vector<16x16xf32>
    tpu.vector_store %arg13[%c80_67, %c0_68], %40 {strides = array<i32>} : memref<96x16xf32, #tpu.memory_space<vmem>>, vector<16x16xf32>,
    %c0_69 = arith.constant 0 : index
    %c0_70 = arith.constant 0 : index
    %64 = vector.load %arg12[%c0_69, %c0_70] : memref<352x16xf32, #tpu.memory_space<vmem>>, vector<352x16xf32>
    %cst = arith.constant dense<0.000000e+00> : vector<352x16xf32>
    %65 = tpu.matmul %64, %1, %cst {dimension_numbers = #tpu.dot_dimension_numbers<[1], [0], [0], [1], [0, 0, 1, 1], [], []>} : vector<352x16xf32>, vector<16x16xf32>, vector<352x16xf32> -> vector<352x16xf32>
    %c0_71 = arith.constant 0 : index
    %c0_72 = arith.constant 0 : index
    %66 = vector.load %arg13[%c0_71, %c0_72] : memref<96x16xf32, #tpu.memory_space<vmem>>, vector<96x16xf32>
    %cst_73 = arith.constant dense<0.000000e+00> : vector<96x16xf32>
    %67 = tpu.matmul %66, %5, %cst_73 {dimension_numbers = #tpu.dot_dimension_numbers<[1], [0], [0], [1], [0, 0, 1, 1], [], []>} : vector<96x16xf32>, vector<16x16xf32>, vector<96x16xf32> -> vector<96x16xf32>
    %c0_74 = arith.constant 0 : index
    %c0_75 = arith.constant 0 : index
    %68 = vector.load %arg13[%c0_74, %c0_75] : memref<96x16xf32, #tpu.memory_space<vmem>>, vector<96x16xf32>
    %cst_76 = arith.constant dense<0.000000e+00> : vector<96x16xf32>
    %69 = tpu.matmul %68, %4, %cst_76 {dimension_numbers = #tpu.dot_dimension_numbers<[1], [0], [0], [1], [0, 0, 1, 1], [], []>} : vector<96x16xf32>, vector<16x16xf32>, vector<96x16xf32> -> vector<96x16xf32>
    %70 = vector.extract_strided_slice %67 {offsets = [0, 0], sizes = [16, 16], strides = [1, 1]} : vector<96x16xf32> to vector<16x16xf32>
    %cst_77 = arith.constant dense<0.000000e+00> : vector<16x16xf32>
    %71 = tpu.matmul %2, %70, %cst_77 {dimension_numbers = #tpu.dot_dimension_numbers<[1], [0], [0], [1], [0, 0, 1, 1], [], []>} : vector<16x16xf32>, vector<16x16xf32>, vector<16x16xf32> -> vector<16x16xf32>
    %72 = vector.extract_strided_slice %69 {offsets = [0, 0], sizes = [16, 16], strides = [1, 1]} : vector<96x16xf32> to vector<16x16xf32>
    %cst_78 = arith.constant dense<0.000000e+00> : vector<16x16xf32>
    %73 = tpu.matmul %3, %72, %cst_78 {dimension_numbers = #tpu.dot_dimension_numbers<[1], [0], [0], [1], [0, 0, 1, 1], [], []>} : vector<16x16xf32>, vector<16x16xf32>, vector<16x16xf32> -> vector<16x16xf32>
    %74 = math.absf %71 : vector<16x16xf32>
    %75 = math.absf %73 : vector<16x16xf32>
    %76 = arith.addf %74, %75 : vector<16x16xf32>
    %77 = vector.shape_cast %76 : vector<16x16xf32> to vector<1x16x16xf32>
    %cst_79 = arith.constant dense<0.000000e+00> : vector<1xf32>
    %78 = vector.multi_reduction <add>, %77, %cst_79 [1, 2] : vector<1x16x16xf32> to vector<1xf32>
    %79 = vector.shape_cast %78 : vector<1xf32> to vector<1x1x1xf32>
    %80 = vector.extract %79[0, 0, 0] : f32 from vector<1x1x1xf32>
    %cst_80 = arith.constant 0.000000e+00 : f32
    %81 = arith.addf %cst_80, %80 : f32
    %82 = vector.extract_strided_slice %67 {offsets = [16, 0], sizes = [16, 16], strides = [1, 1]} : vector<96x16xf32> to vector<16x16xf32>
    %cst_81 = arith.constant dense<0.000000e+00> : vector<16x16xf32>
    %83 = tpu.matmul %2, %82, %cst_81 {dimension_numbers = #tpu.dot_dimension_numbers<[1], [0], [0], [1], [0, 0, 1, 1], [], []>} : vector<16x16xf32>, vector<16x16xf32>, vector<16x16xf32> -> vector<16x16xf32>
    %84 = vector.extract_strided_slice %69 {offsets = [16, 0], sizes = [16, 16], strides = [1, 1]} : vector<96x16xf32> to vector<16x16xf32>
    %cst_82 = arith.constant dense<0.000000e+00> : vector<16x16xf32>
    %85 = tpu.matmul %3, %84, %cst_82 {dimension_numbers = #tpu.dot_dimension_numbers<[1], [0], [0], [1], [0, 0, 1, 1], [], []>} : vector<16x16xf32>, vector<16x16xf32>, vector<16x16xf32> -> vector<16x16xf32>
    %86 = math.absf %83 : vector<16x16xf32>
    %87 = math.absf %85 : vector<16x16xf32>
    %88 = arith.addf %86, %87 : vector<16x16xf32>
    %89 = vector.shape_cast %88 : vector<16x16xf32> to vector<1x16x16xf32>
    %cst_83 = arith.constant dense<0.000000e+00> : vector<1xf32>
    %90 = vector.multi_reduction <add>, %89, %cst_83 [1, 2] : vector<1x16x16xf32> to vector<1xf32>
    %91 = vector.shape_cast %90 : vector<1xf32> to vector<1x1x1xf32>
    %92 = vector.extract %91[0, 0, 0] : f32 from vector<1x1x1xf32>
    %cst_84 = arith.constant 0.000000e+00 : f32
    %93 = arith.addf %cst_84, %92 : f32
    %94 = vector.extract_strided_slice %67 {offsets = [32, 0], sizes = [16, 16], strides = [1, 1]} : vector<96x16xf32> to vector<16x16xf32>
    %cst_85 = arith.constant dense<0.000000e+00> : vector<16x16xf32>
    %95 = tpu.matmul %2, %94, %cst_85 {dimension_numbers = #tpu.dot_dimension_numbers<[1], [0], [0], [1], [0, 0, 1, 1], [], []>} : vector<16x16xf32>, vector<16x16xf32>, vector<16x16xf32> -> vector<16x16xf32>
    %96 = vector.extract_strided_slice %69 {offsets = [32, 0], sizes = [16, 16], strides = [1, 1]} : vector<96x16xf32> to vector<16x16xf32>
    %cst_86 = arith.constant dense<0.000000e+00> : vector<16x16xf32>
    %97 = tpu.matmul %3, %96, %cst_86 {dimension_numbers = #tpu.dot_dimension_numbers<[1], [0], [0], [1], [0, 0, 1, 1], [], []>} : vector<16x16xf32>, vector<16x16xf32>, vector<16x16xf32> -> vector<16x16xf32>
    %98 = math.absf %95 : vector<16x16xf32>
    %99 = math.absf %97 : vector<16x16xf32>
    %100 = arith.addf %98, %99 : vector<16x16xf32>
    %101 = vector.shape_cast %100 : vector<16x16xf32> to vector<1x16x16xf32>
    %cst_87 = arith.constant dense<0.000000e+00> : vector<1xf32>
    %102 = vector.multi_reduction <add>, %101, %cst_87 [1, 2] : vector<1x16x16xf32> to vector<1xf32>
    %103 = vector.shape_cast %102 : vector<1xf32> to vector<1x1x1xf32>
    %104 = vector.extract %103[0, 0, 0] : f32 from vector<1x1x1xf32>
    %cst_88 = arith.constant 0.000000e+00 : f32
    %105 = arith.addf %cst_88, %104 : f32
    %106 = vector.extract_strided_slice %65 {offsets = [0, 0], sizes = [16, 16], strides = [1, 1]} : vector<352x16xf32> to vector<16x16xf32>
    %cst_89 = arith.constant dense<0.000000e+00> : vector<16x16xf32>
    %107 = tpu.matmul %0, %106, %cst_89 {dimension_numbers = #tpu.dot_dimension_numbers<[1], [0], [0], [1], [0, 0, 1, 1], [], []>} : vector<16x16xf32>, vector<16x16xf32>, vector<16x16xf32> -> vector<16x16xf32>
    %108 = vector.extract_strided_slice %65 {offsets = [16, 0], sizes = [16, 16], strides = [1, 1]} : vector<352x16xf32> to vector<16x16xf32>
    %cst_90 = arith.constant dense<0.000000e+00> : vector<16x16xf32>
    %109 = tpu.matmul %0, %108, %cst_90 {dimension_numbers = #tpu.dot_dimension_numbers<[1], [0], [0], [1], [0, 0, 1, 1], [], []>} : vector<16x16xf32>, vector<16x16xf32>, vector<16x16xf32> -> vector<16x16xf32>
    %110 = arith.mulf %107, %107 : vector<16x16xf32>
    %111 = arith.subf %109, %110 : vector<16x16xf32>
    %112 = vector.extract_strided_slice %65 {offsets = [32, 0], sizes = [16, 16], strides = [1, 1]} : vector<352x16xf32> to vector<16x16xf32>
    %cst_91 = arith.constant dense<0.000000e+00> : vector<16x16xf32>
    %113 = tpu.matmul %0, %112, %cst_91 {dimension_numbers = #tpu.dot_dimension_numbers<[1], [0], [0], [1], [0, 0, 1, 1], [], []>} : vector<16x16xf32>, vector<16x16xf32>, vector<16x16xf32> -> vector<16x16xf32>
    %114 = vector.extract_strided_slice %65 {offsets = [48, 0], sizes = [16, 16], strides = [1, 1]} : vector<352x16xf32> to vector<16x16xf32>
    %cst_92 = arith.constant dense<0.000000e+00> : vector<16x16xf32>
    %115 = tpu.matmul %0, %114, %cst_92 {dimension_numbers = #tpu.dot_dimension_numbers<[1], [0], [0], [1], [0, 0, 1, 1], [], []>} : vector<16x16xf32>, vector<16x16xf32>, vector<16x16xf32> -> vector<16x16xf32>
    %116 = arith.mulf %113, %113 : vector<16x16xf32>
    %117 = arith.subf %115, %116 : vector<16x16xf32>
    %118 = vector.extract_strided_slice %65 {offsets = [64, 0], sizes = [16, 16], strides = [1, 1]} : vector<352x16xf32> to vector<16x16xf32>
    %cst_93 = arith.constant dense<0.000000e+00> : vector<16x16xf32>
    %119 = tpu.matmul %0, %118, %cst_93 {dimension_numbers = #tpu.dot_dimension_numbers<[1], [0], [0], [1], [0, 0, 1, 1], [], []>} : vector<16x16xf32>, vector<16x16xf32>, vector<16x16xf32> -> vector<16x16xf32>
    %120 = arith.mulf %113, %107 : vector<16x16xf32>
    %121 = arith.subf %119, %120 : vector<16x16xf32>
    %cst_94 = arith.constant 2.000000e+00 : f32
    %122 = vector.broadcast %cst_94 : f32 to vector<16x16xf32>
    %123 = arith.mulf %122, %113 : vector<16x16xf32>
    %124 = arith.mulf %123, %107 : vector<16x16xf32>
    %cst_95 = arith.constant 9.99999974E-5 : f32
    %125 = vector.broadcast %cst_95 : f32 to vector<16x16xf32>
    %126 = arith.addf %124, %125 : vector<16x16xf32>
    %cst_96 = arith.constant 2.000000e+00 : f32
    %127 = vector.broadcast %cst_96 : f32 to vector<16x16xf32>
    %128 = arith.mulf %127, %121 : vector<16x16xf32>
    %cst_97 = arith.constant 8.99999984E-4 : f32
    %129 = vector.broadcast %cst_97 : f32 to vector<16x16xf32>
    %130 = arith.addf %128, %129 : vector<16x16xf32>
    %131 = arith.mulf %126, %130 : vector<16x16xf32>
    %132 = arith.mulf %113, %113 : vector<16x16xf32>
    %133 = arith.mulf %107, %107 : vector<16x16xf32>
    %134 = arith.addf %132, %133 : vector<16x16xf32>
    %cst_98 = arith.constant 9.99999974E-5 : f32
    %135 = vector.broadcast %cst_98 : f32 to vector<16x16xf32>
    %136 = arith.addf %134, %135 : vector<16x16xf32>
    %137 = arith.addf %117, %111 : vector<16x16xf32>
    %cst_99 = arith.constant 8.99999984E-4 : f32
    %138 = vector.broadcast %cst_99 : f32 to vector<16x16xf32>
    %139 = arith.addf %137, %138 : vector<16x16xf32>
    %140 = arith.mulf %136, %139 : vector<16x16xf32>
    %141 = arith.divf %131, %140 : vector<16x16xf32>
    %142 = vector.shape_cast %141 : vector<16x16xf32> to vector<1x16x16xf32>
    %cst_100 = arith.constant dense<0.000000e+00> : vector<1xf32>
    %143 = vector.multi_reduction <add>, %142, %cst_100 [1, 2] : vector<1x16x16xf32> to vector<1xf32>
    %144 = vector.shape_cast %143 : vector<1xf32> to vector<1x1x1xf32>
    %145 = vector.extract %144[0, 0, 0] : f32 from vector<1x1x1xf32>
    %cst_101 = arith.constant 0.000000e+00 : f32
    %146 = arith.addf %cst_101, %145 : f32
    %147 = vector.extract_strided_slice %65 {offsets = [80, 0], sizes = [16, 16], strides = [1, 1]} : vector<352x16xf32> to vector<16x16xf32>
    %cst_102 = arith.constant dense<0.000000e+00> : vector<16x16xf32>
    %148 = tpu.matmul %0, %147, %cst_102 {dimension_numbers = #tpu.dot_dimension_numbers<[1], [0], [0], [1], [0, 0, 1, 1], [], []>} : vector<16x16xf32>, vector<16x16xf32>, vector<16x16xf32> -> vector<16x16xf32>
    %149 = vector.extract_strided_slice %65 {offsets = [96, 0], sizes = [16, 16], strides = [1, 1]} : vector<352x16xf32> to vector<16x16xf32>
    %cst_103 = arith.constant dense<0.000000e+00> : vector<16x16xf32>
    %150 = tpu.matmul %0, %149, %cst_103 {dimension_numbers = #tpu.dot_dimension_numbers<[1], [0], [0], [1], [0, 0, 1, 1], [], []>} : vector<16x16xf32>, vector<16x16xf32>, vector<16x16xf32> -> vector<16x16xf32>
    %151 = arith.mulf %148, %148 : vector<16x16xf32>
    %152 = arith.subf %150, %151 : vector<16x16xf32>
    %153 = vector.extract_strided_slice %65 {offsets = [112, 0], sizes = [16, 16], strides = [1, 1]} : vector<352x16xf32> to vector<16x16xf32>
    %cst_104 = arith.constant dense<0.000000e+00> : vector<16x16xf32>
    %154 = tpu.matmul %0, %153, %cst_104 {dimension_numbers = #tpu.dot_dimension_numbers<[1], [0], [0], [1], [0, 0, 1, 1], [], []>} : vector<16x16xf32>, vector<16x16xf32>, vector<16x16xf32> -> vector<16x16xf32>
    %155 = arith.mulf %148, %107 : vector<16x16xf32>
    %156 = arith.subf %154, %155 : vector<16x16xf32>
    %cst_105 = arith.constant 2.000000e+00 : f32
    %157 = vector.broadcast %cst_105 : f32 to vector<16x16xf32>
    %158 = arith.mulf %157, %148 : vector<16x16xf32>
    %159 = arith.mulf %158, %107 : vector<16x16xf32>
    %cst_106 = arith.constant 9.99999974E-5 : f32
    %160 = vector.broadcast %cst_106 : f32 to vector<16x16xf32>
    %161 = arith.addf %159, %160 : vector<16x16xf32>
    %cst_107 = arith.constant 2.000000e+00 : f32
    %162 = vector.broadcast %cst_107 : f32 to vector<16x16xf32>
    %163 = arith.mulf %162, %156 : vector<16x16xf32>
    %cst_108 = arith.constant 8.99999984E-4 : f32
    %164 = vector.broadcast %cst_108 : f32 to vector<16x16xf32>
    %165 = arith.addf %163, %164 : vector<16x16xf32>
    %166 = arith.mulf %161, %165 : vector<16x16xf32>
    %167 = arith.mulf %148, %148 : vector<16x16xf32>
    %168 = arith.mulf %107, %107 : vector<16x16xf32>
    %169 = arith.addf %167, %168 : vector<16x16xf32>
    %cst_109 = arith.constant 9.99999974E-5 : f32
    %170 = vector.broadcast %cst_109 : f32 to vector<16x16xf32>
    %171 = arith.addf %169, %170 : vector<16x16xf32>
    %172 = arith.addf %152, %111 : vector<16x16xf32>
    %cst_110 = arith.constant 8.99999984E-4 : f32
    %173 = vector.broadcast %cst_110 : f32 to vector<16x16xf32>
    %174 = arith.addf %172, %173 : vector<16x16xf32>
    %175 = arith.mulf %171, %174 : vector<16x16xf32>
    %176 = arith.divf %166, %175 : vector<16x16xf32>
    %177 = vector.shape_cast %176 : vector<16x16xf32> to vector<1x16x16xf32>
    %cst_111 = arith.constant dense<0.000000e+00> : vector<1xf32>
    %178 = vector.multi_reduction <add>, %177, %cst_111 [1, 2] : vector<1x16x16xf32> to vector<1xf32>
    %179 = vector.shape_cast %178 : vector<1xf32> to vector<1x1x1xf32>
    %180 = vector.extract %179[0, 0, 0] : f32 from vector<1x1x1xf32>
    %cst_112 = arith.constant 0.000000e+00 : f32
    %181 = arith.addf %cst_112, %180 : f32
    %182 = vector.extract_strided_slice %65 {offsets = [128, 0], sizes = [16, 16], strides = [1, 1]} : vector<352x16xf32> to vector<16x16xf32>
    %cst_113 = arith.constant dense<0.000000e+00> : vector<16x16xf32>
    %183 = tpu.matmul %0, %182, %cst_113 {dimension_numbers = #tpu.dot_dimension_numbers<[1], [0], [0], [1], [0, 0, 1, 1], [], []>} : vector<16x16xf32>, vector<16x16xf32>, vector<16x16xf32> -> vector<16x16xf32>
    %184 = vector.extract_strided_slice %65 {offsets = [144, 0], sizes = [16, 16], strides = [1, 1]} : vector<352x16xf32> to vector<16x16xf32>
    %cst_114 = arith.constant dense<0.000000e+00> : vector<16x16xf32>
    %185 = tpu.matmul %0, %184, %cst_114 {dimension_numbers = #tpu.dot_dimension_numbers<[1], [0], [0], [1], [0, 0, 1, 1], [], []>} : vector<16x16xf32>, vector<16x16xf32>, vector<16x16xf32> -> vector<16x16xf32>
    %186 = arith.mulf %183, %183 : vector<16x16xf32>
    %187 = arith.subf %185, %186 : vector<16x16xf32>
    %188 = vector.extract_strided_slice %65 {offsets = [160, 0], sizes = [16, 16], strides = [1, 1]} : vector<352x16xf32> to vector<16x16xf32>
    %cst_115 = arith.constant dense<0.000000e+00> : vector<16x16xf32>
    %189 = tpu.matmul %0, %188, %cst_115 {dimension_numbers = #tpu.dot_dimension_numbers<[1], [0], [0], [1], [0, 0, 1, 1], [], []>} : vector<16x16xf32>, vector<16x16xf32>, vector<16x16xf32> -> vector<16x16xf32>
    %190 = arith.mulf %183, %107 : vector<16x16xf32>
    %191 = arith.subf %189, %190 : vector<16x16xf32>
    %cst_116 = arith.constant 2.000000e+00 : f32
    %192 = vector.broadcast %cst_116 : f32 to vector<16x16xf32>
    %193 = arith.mulf %192, %183 : vector<16x16xf32>
    %194 = arith.mulf %193, %107 : vector<16x16xf32>
    %cst_117 = arith.constant 9.99999974E-5 : f32
    %195 = vector.broadcast %cst_117 : f32 to vector<16x16xf32>
    %196 = arith.addf %194, %195 : vector<16x16xf32>
    %cst_118 = arith.constant 2.000000e+00 : f32
    %197 = vector.broadcast %cst_118 : f32 to vector<16x16xf32>
    %198 = arith.mulf %197, %191 : vector<16x16xf32>
    %cst_119 = arith.constant 8.99999984E-4 : f32
    %199 = vector.broadcast %cst_119 : f32 to vector<16x16xf32>
    %200 = arith.addf %198, %199 : vector<16x16xf32>
    %201 = arith.mulf %196, %200 : vector<16x16xf32>
    %202 = arith.mulf %183, %183 : vector<16x16xf32>
    %203 = arith.mulf %107, %107 : vector<16x16xf32>
    %204 = arith.addf %202, %203 : vector<16x16xf32>
    %cst_120 = arith.constant 9.99999974E-5 : f32
    %205 = vector.broadcast %cst_120 : f32 to vector<16x16xf32>
    %206 = arith.addf %204, %205 : vector<16x16xf32>
    %207 = arith.addf %187, %111 : vector<16x16xf32>
    %cst_121 = arith.constant 8.99999984E-4 : f32
    %208 = vector.broadcast %cst_121 : f32 to vector<16x16xf32>
    %209 = arith.addf %207, %208 : vector<16x16xf32>
    %210 = arith.mulf %206, %209 : vector<16x16xf32>
    %211 = arith.divf %201, %210 : vector<16x16xf32>
    %212 = vector.shape_cast %211 : vector<16x16xf32> to vector<1x16x16xf32>
    %cst_122 = arith.constant dense<0.000000e+00> : vector<1xf32>
    %213 = vector.multi_reduction <add>, %212, %cst_122 [1, 2] : vector<1x16x16xf32> to vector<1xf32>
    %214 = vector.shape_cast %213 : vector<1xf32> to vector<1x1x1xf32>
    %215 = vector.extract %214[0, 0, 0] : f32 from vector<1x1x1xf32>
    %cst_123 = arith.constant 0.000000e+00 : f32
    %216 = arith.addf %cst_123, %215 : f32
    %217 = vector.extract_strided_slice %67 {offsets = [48, 0], sizes = [16, 16], strides = [1, 1]} : vector<96x16xf32> to vector<16x16xf32>
    %cst_124 = arith.constant dense<0.000000e+00> : vector<16x16xf32>
    %218 = tpu.matmul %2, %217, %cst_124 {dimension_numbers = #tpu.dot_dimension_numbers<[1], [0], [0], [1], [0, 0, 1, 1], [], []>} : vector<16x16xf32>, vector<16x16xf32>, vector<16x16xf32> -> vector<16x16xf32>
    %219 = vector.extract_strided_slice %69 {offsets = [48, 0], sizes = [16, 16], strides = [1, 1]} : vector<96x16xf32> to vector<16x16xf32>
    %cst_125 = arith.constant dense<0.000000e+00> : vector<16x16xf32>
    %220 = tpu.matmul %3, %219, %cst_125 {dimension_numbers = #tpu.dot_dimension_numbers<[1], [0], [0], [1], [0, 0, 1, 1], [], []>} : vector<16x16xf32>, vector<16x16xf32>, vector<16x16xf32> -> vector<16x16xf32>
    %221 = math.absf %218 : vector<16x16xf32>
    %222 = math.absf %220 : vector<16x16xf32>
    %223 = arith.addf %221, %222 : vector<16x16xf32>
    %224 = vector.shape_cast %223 : vector<16x16xf32> to vector<1x16x16xf32>
    %cst_126 = arith.constant dense<0.000000e+00> : vector<1xf32>
    %225 = vector.multi_reduction <add>, %224, %cst_126 [1, 2] : vector<1x16x16xf32> to vector<1xf32>
    %226 = vector.shape_cast %225 : vector<1xf32> to vector<1x1x1xf32>
    %227 = vector.extract %226[0, 0, 0] : f32 from vector<1x1x1xf32>
    %228 = arith.addf %81, %227 : f32
    %229 = vector.extract_strided_slice %67 {offsets = [64, 0], sizes = [16, 16], strides = [1, 1]} : vector<96x16xf32> to vector<16x16xf32>
    %cst_127 = arith.constant dense<0.000000e+00> : vector<16x16xf32>
    %230 = tpu.matmul %2, %229, %cst_127 {dimension_numbers = #tpu.dot_dimension_numbers<[1], [0], [0], [1], [0, 0, 1, 1], [], []>} : vector<16x16xf32>, vector<16x16xf32>, vector<16x16xf32> -> vector<16x16xf32>
    %231 = vector.extract_strided_slice %69 {offsets = [64, 0], sizes = [16, 16], strides = [1, 1]} : vector<96x16xf32> to vector<16x16xf32>
    %cst_128 = arith.constant dense<0.000000e+00> : vector<16x16xf32>
    %232 = tpu.matmul %3, %231, %cst_128 {dimension_numbers = #tpu.dot_dimension_numbers<[1], [0], [0], [1], [0, 0, 1, 1], [], []>} : vector<16x16xf32>, vector<16x16xf32>, vector<16x16xf32> -> vector<16x16xf32>
    %233 = math.absf %230 : vector<16x16xf32>
    %234 = math.absf %232 : vector<16x16xf32>
    %235 = arith.addf %233, %234 : vector<16x16xf32>
    %236 = vector.shape_cast %235 : vector<16x16xf32> to vector<1x16x16xf32>
    %cst_129 = arith.constant dense<0.000000e+00> : vector<1xf32>
    %237 = vector.multi_reduction <add>, %236, %cst_129 [1, 2] : vector<1x16x16xf32> to vector<1xf32>
    %238 = vector.shape_cast %237 : vector<1xf32> to vector<1x1x1xf32>
    %239 = vector.extract %238[0, 0, 0] : f32 from vector<1x1x1xf32>
    %240 = arith.addf %93, %239 : f32
    %241 = vector.extract_strided_slice %67 {offsets = [80, 0], sizes = [16, 16], strides = [1, 1]} : vector<96x16xf32> to vector<16x16xf32>
    %cst_130 = arith.constant dense<0.000000e+00> : vector<16x16xf32>
    %242 = tpu.matmul %2, %241, %cst_130 {dimension_numbers = #tpu.dot_dimension_numbers<[1], [0], [0], [1], [0, 0, 1, 1], [], []>} : vector<16x16xf32>, vector<16x16xf32>, vector<16x16xf32> -> vector<16x16xf32>
    %243 = vector.extract_strided_slice %69 {offsets = [80, 0], sizes = [16, 16], strides = [1, 1]} : vector<96x16xf32> to vector<16x16xf32>
    %cst_131 = arith.constant dense<0.000000e+00> : vector<16x16xf32>
    %244 = tpu.matmul %3, %243, %cst_131 {dimension_numbers = #tpu.dot_dimension_numbers<[1], [0], [0], [1], [0, 0, 1, 1], [], []>} : vector<16x16xf32>, vector<16x16xf32>, vector<16x16xf32> -> vector<16x16xf32>
    %245 = math.absf %242 : vector<16x16xf32>
    %246 = math.absf %244 : vector<16x16xf32>
    %247 = arith.addf %245, %246 : vector<16x16xf32>
    %248 = vector.shape_cast %247 : vector<16x16xf32> to vector<1x16x16xf32>
    %cst_132 = arith.constant dense<0.000000e+00> : vector<1xf32>
    %249 = vector.multi_reduction <add>, %248, %cst_132 [1, 2] : vector<1x16x16xf32> to vector<1xf32>
    %250 = vector.shape_cast %249 : vector<1xf32> to vector<1x1x1xf32>
    %251 = vector.extract %250[0, 0, 0] : f32 from vector<1x1x1xf32>
    %252 = arith.addf %105, %251 : f32
    %253 = vector.extract_strided_slice %65 {offsets = [176, 0], sizes = [16, 16], strides = [1, 1]} : vector<352x16xf32> to vector<16x16xf32>
    %cst_133 = arith.constant dense<0.000000e+00> : vector<16x16xf32>
    %254 = tpu.matmul %0, %253, %cst_133 {dimension_numbers = #tpu.dot_dimension_numbers<[1], [0], [0], [1], [0, 0, 1, 1], [], []>} : vector<16x16xf32>, vector<16x16xf32>, vector<16x16xf32> -> vector<16x16xf32>
    %255 = vector.extract_strided_slice %65 {offsets = [192, 0], sizes = [16, 16], strides = [1, 1]} : vector<352x16xf32> to vector<16x16xf32>
    %cst_134 = arith.constant dense<0.000000e+00> : vector<16x16xf32>
    %256 = tpu.matmul %0, %255, %cst_134 {dimension_numbers = #tpu.dot_dimension_numbers<[1], [0], [0], [1], [0, 0, 1, 1], [], []>} : vector<16x16xf32>, vector<16x16xf32>, vector<16x16xf32> -> vector<16x16xf32>
    %257 = arith.mulf %254, %254 : vector<16x16xf32>
    %258 = arith.subf %256, %257 : vector<16x16xf32>
    %259 = vector.extract_strided_slice %65 {offsets = [208, 0], sizes = [16, 16], strides = [1, 1]} : vector<352x16xf32> to vector<16x16xf32>
    %cst_135 = arith.constant dense<0.000000e+00> : vector<16x16xf32>
    %260 = tpu.matmul %0, %259, %cst_135 {dimension_numbers = #tpu.dot_dimension_numbers<[1], [0], [0], [1], [0, 0, 1, 1], [], []>} : vector<16x16xf32>, vector<16x16xf32>, vector<16x16xf32> -> vector<16x16xf32>
    %261 = vector.extract_strided_slice %65 {offsets = [224, 0], sizes = [16, 16], strides = [1, 1]} : vector<352x16xf32> to vector<16x16xf32>
    %cst_136 = arith.constant dense<0.000000e+00> : vector<16x16xf32>
    %262 = tpu.matmul %0, %261, %cst_136 {dimension_numbers = #tpu.dot_dimension_numbers<[1], [0], [0], [1], [0, 0, 1, 1], [], []>} : vector<16x16xf32>, vector<16x16xf32>, vector<16x16xf32> -> vector<16x16xf32>
    %263 = arith.mulf %260, %260 : vector<16x16xf32>
    %264 = arith.subf %262, %263 : vector<16x16xf32>
    %265 = vector.extract_strided_slice %65 {offsets = [240, 0], sizes = [16, 16], strides = [1, 1]} : vector<352x16xf32> to vector<16x16xf32>
    %cst_137 = arith.constant dense<0.000000e+00> : vector<16x16xf32>
    %266 = tpu.matmul %0, %265, %cst_137 {dimension_numbers = #tpu.dot_dimension_numbers<[1], [0], [0], [1], [0, 0, 1, 1], [], []>} : vector<16x16xf32>, vector<16x16xf32>, vector<16x16xf32> -> vector<16x16xf32>
    %267 = arith.mulf %260, %254 : vector<16x16xf32>
    %268 = arith.subf %266, %267 : vector<16x16xf32>
    %cst_138 = arith.constant 2.000000e+00 : f32
    %269 = vector.broadcast %cst_138 : f32 to vector<16x16xf32>
    %270 = arith.mulf %269, %260 : vector<16x16xf32>
    %271 = arith.mulf %270, %254 : vector<16x16xf32>
    %cst_139 = arith.constant 9.99999974E-5 : f32
    %272 = vector.broadcast %cst_139 : f32 to vector<16x16xf32>
    %273 = arith.addf %271, %272 : vector<16x16xf32>
    %cst_140 = arith.constant 2.000000e+00 : f32
    %274 = vector.broadcast %cst_140 : f32 to vector<16x16xf32>
    %275 = arith.mulf %274, %268 : vector<16x16xf32>
    %cst_141 = arith.constant 8.99999984E-4 : f32
    %276 = vector.broadcast %cst_141 : f32 to vector<16x16xf32>
    %277 = arith.addf %275, %276 : vector<16x16xf32>
    %278 = arith.mulf %273, %277 : vector<16x16xf32>
    %279 = arith.mulf %260, %260 : vector<16x16xf32>
    %280 = arith.mulf %254, %254 : vector<16x16xf32>
    %281 = arith.addf %279, %280 : vector<16x16xf32>
    %cst_142 = arith.constant 9.99999974E-5 : f32
    %282 = vector.broadcast %cst_142 : f32 to vector<16x16xf32>
    %283 = arith.addf %281, %282 : vector<16x16xf32>
    %284 = arith.addf %264, %258 : vector<16x16xf32>
    %cst_143 = arith.constant 8.99999984E-4 : f32
    %285 = vector.broadcast %cst_143 : f32 to vector<16x16xf32>
    %286 = arith.addf %284, %285 : vector<16x16xf32>
    %287 = arith.mulf %283, %286 : vector<16x16xf32>
    %288 = arith.divf %278, %287 : vector<16x16xf32>
    %289 = vector.shape_cast %288 : vector<16x16xf32> to vector<1x16x16xf32>
    %cst_144 = arith.constant dense<0.000000e+00> : vector<1xf32>
    %290 = vector.multi_reduction <add>, %289, %cst_144 [1, 2] : vector<1x16x16xf32> to vector<1xf32>
    %291 = vector.shape_cast %290 : vector<1xf32> to vector<1x1x1xf32>
    %292 = vector.extract %291[0, 0, 0] : f32 from vector<1x1x1xf32>
    %293 = arith.addf %146, %292 : f32
    %294 = vector.extract_strided_slice %65 {offsets = [256, 0], sizes = [16, 16], strides = [1, 1]} : vector<352x16xf32> to vector<16x16xf32>
    %cst_145 = arith.constant dense<0.000000e+00> : vector<16x16xf32>
    %295 = tpu.matmul %0, %294, %cst_145 {dimension_numbers = #tpu.dot_dimension_numbers<[1], [0], [0], [1], [0, 0, 1, 1], [], []>} : vector<16x16xf32>, vector<16x16xf32>, vector<16x16xf32> -> vector<16x16xf32>
    %296 = vector.extract_strided_slice %65 {offsets = [272, 0], sizes = [16, 16], strides = [1, 1]} : vector<352x16xf32> to vector<16x16xf32>
    %cst_146 = arith.constant dense<0.000000e+00> : vector<16x16xf32>
    %297 = tpu.matmul %0, %296, %cst_146 {dimension_numbers = #tpu.dot_dimension_numbers<[1], [0], [0], [1], [0, 0, 1, 1], [], []>} : vector<16x16xf32>, vector<16x16xf32>, vector<16x16xf32> -> vector<16x16xf32>
    %298 = arith.mulf %295, %295 : vector<16x16xf32>
    %299 = arith.subf %297, %298 : vector<16x16xf32>
    %300 = vector.extract_strided_slice %65 {offsets = [288, 0], sizes = [16, 16], strides = [1, 1]} : vector<352x16xf32> to vector<16x16xf32>
    %cst_147 = arith.constant dense<0.000000e+00> : vector<16x16xf32>
    %301 = tpu.matmul %0, %300, %cst_147 {dimension_numbers = #tpu.dot_dimension_numbers<[1], [0], [0], [1], [0, 0, 1, 1], [], []>} : vector<16x16xf32>, vector<16x16xf32>, vector<16x16xf32> -> vector<16x16xf32>
    %302 = arith.mulf %295, %254 : vector<16x16xf32>
    %303 = arith.subf %301, %302 : vector<16x16xf32>
    %cst_148 = arith.constant 2.000000e+00 : f32
    %304 = vector.broadcast %cst_148 : f32 to vector<16x16xf32>
    %305 = arith.mulf %304, %295 : vector<16x16xf32>
    %306 = arith.mulf %305, %254 : vector<16x16xf32>
    %cst_149 = arith.constant 9.99999974E-5 : f32
    %307 = vector.broadcast %cst_149 : f32 to vector<16x16xf32>
    %308 = arith.addf %306, %307 : vector<16x16xf32>
    %cst_150 = arith.constant 2.000000e+00 : f32
    %309 = vector.broadcast %cst_150 : f32 to vector<16x16xf32>
    %310 = arith.mulf %309, %303 : vector<16x16xf32>
    %cst_151 = arith.constant 8.99999984E-4 : f32
    %311 = vector.broadcast %cst_151 : f32 to vector<16x16xf32>
    %312 = arith.addf %310, %311 : vector<16x16xf32>
    %313 = arith.mulf %308, %312 : vector<16x16xf32>
    %314 = arith.mulf %295, %295 : vector<16x16xf32>
    %315 = arith.mulf %254, %254 : vector<16x16xf32>
    %316 = arith.addf %314, %315 : vector<16x16xf32>
    %cst_152 = arith.constant 9.99999974E-5 : f32
    %317 = vector.broadcast %cst_152 : f32 to vector<16x16xf32>
    %318 = arith.addf %316, %317 : vector<16x16xf32>
    %319 = arith.addf %299, %258 : vector<16x16xf32>
    %cst_153 = arith.constant 8.99999984E-4 : f32
    %320 = vector.broadcast %cst_153 : f32 to vector<16x16xf32>
    %321 = arith.addf %319, %320 : vector<16x16xf32>
    %322 = arith.mulf %318, %321 : vector<16x16xf32>
    %323 = arith.divf %313, %322 : vector<16x16xf32>
    %324 = vector.shape_cast %323 : vector<16x16xf32> to vector<1x16x16xf32>
    %cst_154 = arith.constant dense<0.000000e+00> : vector<1xf32>
    %325 = vector.multi_reduction <add>, %324, %cst_154 [1, 2] : vector<1x16x16xf32> to vector<1xf32>
    %326 = vector.shape_cast %325 : vector<1xf32> to vector<1x1x1xf32>
    %327 = vector.extract %326[0, 0, 0] : f32 from vector<1x1x1xf32>
    %328 = arith.addf %181, %327 : f32
    %329 = vector.extract_strided_slice %65 {offsets = [304, 0], sizes = [16, 16], strides = [1, 1]} : vector<352x16xf32> to vector<16x16xf32>
    %cst_155 = arith.constant dense<0.000000e+00> : vector<16x16xf32>
    %330 = tpu.matmul %0, %329, %cst_155 {dimension_numbers = #tpu.dot_dimension_numbers<[1], [0], [0], [1], [0, 0, 1, 1], [], []>} : vector<16x16xf32>, vector<16x16xf32>, vector<16x16xf32> -> vector<16x16xf32>
    %331 = vector.extract_strided_slice %65 {offsets = [320, 0], sizes = [16, 16], strides = [1, 1]} : vector<352x16xf32> to vector<16x16xf32>
    %cst_156 = arith.constant dense<0.000000e+00> : vector<16x16xf32>
    %332 = tpu.matmul %0, %331, %cst_156 {dimension_numbers = #tpu.dot_dimension_numbers<[1], [0], [0], [1], [0, 0, 1, 1], [], []>} : vector<16x16xf32>, vector<16x16xf32>, vector<16x16xf32> -> vector<16x16xf32>
    %333 = arith.mulf %330, %330 : vector<16x16xf32>
    %334 = arith.subf %332, %333 : vector<16x16xf32>
    %335 = vector.extract_strided_slice %65 {offsets = [336, 0], sizes = [16, 16], strides = [1, 1]} : vector<352x16xf32> to vector<16x16xf32>
    %cst_157 = arith.constant dense<0.000000e+00> : vector<16x16xf32>
    %336 = tpu.matmul %0, %335, %cst_157 {dimension_numbers = #tpu.dot_dimension_numbers<[1], [0], [0], [1], [0, 0, 1, 1], [], []>} : vector<16x16xf32>, vector<16x16xf32>, vector<16x16xf32> -> vector<16x16xf32>
    %337 = arith.mulf %330, %254 : vector<16x16xf32>
    %338 = arith.subf %336, %337 : vector<16x16xf32>
    %cst_158 = arith.constant 2.000000e+00 : f32
    %339 = vector.broadcast %cst_158 : f32 to vector<16x16xf32>
    %340 = arith.mulf %339, %330 : vector<16x16xf32>
    %341 = arith.mulf %340, %254 : vector<16x16xf32>
    %cst_159 = arith.constant 9.99999974E-5 : f32
    %342 = vector.broadcast %cst_159 : f32 to vector<16x16xf32>
    %343 = arith.addf %341, %342 : vector<16x16xf32>
    %cst_160 = arith.constant 2.000000e+00 : f32
    %344 = vector.broadcast %cst_160 : f32 to vector<16x16xf32>
    %345 = arith.mulf %344, %338 : vector<16x16xf32>
    %cst_161 = arith.constant 8.99999984E-4 : f32
    %346 = vector.broadcast %cst_161 : f32 to vector<16x16xf32>
    %347 = arith.addf %345, %346 : vector<16x16xf32>
    %348 = arith.mulf %343, %347 : vector<16x16xf32>
    %349 = arith.mulf %330, %330 : vector<16x16xf32>
    %350 = arith.mulf %254, %254 : vector<16x16xf32>
    %351 = arith.addf %349, %350 : vector<16x16xf32>
    %cst_162 = arith.constant 9.99999974E-5 : f32
    %352 = vector.broadcast %cst_162 : f32 to vector<16x16xf32>
    %353 = arith.addf %351, %352 : vector<16x16xf32>
    %354 = arith.addf %334, %258 : vector<16x16xf32>
    %cst_163 = arith.constant 8.99999984E-4 : f32
    %355 = vector.broadcast %cst_163 : f32 to vector<16x16xf32>
    %356 = arith.addf %354, %355 : vector<16x16xf32>
    %357 = arith.mulf %353, %356 : vector<16x16xf32>
    %358 = arith.divf %348, %357 : vector<16x16xf32>
    %359 = vector.shape_cast %358 : vector<16x16xf32> to vector<1x16x16xf32>
    %cst_164 = arith.constant dense<0.000000e+00> : vector<1xf32>
    %360 = vector.multi_reduction <add>, %359, %cst_164 [1, 2] : vector<1x16x16xf32> to vector<1xf32>
    %361 = vector.shape_cast %360 : vector<1xf32> to vector<1x1x1xf32>
    %362 = vector.extract %361[0, 0, 0] : f32 from vector<1x1x1xf32>
    %363 = arith.addf %216, %362 : f32
    %364 = tpu.iota {dimensions = array<i32: 0>} : vector<8x128xi32>
    %365 = tpu.iota {dimensions = array<i32: 1>} : vector<8x128xi32>
    %cst_165 = arith.constant 0.000000e+00 : f32
    %366 = vector.broadcast %cst_165 : f32 to vector<8x128xf32>
    %c0_i32 = arith.constant 0 : i32
    %367 = vector.broadcast %c0_i32 : i32 to vector<8x128xi32>
    %368 = arith.cmpi eq, %364, %367 : vector<8x128xi32>
    %c0_i32_166 = arith.constant 0 : i32
    %369 = vector.broadcast %c0_i32_166 : i32 to vector<8x128xi32>
    %370 = arith.cmpi eq, %365, %369 : vector<8x128xi32>
    %371 = arith.andi %368, %370 : vector<8x128xi1>
    %372 = vector.broadcast %228 : f32 to vector<8x128xf32>
    %373 = arith.select %371, %372, %366 : vector<8x128xi1>, vector<8x128xf32>
    %c0_i32_167 = arith.constant 0 : i32
    %374 = vector.broadcast %c0_i32_167 : i32 to vector<8x128xi32>
    %375 = arith.cmpi eq, %364, %374 : vector<8x128xi32>
    %c1_i32 = arith.constant 1 : i32
    %376 = vector.broadcast %c1_i32 : i32 to vector<8x128xi32>
    %377 = arith.cmpi eq, %365, %376 : vector<8x128xi32>
    %378 = arith.andi %375, %377 : vector<8x128xi1>
    %379 = vector.broadcast %240 : f32 to vector<8x128xf32>
    %380 = arith.select %378, %379, %373 : vector<8x128xi1>, vector<8x128xf32>
    %c0_i32_168 = arith.constant 0 : i32
    %381 = vector.broadcast %c0_i32_168 : i32 to vector<8x128xi32>
    %382 = arith.cmpi eq, %364, %381 : vector<8x128xi32>
    %c2_i32 = arith.constant 2 : i32
    %383 = vector.broadcast %c2_i32 : i32 to vector<8x128xi32>
    %384 = arith.cmpi eq, %365, %383 : vector<8x128xi32>
    %385 = arith.andi %382, %384 : vector<8x128xi1>
    %386 = vector.broadcast %252 : f32 to vector<8x128xf32>
    %387 = arith.select %385, %386, %380 : vector<8x128xi1>, vector<8x128xf32>
    %c0_i32_169 = arith.constant 0 : i32
    %388 = vector.broadcast %c0_i32_169 : i32 to vector<8x128xi32>
    %389 = arith.cmpi eq, %364, %388 : vector<8x128xi32>
    %c3_i32 = arith.constant 3 : i32
    %390 = vector.broadcast %c3_i32 : i32 to vector<8x128xi32>
    %391 = arith.cmpi eq, %365, %390 : vector<8x128xi32>
    %392 = arith.andi %389, %391 : vector<8x128xi1>
    %393 = vector.broadcast %293 : f32 to vector<8x128xf32>
    %394 = arith.select %392, %393, %387 : vector<8x128xi1>, vector<8x128xf32>
    %c0_i32_170 = arith.constant 0 : i32
    %395 = vector.broadcast %c0_i32_170 : i32 to vector<8x128xi32>
    %396 = arith.cmpi eq, %364, %395 : vector<8x128xi32>
    %c4_i32 = arith.constant 4 : i32
    %397 = vector.broadcast %c4_i32 : i32 to vector<8x128xi32>
    %398 = arith.cmpi eq, %365, %397 : vector<8x128xi32>
    %399 = arith.andi %396, %398 : vector<8x128xi1>
    %400 = vector.broadcast %328 : f32 to vector<8x128xf32>
    %401 = arith.select %399, %400, %394 : vector<8x128xi1>, vector<8x128xf32>
    %c0_i32_171 = arith.constant 0 : i32
    %402 = vector.broadcast %c0_i32_171 : i32 to vector<8x128xi32>
    %403 = arith.cmpi eq, %364, %402 : vector<8x128xi32>
    %c5_i32 = arith.constant 5 : i32
    %404 = vector.broadcast %c5_i32 : i32 to vector<8x128xi32>
    %405 = arith.cmpi eq, %365, %404 : vector<8x128xi32>
    %406 = arith.andi %403, %405 : vector<8x128xi1>
    %407 = vector.broadcast %363 : f32 to vector<8x128xf32>
    %408 = arith.select %406, %407, %401 : vector<8x128xi1>, vector<8x128xf32>
    %c0_172 = arith.constant 0 : index
    %c0_173 = arith.constant 0 : index
    %c0_174 = arith.constant 0 : index
    %409 = vector.load %arg11[%c0_172, %c0_173, %c0_174] : memref<1x8x128xf32, #tpu.memory_space<vmem>>, vector<1x8x128xf32>
    %410 = vector.shape_cast %409 : vector<1x8x128xf32> to vector<8x128xf32>
    %411 = vector.shape_cast %408 : vector<8x128xf32> to vector<1x8x128xf32>
    tpu.vector_store %arg11[%c0_172, %c0_173, %c0_174], %411 {strides = array<i32>} : memref<1x8x128xf32, #tpu.memory_space<vmem>>, vector<1x8x128xf32>,
    return
  }
  func.func @transform_0(%arg0: i32) -> (i32, i32) {
    %c0_i32 = arith.constant 0 : i32
    %c0_i32_0 = arith.constant 0 : i32
    %c0_i32_1 = arith.constant 0 : i32
    return %c0_i32, %c0_i32_0 : i32, i32
  }
  func.func @transform_1(%arg0: i32) -> (i32, i32) {
    %c0_i32 = arith.constant 0 : i32
    %c0_i32_0 = arith.constant 0 : i32
    %c0_i32_1 = arith.constant 0 : i32
    return %c0_i32, %c0_i32_0 : i32, i32
  }
  func.func @transform_2(%arg0: i32) -> (i32, i32) {
    %c0_i32 = arith.constant 0 : i32
    %c0_i32_0 = arith.constant 0 : i32
    %c0_i32_1 = arith.constant 0 : i32
    return %c0_i32, %c0_i32_0 : i32, i32
  }
  func.func @transform_3(%arg0: i32) -> (i32, i32) {
    %c0_i32 = arith.constant 0 : i32
    %c0_i32_0 = arith.constant 0 : i32
    %c0_i32_1 = arith.constant 0 : i32
    return %c0_i32, %c0_i32_0 : i32, i32
  }
  func.func @transform_4(%arg0: i32) -> (i32, i32) {
    %c0_i32 = arith.constant 0 : i32
    %c0_i32_0 = arith.constant 0 : i32
    %c0_i32_1 = arith.constant 0 : i32
    return %c0_i32, %c0_i32_0 : i32, i32
  }
  func.func @transform_5(%arg0: i32) -> (i32, i32) {
    %c0_i32 = arith.constant 0 : i32
    %c0_i32_0 = arith.constant 0 : i32
    %c0_i32_1 = arith.constant 0 : i32
    return %c0_i32, %c0_i32_0 : i32, i32
  }
  func.func @transform_6(%arg0: i32) -> (i32, i32, i32) {
    %c0_i32 = arith.constant 0 : i32
    %c0_i32_0 = arith.constant 0 : i32
    %c0_i32_1 = arith.constant 0 : i32
    return %arg0, %c0_i32, %c0_i32_0 : i32, i32, i32
  }
  func.func @transform_7(%arg0: i32) -> (i32, i32, i32) {
    %c0_i32 = arith.constant 0 : i32
    %c0_i32_0 = arith.constant 0 : i32
    %c0_i32_1 = arith.constant 0 : i32
    return %arg0, %c0_i32, %c0_i32_0 : i32, i32, i32
  }
  func.func @transform_8(%arg0: i32) -> (i32, i32, i32) {
    %c0_i32 = arith.constant 0 : i32
    %c0_i32_0 = arith.constant 0 : i32
    %c0_i32_1 = arith.constant 0 : i32
    return %arg0, %c0_i32, %c0_i32_0 : i32, i32, i32
  }
  func.func @transform_9(%arg0: i32) -> (i32, i32, i32) {
    %c0_i32 = arith.constant 0 : i32
    %c0_i32_0 = arith.constant 0 : i32
    %c0_i32_1 = arith.constant 0 : i32
    return %arg0, %c0_i32, %c0_i32_0 : i32, i32, i32
  }
  func.func @transform_10(%arg0: i32) -> (i32, i32, i32) {
    %c0_i32 = arith.constant 0 : i32
    %c0_i32_0 = arith.constant 0 : i32
    %c0_i32_1 = arith.constant 0 : i32
    return %arg0, %c0_i32, %c0_i32_0 : i32, i32, i32
  }
}

</mosaic_0001>

<llo_original>
// kernel: l_ssim.1
$region0: #{l_ssim.1}
  #allocation0 [shape = 'u32[]', space=smem, size = 0x4, offset = 0x4, fixed_abs, tag = 'smem constant byte address 0x4 - core index']
  #allocation1 [shape = 'u32[144,128]{1,0:T(1,128)}', space=vmem, size = 0x12000, scoped, tag = 'internal scratch']
  #allocation2 [shape = 'f32[352,16]{1,0:T(8,128)}', space=vmem, size = 0x2c000, scoped, tag = 'scratch operand']
  #allocation3 [shape = 'f32[96,16]{1,0:T(8,128)}', space=vmem, size = 0xc000, scoped, tag = 'scratch operand']
  %s0 = inlined_call_operand.hbm [shape: f32[16,16], index: 0, kind: input, shape index: {}, may-alias: {0,1}]
  %s1 = inlined_call_operand.hbm [shape: f32[16,16], index: 1, kind: input, shape index: {}, may-alias: {0,1}]
  %s2 = inlined_call_operand.vmem [shape: f32[16,16], index: 2, kind: input, shape index: {}, may-alias: {2,4}]
  %s3 = inlined_call_operand.vmem [shape: f32[16,16], index: 3, kind: input, shape index: {}, may-alias: {3,5}]
  %s4 = inlined_call_operand.vmem [shape: f32[16,16], index: 4, kind: input, shape index: {}, may-alias: {2,4}]
  %s5 = inlined_call_operand.vmem [shape: f32[16,16], index: 5, kind: input, shape index: {}, may-alias: {3,5}]
  %s6 = inlined_call_operand.hbm [shape: f32[2,16,16], index: 6, kind: input, shape index: {}]
  %s7 = inlined_call_operand.hbm [shape: f32[2,16,16], index: 7, kind: input, shape index: {}]
  %s8 = inlined_call_operand.hbm [shape: f32[2,16,16], index: 8, kind: input, shape index: {}]
  %s9 = inlined_call_operand.hbm [shape: f32[2,16,16], index: 9, kind: input, shape index: {}]
  %s10 = inlined_call_operand.vmem [shape: f32[1,8,128], index: 10, kind: output, shape index: {}]
  %s11 = sld [smem:[#allocation0]]
  $region74: #{l_ssim.1} parent=0
    _
  %s13 = ssub.s32 1, %s11
  %s14 = scalar_select 0, %s13, %s11
  $region1: #{l_ssim.1} parent=0
    #allocation4 [shape = 'u8[8192]{0}', space=vmem, size = 0x2000, scoped, tag = 'input window, operand 0, single buffered']
    #allocation5 [shape = 's32[1]{0}', space=sflag, size = 0x4, scoped, tag = 'scoped memory for l_ssim.1']
    #allocation6 [shape = 'u8[8192]{0}', space=vmem, size = 0x2000, scoped, tag = 'input window, operand 1, single buffered']
    #allocation7 [shape = 's32[1]{0}', space=sflag, size = 0x4, scoped, tag = 'scoped memory for l_ssim.1']
    #allocation8 [shape = 'u8[16384]{0}', space=vmem, size = 0x4000, scoped, tag = 'input window, operand 6, single buffered']
    #allocation9 [shape = 'u8[16384]{0}', space=vmem, size = 0x4000, scoped, tag = 'input window, operand 7, single buffered']
    #allocation10 [shape = 's32[1]{0}', space=sflag, size = 0x4, scoped, tag = 'scoped memory for l_ssim.1']
    #allocation11 [shape = 'u8[16384]{0}', space=vmem, size = 0x4000, scoped, tag = 'input window, operand 8, single buffered']
    #allocation12 [shape = 'u8[16384]{0}', space=vmem, size = 0x4000, scoped, tag = 'input window, operand 9, single buffered']
    #allocation13 [shape = 's32[1]{0}', space=sflag, size = 0x4, scoped, tag = 'scoped memory for l_ssim.1']
    %15 = vsyncpa [#allocation5], 0
    %16 = vsyncpa [#allocation7], 0
    %17 = vsyncpa [#allocation10], 0
    %18 = vsyncpa [#allocation13], 0
    // Predicated region
    $region2: #{l_ssim.1} parent=1 // pred_check
      _
    $region3: #{l_ssim.1} parent=1 // pred_check_branch
      %20 = sbr.rel (0) target = $region5
    $region4: #{l_ssim.1} parent=1 // pred_region
      %s22 = ssub.s32 256, 256
      %23 = vsyncadd [#allocation5], %s22
      %s24 = sshll.u32 [#allocation4], 4
      %s25 = int_to_ptr.vmem [resolvable:$true] %s24
      %30 = dma.hbm_to_vmem [thread:$0]  %s0, 256, %s25, [#allocation5], 128, 128, 8
    $region5: #{l_ssim.1} parent=1 // pred_fallthru
      _
    // Predicated region
    $region6: #{l_ssim.1} parent=1 // pred_check
      _
    $region7: #{l_ssim.1} parent=1 // pred_check_branch
      %32 = sbr.rel (0) target = $region9
    $region8: #{l_ssim.1} parent=1 // pred_region
      %s34 = ssub.s32 256, 256
      %35 = vsyncadd [#allocation7], %s34
      %s36 = sshll.u32 [#allocation6], 4
      %s37 = int_to_ptr.vmem [resolvable:$true] %s36
      %42 = dma.hbm_to_vmem [thread:$0]  %s1, 256, %s37, [#allocation7], 128, 128, 8
    $region9: #{l_ssim.1} parent=1 // pred_fallthru
      _
    // Predicated region
    $region10: #{l_ssim.1} parent=1 // pred_check
      _
    $region11: #{l_ssim.1} parent=1 // pred_check_branch
      %44 = sbr.rel (0) target = $region13
    $region12: #{l_ssim.1} parent=1 // pred_region
      _
    $region13: #{l_ssim.1} parent=1 // pred_fallthru
      _
    // Predicated region
    $region14: #{l_ssim.1} parent=1 // pred_check
      _
    $region15: #{l_ssim.1} parent=1 // pred_check_branch
      %46 = sbr.rel (0) target = $region17
    $region16: #{l_ssim.1} parent=1 // pred_region
      _
    $region17: #{l_ssim.1} parent=1 // pred_fallthru
      _
    // Predicated region
    $region18: #{l_ssim.1} parent=1 // pred_check
      _
    $region19: #{l_ssim.1} parent=1 // pred_check_branch
      %48 = sbr.rel (0) target = $region21
    $region20: #{l_ssim.1} parent=1 // pred_region
      _
    $region21: #{l_ssim.1} parent=1 // pred_fallthru
      _
    // Predicated region
    $region22: #{l_ssim.1} parent=1 // pred_check
      _
    $region23: #{l_ssim.1} parent=1 // pred_check_branch
      %50 = sbr.rel (0) target = $region25
    $region24: #{l_ssim.1} parent=1 // pred_region
      _
    $region25: #{l_ssim.1} parent=1 // pred_fallthru
      _
    // Predicated region
    $region26: #{l_ssim.1} parent=1 // pred_check
      _
    $region27: #{l_ssim.1} parent=1 // pred_check_branch
      %52 = sbr.rel (0) target = $region29
    $region28: #{l_ssim.1} parent=1 // pred_region
      %s54 = ssub.s32 512, 512
      %55 = vsyncadd [#allocation7], %s54
      %s56 = sshll.u32 [#allocation8], 4
      %s57 = int_to_ptr.vmem [resolvable:$true] %s56
      %62 = dma.hbm_to_vmem [thread:$0]  %s6, 512, %s57, [#allocation7], 128, 128, 8
    $region29: #{l_ssim.1} parent=1 // pred_fallthru
      _
    // Predicated region
    $region30: #{l_ssim.1} parent=1 // pred_check
      _
    $region31: #{l_ssim.1} parent=1 // pred_check_branch
      %64 = sbr.rel (0) target = $region33
    $region32: #{l_ssim.1} parent=1 // pred_region
      %s66 = ssub.s32 512, 512
      %67 = vsyncadd [#allocation10], %s66
      %s68 = sshll.u32 [#allocation9], 4
      %s69 = int_to_ptr.vmem [resolvable:$true] %s68
      %74 = dma.hbm_to_vmem [thread:$0]  %s7, 512, %s69, [#allocation10], 128, 128, 8
    $region33: #{l_ssim.1} parent=1 // pred_fallthru
      _
    // Predicated region
    $region34: #{l_ssim.1} parent=1 // pred_check
      _
    $region35: #{l_ssim.1} parent=1 // pred_check_branch
      %76 = sbr.rel (0) target = $region37
    $region36: #{l_ssim.1} parent=1 // pred_region
      %s78 = ssub.s32 512, 512
      %79 = vsyncadd [#allocation10], %s78
      %s80 = sshll.u32 [#allocation11], 4
      %s81 = int_to_ptr.vmem [resolvable:$true] %s80
      %86 = dma.hbm_to_vmem [thread:$0]  %s8, 512, %s81, [#allocation10], 128, 128, 8
    $region37: #{l_ssim.1} parent=1 // pred_fallthru
      _
    // Predicated region
    $region38: #{l_ssim.1} parent=1 // pred_check
      _
    $region39: #{l_ssim.1} parent=1 // pred_check_branch
      %88 = sbr.rel (0) target = $region41
    $region40: #{l_ssim.1} parent=1 // pred_region
      %s90 = ssub.s32 512, 512
      %91 = vsyncadd [#allocation13], %s90
      %s92 = sshll.u32 [#allocation12], 4
      %s93 = int_to_ptr.vmem [resolvable:$true] %s92
      %98 = dma.hbm_to_vmem [thread:$0]  %s9, 512, %s93, [#allocation13], 128, 128, 8
    $region41: #{l_ssim.1} parent=1 // pred_fallthru
      _
    // Predicated region
    $region42: #{l_ssim.1} parent=1 // pred_check
      _
    $region43: #{l_ssim.1} parent=1 // pred_check_branch
      %100 = sbr.rel (0) target = $region45
    $region44: #{l_ssim.1} parent=1 // pred_region
      %101 = dma.done [#allocation5], 256
    $region45: #{l_ssim.1} parent=1 // pred_fallthru
      _
    // Predicated region
    $region46: #{l_ssim.1} parent=1 // pred_check
      _
    $region47: #{l_ssim.1} parent=1 // pred_check_branch
      %103 = sbr.rel (0) target = $region49
    $region48: #{l_ssim.1} parent=1 // pred_region
      %104 = dma.done [#allocation7], 256
    $region49: #{l_ssim.1} parent=1 // pred_fallthru
      _
    // Predicated region
    $region50: #{l_ssim.1} parent=1 // pred_check
      _
    $region51: #{l_ssim.1} parent=1 // pred_check_branch
      %106 = sbr.rel (0) target = $region53
    $region52: #{l_ssim.1} parent=1 // pred_region
      %107 = dma.done [#allocation7], 512
    $region53: #{l_ssim.1} parent=1 // pred_fallthru
      _
    // Predicated region
    $region54: #{l_ssim.1} parent=1 // pred_check
      _
    $region55: #{l_ssim.1} parent=1 // pred_check_branch
      %109 = sbr.rel (0) target = $region57
    $region56: #{l_ssim.1} parent=1 // pred_region
      %110 = dma.done [#allocation10], 512
    $region57: #{l_ssim.1} parent=1 // pred_fallthru
      _
    // Predicated region
    $region58: #{l_ssim.1} parent=1 // pred_check
      _
    $region59: #{l_ssim.1} parent=1 // pred_check_branch
      %112 = sbr.rel (0) target = $region61
    $region60: #{l_ssim.1} parent=1 // pred_region
      %113 = dma.done [#allocation10], 512
    $region61: #{l_ssim.1} parent=1 // pred_fallthru
      _
    // Predicated region
    $region62: #{l_ssim.1} parent=1 // pred_check
      _
    $region63: #{l_ssim.1} parent=1 // pred_check_branch
      %115 = sbr.rel (0) target = $region65
    $region64: #{l_ssim.1} parent=1 // pred_region
      %116 = dma.done [#allocation13], 512
    $region65: #{l_ssim.1} parent=1 // pred_fallthru
      _
    %v117 = vld [vmem:[#allocation4] sm:$0xff]
    %v118 = vld [vmem:[#allocation4 + $0x8] sm:$0xff]
    %v119 = vld [vmem:[#allocation6] sm:$0xff]
    %v120 = vld [vmem:[#allocation6 + $0x8] sm:$0xff]
    %v121 = vld [vmem:[%s2] sm:$0xff]
    %v122 = vld [vmem:[%s2 + $0x8] sm:$0xff]
    %v123 = vld [vmem:[%s3] sm:$0xff]
    %v124 = vld [vmem:[%s3 + $0x8] sm:$0xff]
    %v125 = vld [vmem:[%s4] sm:$0xff]
    %v126 = vld [vmem:[%s4 + $0x8] sm:$0xff]
    %v127 = vld [vmem:[%s5] sm:$0xff]
    %v128 = vld [vmem:[%s5 + $0x8] sm:$0xff]
    %v129 = vld [vmem:[#allocation8] sm:$0xff]
    %v130 = vld [vmem:[#allocation8 + $0x8] sm:$0xff]
    %v131 = vld [vmem:[#allocation9] sm:$0xff]
    %v132 = vld [vmem:[#allocation9 + $0x8] sm:$0xff]
    %v133 = vld [vmem:[#allocation11] sm:$0xff]
    %v134 = vld [vmem:[#allocation11 + $0x8] sm:$0xff]
    %v135 = vld [vmem:[#allocation12] sm:$0xff]
    %v136 = vld [vmem:[#allocation12 + $0x8] sm:$0xff]
    %v137 = vmul.f32 %v135, %v135
    %v138 = vmul.f32 %v136, %v136
    %v139 = vmul.f32 %v129, %v129
    %v140 = vmul.f32 %v130, %v130
    %v141 = vmul.f32 %v129, %v135
    %v142 = vmul.f32 %v130, %v136
    %v143 = vmul.f32 %v131, %v131
    %v144 = vmul.f32 %v132, %v132
    %v145 = vmul.f32 %v131, %v135
    %v146 = vmul.f32 %v132, %v136
    %v147 = vmul.f32 %v133, %v133
    %v148 = vmul.f32 %v134, %v134
    %v149 = vmul.f32 %v133, %v135
    %v150 = vmul.f32 %v134, %v136
    %vm151 = vcmask 130048
    %152 = vst.msk [vmem:[#allocation2] sm:$0xff] %vm151, %v135
    %153 = vst.msk [vmem:[#allocation2 + $0x8] sm:$0xff] %vm151, %v136
    %154 = vst.msk [vmem:[#allocation2 + $0x10] sm:$0xff] %vm151, %v137
    %155 = vst.msk [vmem:[#allocation2 + $0x18] sm:$0xff] %vm151, %v138
    %156 = vst.msk [vmem:[#allocation2 + $0x20] sm:$0xff] %vm151, %v129
    %157 = vst.msk [vmem:[#allocation2 + $0x28] sm:$0xff] %vm151, %v130
    %158 = vst.msk [vmem:[#allocation2 + $0x30] sm:$0xff] %vm151, %v139
    %159 = vst.msk [vmem:[#allocation2 + $0x38] sm:$0xff] %vm151, %v140
    %160 = vst.msk [vmem:[#allocation2 + $0x40] sm:$0xff] %vm151, %v141
    %161 = vst.msk [vmem:[#allocation2 + $0x48] sm:$0xff] %vm151, %v142
    %162 = vst.msk [vmem:[#allocation2 + $0x50] sm:$0xff] %vm151, %v131
    %163 = vst.msk [vmem:[#allocation2 + $0x58] sm:$0xff] %vm151, %v132
    %164 = vst.msk [vmem:[#allocation2 + $0x60] sm:$0xff] %vm151, %v143
    %165 = vst.msk [vmem:[#allocation2 + $0x68] sm:$0xff] %vm151, %v144
    %166 = vst.msk [vmem:[#allocation2 + $0x70] sm:$0xff] %vm151, %v145
    %167 = vst.msk [vmem:[#allocation2 + $0x78] sm:$0xff] %vm151, %v146
    %168 = vst.msk [vmem:[#allocation2 + $0x80] sm:$0xff] %vm151, %v133
    %169 = vst.msk [vmem:[#allocation2 + $0x88] sm:$0xff] %vm151, %v134
    %170 = vst.msk [vmem:[#allocation2 + $0x90] sm:$0xff] %vm151, %v147
    %171 = vst.msk [vmem:[#allocation2 + $0x98] sm:$0xff] %vm151, %v148
    %172 = vst.msk [vmem:[#allocation2 + $0xa0] sm:$0xff] %vm151, %v149
    %173 = vst.msk [vmem:[#allocation2 + $0xa8] sm:$0xff] %vm151, %v150
    %174 = vst.msk [vmem:[#allocation3] sm:$0xff] %vm151, %v129
    %175 = vst.msk [vmem:[#allocation3 + $0x8] sm:$0xff] %vm151, %v130
    %176 = vst.msk [vmem:[#allocation3 + $0x10] sm:$0xff] %vm151, %v131
    %177 = vst.msk [vmem:[#allocation3 + $0x18] sm:$0xff] %vm151, %v132
    %178 = vst.msk [vmem:[#allocation3 + $0x20] sm:$0xff] %vm151, %v133
    %179 = vst.msk [vmem:[#allocation3 + $0x28] sm:$0xff] %vm151, %v134
    %s180 = scalar_lea.vmem [#allocation8], 16
    %v181 = vld [vmem:[%s180] sm:$0xff]
    %v182 = vld [vmem:[%s180 + $0x8] sm:$0xff]
    %s183 = scalar_lea.vmem [#allocation9], 16
    %v184 = vld [vmem:[%s183] sm:$0xff]
    %v185 = vld [vmem:[%s183 + $0x8] sm:$0xff]
    %s186 = scalar_lea.vmem [#allocation11], 16
    %v187 = vld [vmem:[%s186] sm:$0xff]
    %v188 = vld [vmem:[%s186 + $0x8] sm:$0xff]
    %s189 = scalar_lea.vmem [#allocation12], 16
    %v190 = vld [vmem:[%s189] sm:$0xff]
    %v191 = vld [vmem:[%s189 + $0x8] sm:$0xff]
    %v192 = vmul.f32 %v190, %v190
    %v193 = vmul.f32 %v191, %v191
    %v194 = vmul.f32 %v181, %v181
    %v195 = vmul.f32 %v182, %v182
    %v196 = vmul.f32 %v181, %v190
    %v197 = vmul.f32 %v182, %v191
    %v198 = vmul.f32 %v184, %v184
    %v199 = vmul.f32 %v185, %v185
    %v200 = vmul.f32 %v184, %v190
    %v201 = vmul.f32 %v185, %v191
    %v202 = vmul.f32 %v187, %v187
    %v203 = vmul.f32 %v188, %v188
    %v204 = vmul.f32 %v187, %v190
    %v205 = vmul.f32 %v188, %v191
    %206 = vst.msk [vmem:[#allocation2 + $0xb0] sm:$0xff] %vm151, %v190
    %207 = vst.msk [vmem:[#allocation2 + $0xb8] sm:$0xff] %vm151, %v191
    %208 = vst.msk [vmem:[#allocation2 + $0xc0] sm:$0xff] %vm151, %v192
    %209 = vst.msk [vmem:[#allocation2 + $0xc8] sm:$0xff] %vm151, %v193
    %210 = vst.msk [vmem:[#allocation2 + $0xd0] sm:$0xff] %vm151, %v181
    %211 = vst.msk [vmem:[#allocation2 + $0xd8] sm:$0xff] %vm151, %v182
    %212 = vst.msk [vmem:[#allocation2 + $0xe0] sm:$0xff] %vm151, %v194
    %213 = vst.msk [vmem:[#allocation2 + $0xe8] sm:$0xff] %vm151, %v195
    %214 = vst.msk [vmem:[#allocation2 + $0xf0] sm:$0xff] %vm151, %v196
    %215 = vst.msk [vmem:[#allocation2 + $0xf8] sm:$0xff] %vm151, %v197
    %216 = vst.msk [vmem:[#allocation2 + $0x100] sm:$0xff] %vm151, %v184
    %217 = vst.msk [vmem:[#allocation2 + $0x108] sm:$0xff] %vm151, %v185
    %218 = vst.msk [vmem:[#allocation2 + $0x110] sm:$0xff] %vm151, %v198
    %219 = vst.msk [vmem:[#allocation2 + $0x118] sm:$0xff] %vm151, %v199
    %220 = vst.msk [vmem:[#allocation2 + $0x120] sm:$0xff] %vm151, %v200
    %221 = vst.msk [vmem:[#allocation2 + $0x128] sm:$0xff] %vm151, %v201
    %222 = vst.msk [vmem:[#allocation2 + $0x130] sm:$0xff] %vm151, %v187
    %223 = vst.msk [vmem:[#allocation2 + $0x138] sm:$0xff] %vm151, %v188
    %224 = vst.msk [vmem:[#allocation2 + $0x140] sm:$0xff] %vm151, %v202
    %225 = vst.msk [vmem:[#allocation2 + $0x148] sm:$0xff] %vm151, %v203
    %226 = vst.msk [vmem:[#allocation2 + $0x150] sm:$0xff] %vm151, %v204
    %227 = vst.msk [vmem:[#allocation2 + $0x158] sm:$0xff] %vm151, %v205
    %228 = vst.msk [vmem:[#allocation3 + $0x30] sm:$0xff] %vm151, %v181
    %229 = vst.msk [vmem:[#allocation3 + $0x38] sm:$0xff] %vm151, %v182
    %230 = vst.msk [vmem:[#allocation3 + $0x40] sm:$0xff] %vm151, %v184
    %231 = vst.msk [vmem:[#allocation3 + $0x48] sm:$0xff] %vm151, %v185
    %232 = vst.msk [vmem:[#allocation3 + $0x50] sm:$0xff] %vm151, %v187
    %233 = vst.msk [vmem:[#allocation3 + $0x58] sm:$0xff] %vm151, %v188
    %v234 = vld [vmem:[#allocation2] sm:$0xff]
    %v235 = vld [vmem:[#allocation2 + $0x8] sm:$0xff]
    %v236 = vld [vmem:[#allocation2 + $0x10] sm:$0xff]
    %v237 = vld [vmem:[#allocation2 + $0x18] sm:$0xff]
    %v238 = vld [vmem:[#allocation2 + $0x20] sm:$0xff]
    %v239 = vld [vmem:[#allocation2 + $0x28] sm:$0xff]
    %v240 = vld [vmem:[#allocation2 + $0x30] sm:$0xff]
    %v241 = vld [vmem:[#allocation2 + $0x38] sm:$0xff]
    %v242 = vld [vmem:[#allocation2 + $0x40] sm:$0xff]
    %v243 = vld [vmem:[#allocation2 + $0x48] sm:$0xff]
    %v244 = vld [vmem:[#allocation2 + $0x50] sm:$0xff]
    %v245 = vld [vmem:[#allocation2 + $0x58] sm:$0xff]
    %v246 = vld [vmem:[#allocation2 + $0x60] sm:$0xff]
    %v247 = vld [vmem:[#allocation2 + $0x68] sm:$0xff]
    %v248 = vld [vmem:[#allocation2 + $0x70] sm:$0xff]
    %v249 = vld [vmem:[#allocation2 + $0x78] sm:$0xff]
    %v250 = vld [vmem:[#allocation2 + $0x80] sm:$0xff]
    %v251 = vld [vmem:[#allocation2 + $0x88] sm:$0xff]
    %v252 = vld [vmem:[#allocation2 + $0x90] sm:$0xff]
    %v253 = vld [vmem:[#allocation2 + $0x98] sm:$0xff]
    %v254 = vld [vmem:[#allocation2 + $0xa0] sm:$0xff]
    %v255 = vld [vmem:[#allocation2 + $0xa8] sm:$0xff]
    %v256 = vld [vmem:[#allocation2 + $0xb0] sm:$0xff]
    %v257 = vld [vmem:[#allocation2 + $0xb8] sm:$0xff]
    %v258 = vld [vmem:[#allocation2 + $0xc0] sm:$0xff]
    %v259 = vld [vmem:[#allocation2 + $0xc8] sm:$0xff]
    %v260 = vld [vmem:[#allocation2 + $0xd0] sm:$0xff]
    %v261 = vld [vmem:[#allocation2 + $0xd8] sm:$0xff]
    %v262 = vld [vmem:[#allocation2 + $0xe0] sm:$0xff]
    %v263 = vld [vmem:[#allocation2 + $0xe8] sm:$0xff]
    %v264 = vld [vmem:[#allocation2 + $0xf0] sm:$0xff]
    %v265 = vld [vmem:[#allocation2 + $0xf8] sm:$0xff]
    %v266 = vld [vmem:[#allocation2 + $0x100] sm:$0xff]
    %v267 = vld [vmem:[#allocation2 + $0x108] sm:$0xff]
    %v268 = vld [vmem:[#allocation2 + $0x110] sm:$0xff]
    %v269 = vld [vmem:[#allocation2 + $0x118] sm:$0xff]
    %v270 = vld [vmem:[#allocation2 + $0x120] sm:$0xff]
    %v271 = vld [vmem:[#allocation2 + $0x128] sm:$0xff]
    %v272 = vld [vmem:[#allocation2 + $0x130] sm:$0xff]
    %v273 = vld [vmem:[#allocation2 + $0x138] sm:$0xff]
    %v274 = vld [vmem:[#allocation2 + $0x140] sm:$0xff]
    %v275 = vld [vmem:[#allocation2 + $0x148] sm:$0xff]
    %v276 = vld [vmem:[#allocation2 + $0x150] sm:$0xff]
    %v277 = vld [vmem:[#allocation2 + $0x158] sm:$0xff]
    %v279 = vsel %vm151, %v234, 0
    %v282 = vsel %vm151, %v235, 0
    %v285 = vsel %vm151, %v236, 0
    %v288 = vsel %vm151, %v237, 0
    %v291 = vsel %vm151, %v238, 0
    %v294 = vsel %vm151, %v239, 0
    %v297 = vsel %vm151, %v240, 0
    %v300 = vsel %vm151, %v241, 0
    %v303 = vsel %vm151, %v242, 0
    %v306 = vsel %vm151, %v243, 0
    %v309 = vsel %vm151, %v244, 0
    %v312 = vsel %vm151, %v245, 0
    %v315 = vsel %vm151, %v246, 0
    %v318 = vsel %vm151, %v247, 0
    %v321 = vsel %vm151, %v248, 0
    %v324 = vsel %vm151, %v249, 0
    %v327 = vsel %vm151, %v250, 0
    %v330 = vsel %vm151, %v251, 0
    %v333 = vsel %vm151, %v252, 0
    %v336 = vsel %vm151, %v253, 0
    %v339 = vsel %vm151, %v254, 0
    %v342 = vsel %vm151, %v255, 0
    %v345 = vsel %vm151, %v256, 0
    %v348 = vsel %vm151, %v257, 0
    %v351 = vsel %vm151, %v258, 0
    %v354 = vsel %vm151, %v259, 0
    %v357 = vsel %vm151, %v260, 0
    %v360 = vsel %vm151, %v261, 0
    %v363 = vsel %vm151, %v262, 0
    %v366 = vsel %vm151, %v263, 0
    %v369 = vsel %vm151, %v264, 0
    %v372 = vsel %vm151, %v265, 0
    %v375 = vsel %vm151, %v266, 0
    %v378 = vsel %vm151, %v267, 0
    %v381 = vsel %vm151, %v268, 0
    %v384 = vsel %vm151, %v269, 0
    %v387 = vsel %vm151, %v270, 0
    %v390 = vsel %vm151, %v271, 0
    %v393 = vsel %vm151, %v272, 0
    %v396 = vsel %vm151, %v273, 0
    %v399 = vsel %vm151, %v274, 0
    %v402 = vsel %vm151, %v275, 0
    %v405 = vsel %vm151, %v276, 0
    %v408 = vsel %vm151, %v277, 0
    %410 = vmatprep.subr.mxu0 0.0
    %411 = vmatpush1.msra.mxu0 %v119
    %412 = vmatprep.subr.mxu0 0.0
    %413 = vmatpush1.msra.mxu0 %v120
    %414 = vmatprep.subr.mxu0 0.0
    %415 = vmatpush1.msra.mxu0 0.0
    %416 = vmatprep.subr.mxu0 0.0
    %417 = vmatpush1.msra.mxu0 0.0
    %418 = vmatprep.subr.mxu0 0.0
    %419 = vmatpush1.msra.mxu0 0.0
    %420 = vmatprep.subr.mxu0 0.0
    %421 = vmatpush1.msra.mxu0 0.0
    %422 = vmatprep.subr.mxu0 0.0
    %423 = vmatpush1.msra.mxu0 0.0
    %424 = vmatprep.subr.mxu0 0.0
    %425 = vmatpush1.msra.mxu0 0.0
    %426 = vmatprep.subr.mxu0 0.0
    %427 = vmatpush1.msra.mxu0 0.0
    %428 = vmatprep.subr.mxu0 0.0
    %429 = vmatpush1.msra.mxu0 0.0
    %430 = vmatprep.subr.mxu0 0.0
    %431 = vmatpush1.msra.mxu0 0.0
    %432 = vmatprep.subr.mxu0 0.0
    %433 = vmatpush1.msra.mxu0 0.0
    %434 = vmatprep.subr.mxu0 0.0
    %435 = vmatpush1.msra.mxu0 0.0
    %436 = vmatprep.subr.mxu0 0.0
    %437 = vmatpush1.msra.mxu0 0.0
    %438 = vmatprep.subr.mxu0 0.0
    %439 = vmatpush1.msra.mxu0 0.0
    %440 = vmatprep.subr.mxu0 0.0
    %441 = vmatpush1.msra.mxu0 0.0
    %442 = vmatprep.subr.mxu0 0.0
    %443 = vmatpush1.msra.mxu0 0.0
    %444 = vmatprep.subr.mxu0 0.0
    %445 = vmatpush1.msra.mxu0 0.0
    %446 = vmatprep.subr.mxu0 0.0
    %447 = vmatpush1.msra.mxu0 0.0
    %448 = vmatprep.subr.mxu0 0.0
    %449 = vmatpush1.msra.mxu0 0.0
    %450 = vmatprep.subr.mxu0 0.0
    %451 = vmatpush1.msra.mxu0 0.0
    %452 = vmatprep.subr.mxu0 0.0
    %453 = vmatpush1.msra.mxu0 0.0
    %454 = vmatprep.subr.mxu0 0.0
    %455 = vmatpush1.msra.mxu0 0.0
    %456 = vmatprep.subr.mxu0 0.0
    %457 = vmatpush1.msra.mxu0 0.0
    %458 = vmatprep.subr.mxu0 0.0
    %459 = vmatpush1.msra.mxu0 0.0
    %460 = vmatprep.subr.mxu0 0.0
    %461 = vmatpush1.msra.mxu0 0.0
    %462 = vmatprep.subr.mxu0 0.0
    %463 = vmatpush1.msra.mxu0 0.0
    %464 = vmatprep.subr.mxu0 0.0
    %465 = vmatpush1.msra.mxu0 0.0
    %466 = vmatprep.subr.mxu0 0.0
    %467 = vmatpush1.msra.mxu0 0.0
    %468 = vmatprep.subr.mxu0 0.0
    %469 = vmatpush1.msra.mxu0 0.0
    %470 = vmatprep.subr.mxu0 0.0
    %471 = vmatpush1.msra.mxu0 0.0
    %472 = vmatprep.subr.mxu0 0.0
    %473 = vmatpush1.msra.mxu0 0.0
    %474 = vmatprep.mubr.f32.mxu0 0.0
    %475 = vmatmul.mubr.f32.gmra.mrb[0].mxu0 %v279
    %v476 = vpop.f32.mrb[0].mxu0
    %v477 = vadd.f32 0.0, %v476
    %v478 = vpop.f32.mrb[0].mxu0
    %479 = vmatprep.mubr.f32.mxu0 0.0
    %480 = vmatmul.mubr.f32.gmra.mrb[0].mxu0 %v282
    %v481 = vpop.f32.mrb[0].mxu0
    %v482 = vadd.f32 0.0, %v481
    %v483 = vpop.f32.mrb[0].mxu0
    %484 = vmatprep.mubr.f32.mxu0 0.0
    %485 = vmatmul.mubr.f32.gmra.mrb[0].mxu0 %v285
    %v486 = vpop.f32.mrb[0].mxu0
    %v487 = vadd.f32 0.0, %v486
    %v488 = vpop.f32.mrb[0].mxu0
    %489 = vmatprep.mubr.f32.mxu0 0.0
    %490 = vmatmul.mubr.f32.gmra.mrb[0].mxu0 %v288
    %v491 = vpop.f32.mrb[0].mxu0
    %v492 = vadd.f32 0.0, %v491
    %v493 = vpop.f32.mrb[0].mxu0
    %494 = vmatprep.mubr.f32.mxu0 0.0
    %495 = vmatmul.mubr.f32.gmra.mrb[0].mxu0 %v291
    %v496 = vpop.f32.mrb[0].mxu0
    %v497 = vadd.f32 0.0, %v496
    %v498 = vpop.f32.mrb[0].mxu0
    %499 = vmatprep.mubr.f32.mxu0 0.0
    %500 = vmatmul.mubr.f32.gmra.mrb[0].mxu0 %v294
    %v501 = vpop.f32.mrb[0].mxu0
    %v502 = vadd.f32 0.0, %v501
    %v503 = vpop.f32.mrb[0].mxu0
    %504 = vmatprep.mubr.f32.mxu0 0.0
    %505 = vmatmul.mubr.f32.gmra.mrb[0].mxu0 %v297
    %v506 = vpop.f32.mrb[0].mxu0
    %v507 = vadd.f32 0.0, %v506
    %v508 = vpop.f32.mrb[0].mxu0
    %509 = vmatprep.mubr.f32.mxu0 0.0
    %510 = vmatmul.mubr.f32.gmra.mrb[0].mxu0 %v300
    %v511 = vpop.f32.mrb[0].mxu0
    %v512 = vadd.f32 0.0, %v511
    %v513 = vpop.f32.mrb[0].mxu0
    %514 = vmatprep.mubr.f32.mxu0 0.0
    %515 = vmatmul.mubr.f32.gmra.mrb[0].mxu0 %v303
    %v516 = vpop.f32.mrb[0].mxu0
    %v517 = vadd.f32 0.0, %v516
    %v518 = vpop.f32.mrb[0].mxu0
    %519 = vmatprep.mubr.f32.mxu0 0.0
    %520 = vmatmul.mubr.f32.gmra.mrb[0].mxu0 %v306
    %v521 = vpop.f32.mrb[0].mxu0
    %v522 = vadd.f32 0.0, %v521
    %v523 = vpop.f32.mrb[0].mxu0
    %524 = vmatprep.mubr.f32.mxu0 0.0
    %525 = vmatmul.mubr.f32.gmra.mrb[0].mxu0 %v309
    %v526 = vpop.f32.mrb[0].mxu0
    %v527 = vadd.f32 0.0, %v526
    %v528 = vpop.f32.mrb[0].mxu0
    %529 = vmatprep.mubr.f32.mxu0 0.0
    %530 = vmatmul.mubr.f32.gmra.mrb[0].mxu0 %v312
    %v531 = vpop.f32.mrb[0].mxu0
    %v532 = vadd.f32 0.0, %v531
    %v533 = vpop.f32.mrb[0].mxu0
    %534 = vmatprep.mubr.f32.mxu0 0.0
    %535 = vmatmul.mubr.f32.gmra.mrb[0].mxu0 %v315
    %v536 = vpop.f32.mrb[0].mxu0
    %v537 = vadd.f32 0.0, %v536
    %v538 = vpop.f32.mrb[0].mxu0
    %539 = vmatprep.mubr.f32.mxu0 0.0
    %540 = vmatmul.mubr.f32.gmra.mrb[0].mxu0 %v318
    %v541 = vpop.f32.mrb[0].mxu0
    %v542 = vadd.f32 0.0, %v541
    %v543 = vpop.f32.mrb[0].mxu0
    %544 = vmatprep.mubr.f32.mxu0 0.0
    %545 = vmatmul.mubr.f32.gmra.mrb[0].mxu0 %v321
    %v546 = vpop.f32.mrb[0].mxu0
    %v547 = vadd.f32 0.0, %v546
    %v548 = vpop.f32.mrb[0].mxu0
    %549 = vmatprep.mubr.f32.mxu0 0.0
    %550 = vmatmul.mubr.f32.gmra.mrb[0].mxu0 %v324
    %v551 = vpop.f32.mrb[0].mxu0
    %v552 = vadd.f32 0.0, %v551
    %v553 = vpop.f32.mrb[0].mxu0
    %554 = vmatprep.mubr.f32.mxu0 0.0
    %555 = vmatmul.mubr.f32.gmra.mrb[0].mxu0 %v327
    %v556 = vpop.f32.mrb[0].mxu0
    %v557 = vadd.f32 0.0, %v556
    %v558 = vpop.f32.mrb[0].mxu0
    %559 = vmatprep.mubr.f32.mxu0 0.0
    %560 = vmatmul.mubr.f32.gmra.mrb[0].mxu0 %v330
    %v561 = vpop.f32.mrb[0].mxu0
    %v562 = vadd.f32 0.0, %v561
    %v563 = vpop.f32.mrb[0].mxu0
    %564 = vmatprep.mubr.f32.mxu0 0.0
    %565 = vmatmul.mubr.f32.gmra.mrb[0].mxu0 %v333
    %v566 = vpop.f32.mrb[0].mxu0
    %v567 = vadd.f32 0.0, %v566
    %v568 = vpop.f32.mrb[0].mxu0
    %569 = vmatprep.mubr.f32.mxu0 0.0
    %570 = vmatmul.mubr.f32.gmra.mrb[0].mxu0 %v336
    %v571 = vpop.f32.mrb[0].mxu0
    %v572 = vadd.f32 0.0, %v571
    %v573 = vpop.f32.mrb[0].mxu0
    %574 = vmatprep.mubr.f32.mxu0 0.0
    %575 = vmatmul.mubr.f32.gmra.mrb[0].mxu0 %v339
    %v576 = vpop.f32.mrb[0].mxu0
    %v577 = vadd.f32 0.0, %v576
    %v578 = vpop.f32.mrb[0].mxu0
    %579 = vmatprep.mubr.f32.mxu0 0.0
    %580 = vmatmul.mubr.f32.gmra.mrb[0].mxu0 %v342
    %v581 = vpop.f32.mrb[0].mxu0
    %v582 = vadd.f32 0.0, %v581
    %v583 = vpop.f32.mrb[0].mxu0
    %584 = vmatprep.mubr.f32.mxu0 0.0
    %585 = vmatmul.mubr.f32.gmra.mrb[0].mxu0 %v345
    %v586 = vpop.f32.mrb[0].mxu0
    %v587 = vadd.f32 0.0, %v586
    %v588 = vpop.f32.mrb[0].mxu0
    %589 = vmatprep.mubr.f32.mxu0 0.0
    %590 = vmatmul.mubr.f32.gmra.mrb[0].mxu0 %v348
    %v591 = vpop.f32.mrb[0].mxu0
    %v592 = vadd.f32 0.0, %v591
    %v593 = vpop.f32.mrb[0].mxu0
    %594 = vmatprep.mubr.f32.mxu0 0.0
    %595 = vmatmul.mubr.f32.gmra.mrb[0].mxu0 %v351
    %v596 = vpop.f32.mrb[0].mxu0
    %v597 = vadd.f32 0.0, %v596
    %v598 = vpop.f32.mrb[0].mxu0
    %599 = vmatprep.mubr.f32.mxu0 0.0
    %600 = vmatmul.mubr.f32.gmra.mrb[0].mxu0 %v354
    %v601 = vpop.f32.mrb[0].mxu0
    %v602 = vadd.f32 0.0, %v601
    %v603 = vpop.f32.mrb[0].mxu0
    %604 = vmatprep.mubr.f32.mxu0 0.0
    %605 = vmatmul.mubr.f32.gmra.mrb[0].mxu0 %v357
    %v606 = vpop.f32.mrb[0].mxu0
    %v607 = vadd.f32 0.0, %v606
    %v608 = vpop.f32.mrb[0].mxu0
    %609 = vmatprep.mubr.f32.mxu0 0.0
    %610 = vmatmul.mubr.f32.gmra.mrb[0].mxu0 %v360
    %v611 = vpop.f32.mrb[0].mxu0
    %v612 = vadd.f32 0.0, %v611
    %v613 = vpop.f32.mrb[0].mxu0
    %614 = vmatprep.mubr.f32.mxu0 0.0
    %615 = vmatmul.mubr.f32.gmra.mrb[0].mxu0 %v363
    %v616 = vpop.f32.mrb[0].mxu0
    %v617 = vadd.f32 0.0, %v616
    %v618 = vpop.f32.mrb[0].mxu0
    %619 = vmatprep.mubr.f32.mxu0 0.0
    %620 = vmatmul.mubr.f32.gmra.mrb[0].mxu0 %v366
    %v621 = vpop.f32.mrb[0].mxu0
    %v622 = vadd.f32 0.0, %v621
    %v623 = vpop.f32.mrb[0].mxu0
    %624 = vmatprep.mubr.f32.mxu0 0.0
    %625 = vmatmul.mubr.f32.gmra.mrb[0].mxu0 %v369
    %v626 = vpop.f32.mrb[0].mxu0
    %v627 = vadd.f32 0.0, %v626
    %v628 = vpop.f32.mrb[0].mxu0
    %629 = vmatprep.mubr.f32.mxu0 0.0
    %630 = vmatmul.mubr.f32.gmra.mrb[0].mxu0 %v372
    %v631 = vpop.f32.mrb[0].mxu0
    %v632 = vadd.f32 0.0, %v631
    %v633 = vpop.f32.mrb[0].mxu0
    %634 = vmatprep.mubr.f32.mxu0 0.0
    %635 = vmatmul.mubr.f32.gmra.mrb[0].mxu0 %v375
    %v636 = vpop.f32.mrb[0].mxu0
    %v637 = vadd.f32 0.0, %v636
    %v638 = vpop.f32.mrb[0].mxu0
    %639 = vmatprep.mubr.f32.mxu0 0.0
    %640 = vmatmul.mubr.f32.gmra.mrb[0].mxu0 %v378
    %v641 = vpop.f32.mrb[0].mxu0
    %v642 = vadd.f32 0.0, %v641
    %v643 = vpop.f32.mrb[0].mxu0
    %644 = vmatprep.mubr.f32.mxu0 0.0
    %645 = vmatmul.mubr.f32.gmra.mrb[0].mxu0 %v381
    %v646 = vpop.f32.mrb[0].mxu0
    %v647 = vadd.f32 0.0, %v646
    %v648 = vpop.f32.mrb[0].mxu0
    %649 = vmatprep.mubr.f32.mxu0 0.0
    %650 = vmatmul.mubr.f32.gmra.mrb[0].mxu0 %v384
    %v651 = vpop.f32.mrb[0].mxu0
    %v652 = vadd.f32 0.0, %v651
    %v653 = vpop.f32.mrb[0].mxu0
    %654 = vmatprep.mubr.f32.mxu0 0.0
    %655 = vmatmul.mubr.f32.gmra.mrb[0].mxu0 %v387
    %v656 = vpop.f32.mrb[0].mxu0
    %v657 = vadd.f32 0.0, %v656
    %v658 = vpop.f32.mrb[0].mxu0
    %659 = vmatprep.mubr.f32.mxu0 0.0
    %660 = vmatmul.mubr.f32.gmra.mrb[0].mxu0 %v390
    %v661 = vpop.f32.mrb[0].mxu0
    %v662 = vadd.f32 0.0, %v661
    %v663 = vpop.f32.mrb[0].mxu0
    %664 = vmatprep.mubr.f32.mxu0 0.0
    %665 = vmatmul.mubr.f32.gmra.mrb[0].mxu0 %v393
    %v666 = vpop.f32.mrb[0].mxu0
    %v667 = vadd.f32 0.0, %v666
    %v668 = vpop.f32.mrb[0].mxu0
    %669 = vmatprep.mubr.f32.mxu0 0.0
    %670 = vmatmul.mubr.f32.gmra.mrb[0].mxu0 %v396
    %v671 = vpop.f32.mrb[0].mxu0
    %v672 = vadd.f32 0.0, %v671
    %v673 = vpop.f32.mrb[0].mxu0
    %674 = vmatprep.mubr.f32.mxu0 0.0
    %675 = vmatmul.mubr.f32.gmra.mrb[0].mxu0 %v399
    %v676 = vpop.f32.mrb[0].mxu0
    %v677 = vadd.f32 0.0, %v676
    %v678 = vpop.f32.mrb[0].mxu0
    %679 = vmatprep.mubr.f32.mxu0 0.0
    %680 = vmatmul.mubr.f32.gmra.mrb[0].mxu0 %v402
    %v681 = vpop.f32.mrb[0].mxu0
    %v682 = vadd.f32 0.0, %v681
    %v683 = vpop.f32.mrb[0].mxu0
    %684 = vmatprep.mubr.f32.mxu0 0.0
    %685 = vmatmul.mubr.f32.gmra.mrb[0].mxu0 %v405
    %v686 = vpop.f32.mrb[0].mxu0
    %v687 = vadd.f32 0.0, %v686
    %v688 = vpop.f32.mrb[0].mxu0
    %689 = vmatprep.mubr.f32.mxu0 0.0
    %690 = vmatmul.mubr.f32.gmra.mrb[0].mxu0 %v408
    %v691 = vpop.f32.mrb[0].mxu0
    %v692 = vadd.f32 0.0, %v691
    %v693 = vpop.f32.mrb[0].mxu0
    %694 = vdwg.mxu0
    %v695 = vld [vmem:[#allocation3] sm:$0xff]
    %v696 = vld [vmem:[#allocation3 + $0x8] sm:$0xff]
    %v697 = vld [vmem:[#allocation3 + $0x10] sm:$0xff]
    %v698 = vld [vmem:[#allocation3 + $0x18] sm:$0xff]
    %v699 = vld [vmem:[#allocation3 + $0x20] sm:$0xff]
    %v700 = vld [vmem:[#allocation3 + $0x28] sm:$0xff]
    %v701 = vld [vmem:[#allocation3 + $0x30] sm:$0xff]
    %v702 = vld [vmem:[#allocation3 + $0x38] sm:$0xff]
    %v703 = vld [vmem:[#allocation3 + $0x40] sm:$0xff]
    %v704 = vld [vmem:[#allocation3 + $0x48] sm:$0xff]
    %v705 = vld [vmem:[#allocation3 + $0x50] sm:$0xff]
    %v706 = vld [vmem:[#allocation3 + $0x58] sm:$0xff]
    %v708 = vsel %vm151, %v695, 0
    %v711 = vsel %vm151, %v696, 0
    %v714 = vsel %vm151, %v697, 0
    %v717 = vsel %vm151, %v698, 0
    %v720 = vsel %vm151, %v699, 0
    %v723 = vsel %vm151, %v700, 0
    %v726 = vsel %vm151, %v701, 0
    %v729 = vsel %vm151, %v702, 0
    %v732 = vsel %vm151, %v703, 0
    %v735 = vsel %vm151, %v704, 0
    %v738 = vsel %vm151, %v705, 0
    %v741 = vsel %vm151, %v706, 0
    %743 = vmatprep.subr.mxu0 0.0
    %744 = vmatpush1.msra.mxu0 %v127
    %745 = vmatprep.subr.mxu0 0.0
    %746 = vmatpush1.msra.mxu0 %v128
    %747 = vmatprep.subr.mxu0 0.0
    %748 = vmatpush1.msra.mxu0 0.0
    %749 = vmatprep.subr.mxu0 0.0
    %750 = vmatpush1.msra.mxu0 0.0
    %751 = vmatprep.subr.mxu0 0.0
    %752 = vmatpush1.msra.mxu0 0.0
    %753 = vmatprep.subr.mxu0 0.0
    %754 = vmatpush1.msra.mxu0 0.0
    %755 = vmatprep.subr.mxu0 0.0
    %756 = vmatpush1.msra.mxu0 0.0
    %757 = vmatprep.subr.mxu0 0.0
    %758 = vmatpush1.msra.mxu0 0.0
    %759 = vmatprep.subr.mxu0 0.0
    %760 = vmatpush1.msra.mxu0 0.0
    %761 = vmatprep.subr.mxu0 0.0
    %762 = vmatpush1.msra.mxu0 0.0
    %763 = vmatprep.subr.mxu0 0.0
    %764 = vmatpush1.msra.mxu0 0.0
    %765 = vmatprep.subr.mxu0 0.0
    %766 = vmatpush1.msra.mxu0 0.0
    %767 = vmatprep.subr.mxu0 0.0
    %768 = vmatpush1.msra.mxu0 0.0
    %769 = vmatprep.subr.mxu0 0.0
    %770 = vmatpush1.msra.mxu0 0.0
    %771 = vmatprep.subr.mxu0 0.0
    %772 = vmatpush1.msra.mxu0 0.0
    %773 = vmatprep.subr.mxu0 0.0
    %774 = vmatpush1.msra.mxu0 0.0
    %775 = vmatprep.subr.mxu0 0.0
    %776 = vmatpush1.msra.mxu0 0.0
    %777 = vmatprep.subr.mxu0 0.0
    %778 = vmatpush1.msra.mxu0 0.0
    %779 = vmatprep.subr.mxu0 0.0
    %780 = vmatpush1.msra.mxu0 0.0
    %781 = vmatprep.subr.mxu0 0.0
    %782 = vmatpush1.msra.mxu0 0.0
    %783 = vmatprep.subr.mxu0 0.0
    %784 = vmatpush1.msra.mxu0 0.0
    %785 = vmatprep.subr.mxu0 0.0
    %786 = vmatpush1.msra.mxu0 0.0
    %787 = vmatprep.subr.mxu0 0.0
    %788 = vmatpush1.msra.mxu0 0.0
    %789 = vmatprep.subr.mxu0 0.0
    %790 = vmatpush1.msra.mxu0 0.0
    %791 = vmatprep.subr.mxu0 0.0
    %792 = vmatpush1.msra.mxu0 0.0
    %793 = vmatprep.subr.mxu0 0.0
    %794 = vmatpush1.msra.mxu0 0.0
    %795 = vmatprep.subr.mxu0 0.0
    %796 = vmatpush1.msra.mxu0 0.0
    %797 = vmatprep.subr.mxu0 0.0
    %798 = vmatpush1.msra.mxu0 0.0
    %799 = vmatprep.subr.mxu0 0.0
    %800 = vmatpush1.msra.mxu0 0.0
    %801 = vmatprep.subr.mxu0 0.0
    %802 = vmatpush1.msra.mxu0 0.0
    %803 = vmatprep.subr.mxu0 0.0
    %804 = vmatpush1.msra.mxu0 0.0
    %805 = vmatprep.subr.mxu0 0.0
    %806 = vmatpush1.msra.mxu0 0.0
    %807 = vmatprep.mubr.f32.mxu0 0.0
    %808 = vmatmul.mubr.f32.gmra.mrb[0].mxu0 %v708
    %v809 = vpop.f32.mrb[0].mxu0
    %v810 = vadd.f32 0.0, %v809
    %v811 = vpop.f32.mrb[0].mxu0
    %812 = vmatprep.mubr.f32.mxu0 0.0
    %813 = vmatmul.mubr.f32.gmra.mrb[0].mxu0 %v711
    %v814 = vpop.f32.mrb[0].mxu0
    %v815 = vadd.f32 0.0, %v814
    %v816 = vpop.f32.mrb[0].mxu0
    %817 = vmatprep.mubr.f32.mxu0 0.0
    %818 = vmatmul.mubr.f32.gmra.mrb[0].mxu0 %v714
    %v819 = vpop.f32.mrb[0].mxu0
    %v820 = vadd.f32 0.0, %v819
    %v821 = vpop.f32.mrb[0].mxu0
    %822 = vmatprep.mubr.f32.mxu0 0.0
    %823 = vmatmul.mubr.f32.gmra.mrb[0].mxu0 %v717
    %v824 = vpop.f32.mrb[0].mxu0
    %v825 = vadd.f32 0.0, %v824
    %v826 = vpop.f32.mrb[0].mxu0
    %827 = vmatprep.mubr.f32.mxu0 0.0
    %828 = vmatmul.mubr.f32.gmra.mrb[0].mxu0 %v720
    %v829 = vpop.f32.mrb[0].mxu0
    %v830 = vadd.f32 0.0, %v829
    %v831 = vpop.f32.mrb[0].mxu0
    %832 = vmatprep.mubr.f32.mxu0 0.0
    %833 = vmatmul.mubr.f32.gmra.mrb[0].mxu0 %v723
    %v834 = vpop.f32.mrb[0].mxu0
    %v835 = vadd.f32 0.0, %v834
    %v836 = vpop.f32.mrb[0].mxu0
    %837 = vmatprep.mubr.f32.mxu0 0.0
    %838 = vmatmul.mubr.f32.gmra.mrb[0].mxu0 %v726
    %v839 = vpop.f32.mrb[0].mxu0
    %v840 = vadd.f32 0.0, %v839
    %v841 = vpop.f32.mrb[0].mxu0
    %842 = vmatprep.mubr.f32.mxu0 0.0
    %843 = vmatmul.mubr.f32.gmra.mrb[0].mxu0 %v729
    %v844 = vpop.f32.mrb[0].mxu0
    %v845 = vadd.f32 0.0, %v844
    %v846 = vpop.f32.mrb[0].mxu0
    %847 = vmatprep.mubr.f32.mxu0 0.0
    %848 = vmatmul.mubr.f32.gmra.mrb[0].mxu0 %v732
    %v849 = vpop.f32.mrb[0].mxu0
    %v850 = vadd.f32 0.0, %v849
    %v851 = vpop.f32.mrb[0].mxu0
    %852 = vmatprep.mubr.f32.mxu0 0.0
    %853 = vmatmul.mubr.f32.gmra.mrb[0].mxu0 %v735
    %v854 = vpop.f32.mrb[0].mxu0
    %v855 = vadd.f32 0.0, %v854
    %v856 = vpop.f32.mrb[0].mxu0
    %857 = vmatprep.mubr.f32.mxu0 0.0
    %858 = vmatmul.mubr.f32.gmra.mrb[0].mxu0 %v738
    %v859 = vpop.f32.mrb[0].mxu0
    %v860 = vadd.f32 0.0, %v859
    %v861 = vpop.f32.mrb[0].mxu0
    %862 = vmatprep.mubr.f32.mxu0 0.0
    %863 = vmatmul.mubr.f32.gmra.mrb[0].mxu0 %v741
    %v864 = vpop.f32.mrb[0].mxu0
    %v865 = vadd.f32 0.0, %v864
    %v866 = vpop.f32.mrb[0].mxu0
    %867 = vdwg.mxu0
    %868 = vmatprep.subr.mxu0 0.0
    %869 = vmatpush1.msra.mxu0 %v125
    %870 = vmatprep.subr.mxu0 0.0
    %871 = vmatpush1.msra.mxu0 %v126
    %872 = vmatprep.subr.mxu0 0.0
    %873 = vmatpush1.msra.mxu0 0.0
    %874 = vmatprep.subr.mxu0 0.0
    %875 = vmatpush1.msra.mxu0 0.0
    %876 = vmatprep.subr.mxu0 0.0
    %877 = vmatpush1.msra.mxu0 0.0
    %878 = vmatprep.subr.mxu0 0.0
    %879 = vmatpush1.msra.mxu0 0.0
    %880 = vmatprep.subr.mxu0 0.0
    %881 = vmatpush1.msra.mxu0 0.0
    %882 = vmatprep.subr.mxu0 0.0
    %883 = vmatpush1.msra.mxu0 0.0
    %884 = vmatprep.subr.mxu0 0.0
    %885 = vmatpush1.msra.mxu0 0.0
    %886 = vmatprep.subr.mxu0 0.0
    %887 = vmatpush1.msra.mxu0 0.0
    %888 = vmatprep.subr.mxu0 0.0
    %889 = vmatpush1.msra.mxu0 0.0
    %890 = vmatprep.subr.mxu0 0.0
    %891 = vmatpush1.msra.mxu0 0.0
    %892 = vmatprep.subr.mxu0 0.0
    %893 = vmatpush1.msra.mxu0 0.0
    %894 = vmatprep.subr.mxu0 0.0
    %895 = vmatpush1.msra.mxu0 0.0
    %896 = vmatprep.subr.mxu0 0.0
    %897 = vmatpush1.msra.mxu0 0.0
    %898 = vmatprep.subr.mxu0 0.0
    %899 = vmatpush1.msra.mxu0 0.0
    %900 = vmatprep.subr.mxu0 0.0
    %901 = vmatpush1.msra.mxu0 0.0
    %902 = vmatprep.subr.mxu0 0.0
    %903 = vmatpush1.msra.mxu0 0.0
    %904 = vmatprep.subr.mxu0 0.0
    %905 = vmatpush1.msra.mxu0 0.0
    %906 = vmatprep.subr.mxu0 0.0
    %907 = vmatpush1.msra.mxu0 0.0
    %908 = vmatprep.subr.mxu0 0.0
    %909 = vmatpush1.msra.mxu0 0.0
    %910 = vmatprep.subr.mxu0 0.0
    %911 = vmatpush1.msra.mxu0 0.0
    %912 = vmatprep.subr.mxu0 0.0
    %913 = vmatpush1.msra.mxu0 0.0
    %914 = vmatprep.subr.mxu0 0.0
    %915 = vmatpush1.msra.mxu0 0.0
    %916 = vmatprep.subr.mxu0 0.0
    %917 = vmatpush1.msra.mxu0 0.0
    %918 = vmatprep.subr.mxu0 0.0
    %919 = vmatpush1.msra.mxu0 0.0
    %920 = vmatprep.subr.mxu0 0.0
    %921 = vmatpush1.msra.mxu0 0.0
    %922 = vmatprep.subr.mxu0 0.0
    %923 = vmatpush1.msra.mxu0 0.0
    %924 = vmatprep.subr.mxu0 0.0
    %925 = vmatpush1.msra.mxu0 0.0
    %926 = vmatprep.subr.mxu0 0.0
    %927 = vmatpush1.msra.mxu0 0.0
    %928 = vmatprep.subr.mxu0 0.0
    %929 = vmatpush1.msra.mxu0 0.0
    %930 = vmatprep.subr.mxu0 0.0
    %931 = vmatpush1.msra.mxu0 0.0
    %932 = vmatprep.mubr.f32.mxu0 0.0
    %933 = vmatmul.mubr.f32.gmra.mrb[0].mxu0 %v708
    %v934 = vpop.f32.mrb[0].mxu0
    %v935 = vadd.f32 0.0, %v934
    %v936 = vpop.f32.mrb[0].mxu0
    %937 = vmatprep.mubr.f32.mxu0 0.0
    %938 = vmatmul.mubr.f32.gmra.mrb[0].mxu0 %v711
    %v939 = vpop.f32.mrb[0].mxu0
    %v940 = vadd.f32 0.0, %v939
    %v941 = vpop.f32.mrb[0].mxu0
    %942 = vmatprep.mubr.f32.mxu0 0.0
    %943 = vmatmul.mubr.f32.gmra.mrb[0].mxu0 %v714
    %v944 = vpop.f32.mrb[0].mxu0
    %v945 = vadd.f32 0.0, %v944
    %v946 = vpop.f32.mrb[0].mxu0
    %947 = vmatprep.mubr.f32.mxu0 0.0
    %948 = vmatmul.mubr.f32.gmra.mrb[0].mxu0 %v717
    %v949 = vpop.f32.mrb[0].mxu0
    %v950 = vadd.f32 0.0, %v949
    %v951 = vpop.f32.mrb[0].mxu0
    %952 = vmatprep.mubr.f32.mxu0 0.0
    %953 = vmatmul.mubr.f32.gmra.mrb[0].mxu0 %v720
    %v954 = vpop.f32.mrb[0].mxu0
    %v955 = vadd.f32 0.0, %v954
    %v956 = vpop.f32.mrb[0].mxu0
    %957 = vmatprep.mubr.f32.mxu0 0.0
    %958 = vmatmul.mubr.f32.gmra.mrb[0].mxu0 %v723
    %v959 = vpop.f32.mrb[0].mxu0
    %v960 = vadd.f32 0.0, %v959
    %v961 = vpop.f32.mrb[0].mxu0
    %962 = vmatprep.mubr.f32.mxu0 0.0
    %963 = vmatmul.mubr.f32.gmra.mrb[0].mxu0 %v726
    %v964 = vpop.f32.mrb[0].mxu0
    %v965 = vadd.f32 0.0, %v964
    %v966 = vpop.f32.mrb[0].mxu0
    %967 = vmatprep.mubr.f32.mxu0 0.0
    %968 = vmatmul.mubr.f32.gmra.mrb[0].mxu0 %v729
    %v969 = vpop.f32.mrb[0].mxu0
    %v970 = vadd.f32 0.0, %v969
    %v971 = vpop.f32.mrb[0].mxu0
    %972 = vmatprep.mubr.f32.mxu0 0.0
    %973 = vmatmul.mubr.f32.gmra.mrb[0].mxu0 %v732
    %v974 = vpop.f32.mrb[0].mxu0
    %v975 = vadd.f32 0.0, %v974
    %v976 = vpop.f32.mrb[0].mxu0
    %977 = vmatprep.mubr.f32.mxu0 0.0
    %978 = vmatmul.mubr.f32.gmra.mrb[0].mxu0 %v735
    %v979 = vpop.f32.mrb[0].mxu0
    %v980 = vadd.f32 0.0, %v979
    %v981 = vpop.f32.mrb[0].mxu0
    %982 = vmatprep.mubr.f32.mxu0 0.0
    %983 = vmatmul.mubr.f32.gmra.mrb[0].mxu0 %v738
    %v984 = vpop.f32.mrb[0].mxu0
    %v985 = vadd.f32 0.0, %v984
    %v986 = vpop.f32.mrb[0].mxu0
    %987 = vmatprep.mubr.f32.mxu0 0.0
    %988 = vmatmul.mubr.f32.gmra.mrb[0].mxu0 %v741
    %v989 = vpop.f32.mrb[0].mxu0
    %v990 = vadd.f32 0.0, %v989
    %v991 = vpop.f32.mrb[0].mxu0
    %992 = vdwg.mxu0
    %v994 = vsel %vm151, %v121, 0
    %v997 = vsel %vm151, %v122, 0
    %999 = vmatprep.subr.mxu0 0.0
    %1000 = vmatpush1.msra.mxu0 %v810
    %1001 = vmatprep.subr.mxu0 0.0
    %1002 = vmatpush1.msra.mxu0 %v815
    %1003 = vmatprep.subr.mxu0 0.0
    %1004 = vmatpush1.msra.mxu0 0.0
    %1005 = vmatprep.subr.mxu0 0.0
    %1006 = vmatpush1.msra.mxu0 0.0
    %1007 = vmatprep.subr.mxu0 0.0
    %1008 = vmatpush1.msra.mxu0 0.0
    %1009 = vmatprep.subr.mxu0 0.0
    %1010 = vmatpush1.msra.mxu0 0.0
    %1011 = vmatprep.subr.mxu0 0.0
    %1012 = vmatpush1.msra.mxu0 0.0
    %1013 = vmatprep.subr.mxu0 0.0
    %1014 = vmatpush1.msra.mxu0 0.0
    %1015 = vmatprep.subr.mxu0 0.0
    %1016 = vmatpush1.msra.mxu0 0.0
    %1017 = vmatprep.subr.mxu0 0.0
    %1018 = vmatpush1.msra.mxu0 0.0
    %1019 = vmatprep.subr.mxu0 0.0
    %1020 = vmatpush1.msra.mxu0 0.0
    %1021 = vmatprep.subr.mxu0 0.0
    %1022 = vmatpush1.msra.mxu0 0.0
    %1023 = vmatprep.subr.mxu0 0.0
    %1024 = vmatpush1.msra.mxu0 0.0
    %1025 = vmatprep.subr.mxu0 0.0
    %1026 = vmatpush1.msra.mxu0 0.0
    %1027 = vmatprep.subr.mxu0 0.0
    %1028 = vmatpush1.msra.mxu0 0.0
    %1029 = vmatprep.subr.mxu0 0.0
    %1030 = vmatpush1.msra.mxu0 0.0
    %1031 = vmatprep.subr.mxu0 0.0
    %1032 = vmatpush1.msra.mxu0 0.0
    %1033 = vmatprep.subr.mxu0 0.0
    %1034 = vmatpush1.msra.mxu0 0.0
    %1035 = vmatprep.subr.mxu0 0.0
    %1036 = vmatpush1.msra.mxu0 0.0
    %1037 = vmatprep.subr.mxu0 0.0
    %1038 = vmatpush1.msra.mxu0 0.0
    %1039 = vmatprep.subr.mxu0 0.0
    %1040 = vmatpush1.msra.mxu0 0.0
    %1041 = vmatprep.subr.mxu0 0.0
    %1042 = vmatpush1.msra.mxu0 0.0
    %1043 = vmatprep.subr.mxu0 0.0
    %1044 = vmatpush1.msra.mxu0 0.0
    %1045 = vmatprep.subr.mxu0 0.0
    %1046 = vmatpush1.msra.mxu0 0.0
    %1047 = vmatprep.subr.mxu0 0.0
    %1048 = vmatpush1.msra.mxu0 0.0
    %1049 = vmatprep.subr.mxu0 0.0
    %1050 = vmatpush1.msra.mxu0 0.0
    %1051 = vmatprep.subr.mxu0 0.0
    %1052 = vmatpush1.msra.mxu0 0.0
    %1053 = vmatprep.subr.mxu0 0.0
    %1054 = vmatpush1.msra.mxu0 0.0
    %1055 = vmatprep.subr.mxu0 0.0
    %1056 = vmatpush1.msra.mxu0 0.0
    %1057 = vmatprep.subr.mxu0 0.0
    %1058 = vmatpush1.msra.mxu0 0.0
    %1059 = vmatprep.subr.mxu0 0.0
    %1060 = vmatpush1.msra.mxu0 0.0
    %1061 = vmatprep.subr.mxu0 0.0
    %1062 = vmatpush1.msra.mxu0 0.0
    %1063 = vmatprep.mubr.f32.mxu0 0.0
    %1064 = vmatmul.mubr.f32.gmra.mrb[0].mxu0 %v994
    %v1065 = vpop.f32.mrb[0].mxu0
    %v1066 = vadd.f32 0.0, %v1065
    %v1067 = vpop.f32.mrb[0].mxu0
    %1068 = vmatprep.mubr.f32.mxu0 0.0
    %1069 = vmatmul.mubr.f32.gmra.mrb[0].mxu0 %v997
    %v1070 = vpop.f32.mrb[0].mxu0
    %v1071 = vadd.f32 0.0, %v1070
    %v1072 = vpop.f32.mrb[0].mxu0
    %1073 = vdwg.mxu0
    %v1075 = vsel %vm151, %v123, 0
    %v1078 = vsel %vm151, %v124, 0
    %1080 = vmatprep.subr.mxu0 0.0
    %1081 = vmatpush1.msra.mxu0 %v935
    %1082 = vmatprep.subr.mxu0 0.0
    %1083 = vmatpush1.msra.mxu0 %v940
    %1084 = vmatprep.subr.mxu0 0.0
    %1085 = vmatpush1.msra.mxu0 0.0
    %1086 = vmatprep.subr.mxu0 0.0
    %1087 = vmatpush1.msra.mxu0 0.0
    %1088 = vmatprep.subr.mxu0 0.0
    %1089 = vmatpush1.msra.mxu0 0.0
    %1090 = vmatprep.subr.mxu0 0.0
    %1091 = vmatpush1.msra.mxu0 0.0
    %1092 = vmatprep.subr.mxu0 0.0
    %1093 = vmatpush1.msra.mxu0 0.0
    %1094 = vmatprep.subr.mxu0 0.0
    %1095 = vmatpush1.msra.mxu0 0.0
    %1096 = vmatprep.subr.mxu0 0.0
    %1097 = vmatpush1.msra.mxu0 0.0
    %1098 = vmatprep.subr.mxu0 0.0
    %1099 = vmatpush1.msra.mxu0 0.0
    %1100 = vmatprep.subr.mxu0 0.0
    %1101 = vmatpush1.msra.mxu0 0.0
    %1102 = vmatprep.subr.mxu0 0.0
    %1103 = vmatpush1.msra.mxu0 0.0
    %1104 = vmatprep.subr.mxu0 0.0
    %1105 = vmatpush1.msra.mxu0 0.0
    %1106 = vmatprep.subr.mxu0 0.0
    %1107 = vmatpush1.msra.mxu0 0.0
    %1108 = vmatprep.subr.mxu0 0.0
    %1109 = vmatpush1.msra.mxu0 0.0
    %1110 = vmatprep.subr.mxu0 0.0
    %1111 = vmatpush1.msra.mxu0 0.0
    %1112 = vmatprep.subr.mxu0 0.0
    %1113 = vmatpush1.msra.mxu0 0.0
    %1114 = vmatprep.subr.mxu0 0.0
    %1115 = vmatpush1.msra.mxu0 0.0
    %1116 = vmatprep.subr.mxu0 0.0
    %1117 = vmatpush1.msra.mxu0 0.0
    %1118 = vmatprep.subr.mxu0 0.0
    %1119 = vmatpush1.msra.mxu0 0.0
    %1120 = vmatprep.subr.mxu0 0.0
    %1121 = vmatpush1.msra.mxu0 0.0
    %1122 = vmatprep.subr.mxu0 0.0
    %1123 = vmatpush1.msra.mxu0 0.0
    %1124 = vmatprep.subr.mxu0 0.0
    %1125 = vmatpush1.msra.mxu0 0.0
    %1126 = vmatprep.subr.mxu0 0.0
    %1127 = vmatpush1.msra.mxu0 0.0
    %1128 = vmatprep.subr.mxu0 0.0
    %1129 = vmatpush1.msra.mxu0 0.0
    %1130 = vmatprep.subr.mxu0 0.0
    %1131 = vmatpush1.msra.mxu0 0.0
    %1132 = vmatprep.subr.mxu0 0.0
    %1133 = vmatpush1.msra.mxu0 0.0
    %1134 = vmatprep.subr.mxu0 0.0
    %1135 = vmatpush1.msra.mxu0 0.0
    %1136 = vmatprep.subr.mxu0 0.0
    %1137 = vmatpush1.msra.mxu0 0.0
    %1138 = vmatprep.subr.mxu0 0.0
    %1139 = vmatpush1.msra.mxu0 0.0
    %1140 = vmatprep.subr.mxu0 0.0
    %1141 = vmatpush1.msra.mxu0 0.0
    %1142 = vmatprep.subr.mxu0 0.0
    %1143 = vmatpush1.msra.mxu0 0.0
    %1144 = vmatprep.mubr.f32.mxu0 0.0
    %1145 = vmatmul.mubr.f32.gmra.mrb[0].mxu0 %v1075
    %v1146 = vpop.f32.mrb[0].mxu0
    %v1147 = vadd.f32 0.0, %v1146
    %v1148 = vpop.f32.mrb[0].mxu0
    %1149 = vmatprep.mubr.f32.mxu0 0.0
    %1150 = vmatmul.mubr.f32.gmra.mrb[0].mxu0 %v1078
    %v1151 = vpop.f32.mrb[0].mxu0
    %v1152 = vadd.f32 0.0, %v1151
    %v1153 = vpop.f32.mrb[0].mxu0
    %1154 = vdwg.mxu0
    %v1155 = vand.u32 2147483647, %v1066
    %v1156 = vand.u32 2147483647, %v1071
    %v1157 = vand.u32 2147483647, %v1147
    %v1158 = vand.u32 2147483647, %v1152
    %v1159 = vadd.f32 %v1155, %v1157
    %v1160 = vadd.f32 %v1156, %v1158
    %v1161 = vsel %vm151, %v1159, 0.0
    %v1162 = vsel %vm151, %v1160, 0.0
    %v1163 = vadd.f32 %v1161, %v1162
    %1164 = vadd.xlane.f32.xlu0 %v1163
    %v1165 = vpop.xlane.xlu0 %1164
    %v1166 = vrot.slane %v1165, 4
    %v1167 = vadd.f32 %v1165, %v1166
    %v1168 = vrot.slane %v1167, 2
    %v1169 = vadd.f32 %v1167, %v1168
    %v1170 = vrot.slane %v1169, 1
    %v1171 = vadd.f32 %v1169, %v1170
    %s1172 = vtos %v1171
    %s1173 = sadd.f32 %s1172, 0.0
    %1174 = vmatprep.subr.mxu0 0.0
    %1175 = vmatpush1.msra.mxu0 %v820
    %1176 = vmatprep.subr.mxu0 0.0
    %1177 = vmatpush1.msra.mxu0 %v825
    %1178 = vmatprep.subr.mxu0 0.0
    %1179 = vmatpush1.msra.mxu0 0.0
    %1180 = vmatprep.subr.mxu0 0.0
    %1181 = vmatpush1.msra.mxu0 0.0
    %1182 = vmatprep.subr.mxu0 0.0
    %1183 = vmatpush1.msra.mxu0 0.0
    %1184 = vmatprep.subr.mxu0 0.0
    %1185 = vmatpush1.msra.mxu0 0.0
    %1186 = vmatprep.subr.mxu0 0.0
    %1187 = vmatpush1.msra.mxu0 0.0
    %1188 = vmatprep.subr.mxu0 0.0
    %1189 = vmatpush1.msra.mxu0 0.0
    %1190 = vmatprep.subr.mxu0 0.0
    %1191 = vmatpush1.msra.mxu0 0.0
    %1192 = vmatprep.subr.mxu0 0.0
    %1193 = vmatpush1.msra.mxu0 0.0
    %1194 = vmatprep.subr.mxu0 0.0
    %1195 = vmatpush1.msra.mxu0 0.0
    %1196 = vmatprep.subr.mxu0 0.0
    %1197 = vmatpush1.msra.mxu0 0.0
    %1198 = vmatprep.subr.mxu0 0.0
    %1199 = vmatpush1.msra.mxu0 0.0
    %1200 = vmatprep.subr.mxu0 0.0
    %1201 = vmatpush1.msra.mxu0 0.0
    %1202 = vmatprep.subr.mxu0 0.0
    %1203 = vmatpush1.msra.mxu0 0.0
    %1204 = vmatprep.subr.mxu0 0.0
    %1205 = vmatpush1.msra.mxu0 0.0
    %1206 = vmatprep.subr.mxu0 0.0
    %1207 = vmatpush1.msra.mxu0 0.0
    %1208 = vmatprep.subr.mxu0 0.0
    %1209 = vmatpush1.msra.mxu0 0.0
    %1210 = vmatprep.subr.mxu0 0.0
    %1211 = vmatpush1.msra.mxu0 0.0
    %1212 = vmatprep.subr.mxu0 0.0
    %1213 = vmatpush1.msra.mxu0 0.0
    %1214 = vmatprep.subr.mxu0 0.0
    %1215 = vmatpush1.msra.mxu0 0.0
    %1216 = vmatprep.subr.mxu0 0.0
    %1217 = vmatpush1.msra.mxu0 0.0
    %1218 = vmatprep.subr.mxu0 0.0
    %1219 = vmatpush1.msra.mxu0 0.0
    %1220 = vmatprep.subr.mxu0 0.0
    %1221 = vmatpush1.msra.mxu0 0.0
    %1222 = vmatprep.subr.mxu0 0.0
    %1223 = vmatpush1.msra.mxu0 0.0
    %1224 = vmatprep.subr.mxu0 0.0
    %1225 = vmatpush1.msra.mxu0 0.0
    %1226 = vmatprep.subr.mxu0 0.0
    %1227 = vmatpush1.msra.mxu0 0.0
    %1228 = vmatprep.subr.mxu0 0.0
    %1229 = vmatpush1.msra.mxu0 0.0
    %1230 = vmatprep.subr.mxu0 0.0
    %1231 = vmatpush1.msra.mxu0 0.0
    %1232 = vmatprep.subr.mxu0 0.0
    %1233 = vmatpush1.msra.mxu0 0.0
    %1234 = vmatprep.subr.mxu0 0.0
    %1235 = vmatpush1.msra.mxu0 0.0
    %1236 = vmatprep.subr.mxu0 0.0
    %1237 = vmatpush1.msra.mxu0 0.0
    %1238 = vmatprep.mubr.f32.mxu0 0.0
    %1239 = vmatmul.mubr.f32.gmra.mrb[0].mxu0 %v994
    %v1240 = vpop.f32.mrb[0].mxu0
    %v1241 = vadd.f32 0.0, %v1240
    %v1242 = vpop.f32.mrb[0].mxu0
    %1243 = vmatprep.mubr.f32.mxu0 0.0
    %1244 = vmatmul.mubr.f32.gmra.mrb[0].mxu0 %v997
    %v1245 = vpop.f32.mrb[0].mxu0
    %v1246 = vadd.f32 0.0, %v1245
    %v1247 = vpop.f32.mrb[0].mxu0
    %1248 = vdwg.mxu0
    %1249 = vmatprep.subr.mxu0 0.0
    %1250 = vmatpush1.msra.mxu0 %v945
    %1251 = vmatprep.subr.mxu0 0.0
    %1252 = vmatpush1.msra.mxu0 %v950
    %1253 = vmatprep.subr.mxu0 0.0
    %1254 = vmatpush1.msra.mxu0 0.0
    %1255 = vmatprep.subr.mxu0 0.0
    %1256 = vmatpush1.msra.mxu0 0.0
    %1257 = vmatprep.subr.mxu0 0.0
    %1258 = vmatpush1.msra.mxu0 0.0
    %1259 = vmatprep.subr.mxu0 0.0
    %1260 = vmatpush1.msra.mxu0 0.0
    %1261 = vmatprep.subr.mxu0 0.0
    %1262 = vmatpush1.msra.mxu0 0.0
    %1263 = vmatprep.subr.mxu0 0.0
    %1264 = vmatpush1.msra.mxu0 0.0
    %1265 = vmatprep.subr.mxu0 0.0
    %1266 = vmatpush1.msra.mxu0 0.0
    %1267 = vmatprep.subr.mxu0 0.0
    %1268 = vmatpush1.msra.mxu0 0.0
    %1269 = vmatprep.subr.mxu0 0.0
    %1270 = vmatpush1.msra.mxu0 0.0
    %1271 = vmatprep.subr.mxu0 0.0
    %1272 = vmatpush1.msra.mxu0 0.0
    %1273 = vmatprep.subr.mxu0 0.0
    %1274 = vmatpush1.msra.mxu0 0.0
    %1275 = vmatprep.subr.mxu0 0.0
    %1276 = vmatpush1.msra.mxu0 0.0
    %1277 = vmatprep.subr.mxu0 0.0
    %1278 = vmatpush1.msra.mxu0 0.0
    %1279 = vmatprep.subr.mxu0 0.0
    %1280 = vmatpush1.msra.mxu0 0.0
    %1281 = vmatprep.subr.mxu0 0.0
    %1282 = vmatpush1.msra.mxu0 0.0
    %1283 = vmatprep.subr.mxu0 0.0
    %1284 = vmatpush1.msra.mxu0 0.0
    %1285 = vmatprep.subr.mxu0 0.0
    %1286 = vmatpush1.msra.mxu0 0.0
    %1287 = vmatprep.subr.mxu0 0.0
    %1288 = vmatpush1.msra.mxu0 0.0
    %1289 = vmatprep.subr.mxu0 0.0
    %1290 = vmatpush1.msra.mxu0 0.0
    %1291 = vmatprep.subr.mxu0 0.0
    %1292 = vmatpush1.msra.mxu0 0.0
    %1293 = vmatprep.subr.mxu0 0.0
    %1294 = vmatpush1.msra.mxu0 0.0
    %1295 = vmatprep.subr.mxu0 0.0
    %1296 = vmatpush1.msra.mxu0 0.0
    %1297 = vmatprep.subr.mxu0 0.0
    %1298 = vmatpush1.msra.mxu0 0.0
    %1299 = vmatprep.subr.mxu0 0.0
    %1300 = vmatpush1.msra.mxu0 0.0
    %1301 = vmatprep.subr.mxu0 0.0
    %1302 = vmatpush1.msra.mxu0 0.0
    %1303 = vmatprep.subr.mxu0 0.0
    %1304 = vmatpush1.msra.mxu0 0.0
    %1305 = vmatprep.subr.mxu0 0.0
    %1306 = vmatpush1.msra.mxu0 0.0
    %1307 = vmatprep.subr.mxu0 0.0
    %1308 = vmatpush1.msra.mxu0 0.0
    %1309 = vmatprep.subr.mxu0 0.0
    %1310 = vmatpush1.msra.mxu0 0.0
    %1311 = vmatprep.subr.mxu0 0.0
    %1312 = vmatpush1.msra.mxu0 0.0
    %1313 = vmatprep.mubr.f32.mxu0 0.0
    %1314 = vmatmul.mubr.f32.gmra.mrb[0].mxu0 %v1075
    %v1315 = vpop.f32.mrb[0].mxu0
    %v1316 = vadd.f32 0.0, %v1315
    %v1317 = vpop.f32.mrb[0].mxu0
    %1318 = vmatprep.mubr.f32.mxu0 0.0
    %1319 = vmatmul.mubr.f32.gmra.mrb[0].mxu0 %v1078
    %v1320 = vpop.f32.mrb[0].mxu0
    %v1321 = vadd.f32 0.0, %v1320
    %v1322 = vpop.f32.mrb[0].mxu0
    %1323 = vdwg.mxu0
    %v1324 = vand.u32 2147483647, %v1241
    %v1325 = vand.u32 2147483647, %v1246
    %v1326 = vand.u32 2147483647, %v1316
    %v1327 = vand.u32 2147483647, %v1321
    %v1328 = vadd.f32 %v1324, %v1326
    %v1329 = vadd.f32 %v1325, %v1327
    %v1330 = vsel %vm151, %v1328, 0.0
    %v1331 = vsel %vm151, %v1329, 0.0
    %v1332 = vadd.f32 %v1330, %v1331
    %1333 = vadd.xlane.f32.xlu0 %v1332
    %v1334 = vpop.xlane.xlu0 %1333
    %v1335 = vrot.slane %v1334, 4
    %v1336 = vadd.f32 %v1334, %v1335
    %v1337 = vrot.slane %v1336, 2
    %v1338 = vadd.f32 %v1336, %v1337
    %v1339 = vrot.slane %v1338, 1
    %v1340 = vadd.f32 %v1338, %v1339
    %s1341 = vtos %v1340
    %s1342 = sadd.f32 %s1341, 0.0
    %1343 = vmatprep.subr.mxu0 0.0
    %1344 = vmatpush1.msra.mxu0 %v830
    %1345 = vmatprep.subr.mxu0 0.0
    %1346 = vmatpush1.msra.mxu0 %v835
    %1347 = vmatprep.subr.mxu0 0.0
    %1348 = vmatpush1.msra.mxu0 0.0
    %1349 = vmatprep.subr.mxu0 0.0
    %1350 = vmatpush1.msra.mxu0 0.0
    %1351 = vmatprep.subr.mxu0 0.0
    %1352 = vmatpush1.msra.mxu0 0.0
    %1353 = vmatprep.subr.mxu0 0.0
    %1354 = vmatpush1.msra.mxu0 0.0
    %1355 = vmatprep.subr.mxu0 0.0
    %1356 = vmatpush1.msra.mxu0 0.0
    %1357 = vmatprep.subr.mxu0 0.0
    %1358 = vmatpush1.msra.mxu0 0.0
    %1359 = vmatprep.subr.mxu0 0.0
    %1360 = vmatpush1.msra.mxu0 0.0
    %1361 = vmatprep.subr.mxu0 0.0
    %1362 = vmatpush1.msra.mxu0 0.0
    %1363 = vmatprep.subr.mxu0 0.0
    %1364 = vmatpush1.msra.mxu0 0.0
    %1365 = vmatprep.subr.mxu0 0.0
    %1366 = vmatpush1.msra.mxu0 0.0
    %1367 = vmatprep.subr.mxu0 0.0
    %1368 = vmatpush1.msra.mxu0 0.0
    %1369 = vmatprep.subr.mxu0 0.0
    %1370 = vmatpush1.msra.mxu0 0.0
    %1371 = vmatprep.subr.mxu0 0.0
    %1372 = vmatpush1.msra.mxu0 0.0
    %1373 = vmatprep.subr.mxu0 0.0
    %1374 = vmatpush1.msra.mxu0 0.0
    %1375 = vmatprep.subr.mxu0 0.0
    %1376 = vmatpush1.msra.mxu0 0.0
    %1377 = vmatprep.subr.mxu0 0.0
    %1378 = vmatpush1.msra.mxu0 0.0
    %1379 = vmatprep.subr.mxu0 0.0
    %1380 = vmatpush1.msra.mxu0 0.0
    %1381 = vmatprep.subr.mxu0 0.0
    %1382 = vmatpush1.msra.mxu0 0.0
    %1383 = vmatprep.subr.mxu0 0.0
    %1384 = vmatpush1.msra.mxu0 0.0
    %1385 = vmatprep.subr.mxu0 0.0
    %1386 = vmatpush1.msra.mxu0 0.0
    %1387 = vmatprep.subr.mxu0 0.0
    %1388 = vmatpush1.msra.mxu0 0.0
    %1389 = vmatprep.subr.mxu0 0.0
    %1390 = vmatpush1.msra.mxu0 0.0
    %1391 = vmatprep.subr.mxu0 0.0
    %1392 = vmatpush1.msra.mxu0 0.0
    %1393 = vmatprep.subr.mxu0 0.0
    %1394 = vmatpush1.msra.mxu0 0.0
    %1395 = vmatprep.subr.mxu0 0.0
    %1396 = vmatpush1.msra.mxu0 0.0
    %1397 = vmatprep.subr.mxu0 0.0
    %1398 = vmatpush1.msra.mxu0 0.0
    %1399 = vmatprep.subr.mxu0 0.0
    %1400 = vmatpush1.msra.mxu0 0.0
    %1401 = vmatprep.subr.mxu0 0.0
    %1402 = vmatpush1.msra.mxu0 0.0
    %1403 = vmatprep.subr.mxu0 0.0
    %1404 = vmatpush1.msra.mxu0 0.0
    %1405 = vmatprep.subr.mxu0 0.0
    %1406 = vmatpush1.msra.mxu0 0.0
    %1407 = vmatprep.mubr.f32.mxu0 0.0
    %1408 = vmatmul.mubr.f32.gmra.mrb[0].mxu0 %v994
    %v1409 = vpop.f32.mrb[0].mxu0
    %v1410 = vadd.f32 0.0, %v1409
    %v1411 = vpop.f32.mrb[0].mxu0
    %1412 = vmatprep.mubr.f32.mxu0 0.0
    %1413 = vmatmul.mubr.f32.gmra.mrb[0].mxu0 %v997
    %v1414 = vpop.f32.mrb[0].mxu0
    %v1415 = vadd.f32 0.0, %v1414
    %v1416 = vpop.f32.mrb[0].mxu0
    %1417 = vdwg.mxu0
    %1418 = vmatprep.subr.mxu0 0.0
    %1419 = vmatpush1.msra.mxu0 %v955
    %1420 = vmatprep.subr.mxu0 0.0
    %1421 = vmatpush1.msra.mxu0 %v960
    %1422 = vmatprep.subr.mxu0 0.0
    %1423 = vmatpush1.msra.mxu0 0.0
    %1424 = vmatprep.subr.mxu0 0.0
    %1425 = vmatpush1.msra.mxu0 0.0
    %1426 = vmatprep.subr.mxu0 0.0
    %1427 = vmatpush1.msra.mxu0 0.0
    %1428 = vmatprep.subr.mxu0 0.0
    %1429 = vmatpush1.msra.mxu0 0.0
    %1430 = vmatprep.subr.mxu0 0.0
    %1431 = vmatpush1.msra.mxu0 0.0
    %1432 = vmatprep.subr.mxu0 0.0
    %1433 = vmatpush1.msra.mxu0 0.0
    %1434 = vmatprep.subr.mxu0 0.0
    %1435 = vmatpush1.msra.mxu0 0.0
    %1436 = vmatprep.subr.mxu0 0.0
    %1437 = vmatpush1.msra.mxu0 0.0
    %1438 = vmatprep.subr.mxu0 0.0
    %1439 = vmatpush1.msra.mxu0 0.0
    %1440 = vmatprep.subr.mxu0 0.0
    %1441 = vmatpush1.msra.mxu0 0.0
    %1442 = vmatprep.subr.mxu0 0.0
    %1443 = vmatpush1.msra.mxu0 0.0
    %1444 = vmatprep.subr.mxu0 0.0
    %1445 = vmatpush1.msra.mxu0 0.0
    %1446 = vmatprep.subr.mxu0 0.0
    %1447 = vmatpush1.msra.mxu0 0.0
    %1448 = vmatprep.subr.mxu0 0.0
    %1449 = vmatpush1.msra.mxu0 0.0
    %1450 = vmatprep.subr.mxu0 0.0
    %1451 = vmatpush1.msra.mxu0 0.0
    %1452 = vmatprep.subr.mxu0 0.0
    %1453 = vmatpush1.msra.mxu0 0.0
    %1454 = vmatprep.subr.mxu0 0.0
    %1455 = vmatpush1.msra.mxu0 0.0
    %1456 = vmatprep.subr.mxu0 0.0
    %1457 = vmatpush1.msra.mxu0 0.0
    %1458 = vmatprep.subr.mxu0 0.0
    %1459 = vmatpush1.msra.mxu0 0.0
    %1460 = vmatprep.subr.mxu0 0.0
    %1461 = vmatpush1.msra.mxu0 0.0
    %1462 = vmatprep.subr.mxu0 0.0
    %1463 = vmatpush1.msra.mxu0 0.0
    %1464 = vmatprep.subr.mxu0 0.0
    %1465 = vmatpush1.msra.mxu0 0.0
    %1466 = vmatprep.subr.mxu0 0.0
    %1467 = vmatpush1.msra.mxu0 0.0
    %1468 = vmatprep.subr.mxu0 0.0
    %1469 = vmatpush1.msra.mxu0 0.0
    %1470 = vmatprep.subr.mxu0 0.0
    %1471 = vmatpush1.msra.mxu0 0.0
    %1472 = vmatprep.subr.mxu0 0.0
    %1473 = vmatpush1.msra.mxu0 0.0
    %1474 = vmatprep.subr.mxu0 0.0
    %1475 = vmatpush1.msra.mxu0 0.0
    %1476 = vmatprep.subr.mxu0 0.0
    %1477 = vmatpush1.msra.mxu0 0.0
    %1478 = vmatprep.subr.mxu0 0.0
    %1479 = vmatpush1.msra.mxu0 0.0
    %1480 = vmatprep.subr.mxu0 0.0
    %1481 = vmatpush1.msra.mxu0 0.0
    %1482 = vmatprep.mubr.f32.mxu0 0.0
    %1483 = vmatmul.mubr.f32.gmra.mrb[0].mxu0 %v1075
    %v1484 = vpop.f32.mrb[0].mxu0
    %v1485 = vadd.f32 0.0, %v1484
    %v1486 = vpop.f32.mrb[0].mxu0
    %1487 = vmatprep.mubr.f32.mxu0 0.0
    %1488 = vmatmul.mubr.f32.gmra.mrb[0].mxu0 %v1078
    %v1489 = vpop.f32.mrb[0].mxu0
    %v1490 = vadd.f32 0.0, %v1489
    %v1491 = vpop.f32.mrb[0].mxu0
    %1492 = vdwg.mxu0
    %v1493 = vand.u32 2147483647, %v1410
    %v1494 = vand.u32 2147483647, %v1415
    %v1495 = vand.u32 2147483647, %v1485
    %v1496 = vand.u32 2147483647, %v1490
    %v1497 = vadd.f32 %v1493, %v1495
    %v1498 = vadd.f32 %v1494, %v1496
    %v1499 = vsel %vm151, %v1497, 0.0
    %v1500 = vsel %vm151, %v1498, 0.0
    %v1501 = vadd.f32 %v1499, %v1500
    %1502 = vadd.xlane.f32.xlu0 %v1501
    %v1503 = vpop.xlane.xlu0 %1502
    %v1504 = vrot.slane %v1503, 4
    %v1505 = vadd.f32 %v1503, %v1504
    %v1506 = vrot.slane %v1505, 2
    %v1507 = vadd.f32 %v1505, %v1506
    %v1508 = vrot.slane %v1507, 1
    %v1509 = vadd.f32 %v1507, %v1508
    %s1510 = vtos %v1509
    %s1511 = sadd.f32 %s1510, 0.0
    %v1513 = vsel %vm151, %v117, 0
    %v1516 = vsel %vm151, %v118, 0
    %1518 = vmatprep.subr.mxu0 0.0
    %1519 = vmatpush1.msra.mxu0 %v477
    %1520 = vmatprep.subr.mxu0 0.0
    %1521 = vmatpush1.msra.mxu0 %v482
    %1522 = vmatprep.subr.mxu0 0.0
    %1523 = vmatpush1.msra.mxu0 0.0
    %1524 = vmatprep.subr.mxu0 0.0
    %1525 = vmatpush1.msra.mxu0 0.0
    %1526 = vmatprep.subr.mxu0 0.0
    %1527 = vmatpush1.msra.mxu0 0.0
    %1528 = vmatprep.subr.mxu0 0.0
    %1529 = vmatpush1.msra.mxu0 0.0
    %1530 = vmatprep.subr.mxu0 0.0
    %1531 = vmatpush1.msra.mxu0 0.0
    %1532 = vmatprep.subr.mxu0 0.0
    %1533 = vmatpush1.msra.mxu0 0.0
    %1534 = vmatprep.subr.mxu0 0.0
    %1535 = vmatpush1.msra.mxu0 0.0
    %1536 = vmatprep.subr.mxu0 0.0
    %1537 = vmatpush1.msra.mxu0 0.0
    %1538 = vmatprep.subr.mxu0 0.0
    %1539 = vmatpush1.msra.mxu0 0.0
    %1540 = vmatprep.subr.mxu0 0.0
    %1541 = vmatpush1.msra.mxu0 0.0
    %1542 = vmatprep.subr.mxu0 0.0
    %1543 = vmatpush1.msra.mxu0 0.0
    %1544 = vmatprep.subr.mxu0 0.0
    %1545 = vmatpush1.msra.mxu0 0.0
    %1546 = vmatprep.subr.mxu0 0.0
    %1547 = vmatpush1.msra.mxu0 0.0
    %1548 = vmatprep.subr.mxu0 0.0
    %1549 = vmatpush1.msra.mxu0 0.0
    %1550 = vmatprep.subr.mxu0 0.0
    %1551 = vmatpush1.msra.mxu0 0.0
    %1552 = vmatprep.subr.mxu0 0.0
    %1553 = vmatpush1.msra.mxu0 0.0
    %1554 = vmatprep.subr.mxu0 0.0
    %1555 = vmatpush1.msra.mxu0 0.0
    %1556 = vmatprep.subr.mxu0 0.0
    %1557 = vmatpush1.msra.mxu0 0.0
    %1558 = vmatprep.subr.mxu0 0.0
    %1559 = vmatpush1.msra.mxu0 0.0
    %1560 = vmatprep.subr.mxu0 0.0
    %1561 = vmatpush1.msra.mxu0 0.0
    %1562 = vmatprep.subr.mxu0 0.0
    %1563 = vmatpush1.msra.mxu0 0.0
    %1564 = vmatprep.subr.mxu0 0.0
    %1565 = vmatpush1.msra.mxu0 0.0
    %1566 = vmatprep.subr.mxu0 0.0
    %1567 = vmatpush1.msra.mxu0 0.0
    %1568 = vmatprep.subr.mxu0 0.0
    %1569 = vmatpush1.msra.mxu0 0.0
    %1570 = vmatprep.subr.mxu0 0.0
    %1571 = vmatpush1.msra.mxu0 0.0
    %1572 = vmatprep.subr.mxu0 0.0
    %1573 = vmatpush1.msra.mxu0 0.0
    %1574 = vmatprep.subr.mxu0 0.0
    %1575 = vmatpush1.msra.mxu0 0.0
    %1576 = vmatprep.subr.mxu0 0.0
    %1577 = vmatpush1.msra.mxu0 0.0
    %1578 = vmatprep.subr.mxu0 0.0
    %1579 = vmatpush1.msra.mxu0 0.0
    %1580 = vmatprep.subr.mxu0 0.0
    %1581 = vmatpush1.msra.mxu0 0.0
    %1582 = vmatprep.mubr.f32.mxu0 0.0
    %1583 = vmatmul.mubr.f32.gmra.mrb[0].mxu0 %v1513
    %v1584 = vpop.f32.mrb[0].mxu0
    %v1585 = vadd.f32 0.0, %v1584
    %v1586 = vpop.f32.mrb[0].mxu0
    %1587 = vmatprep.mubr.f32.mxu0 0.0
    %1588 = vmatmul.mubr.f32.gmra.mrb[0].mxu0 %v1516
    %v1589 = vpop.f32.mrb[0].mxu0
    %v1590 = vadd.f32 0.0, %v1589
    %v1591 = vpop.f32.mrb[0].mxu0
    %1592 = vdwg.mxu0
    %1593 = vmatprep.subr.mxu0 0.0
    %1594 = vmatpush1.msra.mxu0 %v487
    %1595 = vmatprep.subr.mxu0 0.0
    %1596 = vmatpush1.msra.mxu0 %v492
    %1597 = vmatprep.subr.mxu0 0.0
    %1598 = vmatpush1.msra.mxu0 0.0
    %1599 = vmatprep.subr.mxu0 0.0
    %1600 = vmatpush1.msra.mxu0 0.0
    %1601 = vmatprep.subr.mxu0 0.0
    %1602 = vmatpush1.msra.mxu0 0.0
    %1603 = vmatprep.subr.mxu0 0.0
    %1604 = vmatpush1.msra.mxu0 0.0
    %1605 = vmatprep.subr.mxu0 0.0
    %1606 = vmatpush1.msra.mxu0 0.0
    %1607 = vmatprep.subr.mxu0 0.0
    %1608 = vmatpush1.msra.mxu0 0.0
    %1609 = vmatprep.subr.mxu0 0.0
    %1610 = vmatpush1.msra.mxu0 0.0
    %1611 = vmatprep.subr.mxu0 0.0
    %1612 = vmatpush1.msra.mxu0 0.0
    %1613 = vmatprep.subr.mxu0 0.0
    %1614 = vmatpush1.msra.mxu0 0.0
    %1615 = vmatprep.subr.mxu0 0.0
    %1616 = vmatpush1.msra.mxu0 0.0
    %1617 = vmatprep.subr.mxu0 0.0
    %1618 = vmatpush1.msra.mxu0 0.0
    %1619 = vmatprep.subr.mxu0 0.0
    %1620 = vmatpush1.msra.mxu0 0.0
    %1621 = vmatprep.subr.mxu0 0.0
    %1622 = vmatpush1.msra.mxu0 0.0
    %1623 = vmatprep.subr.mxu0 0.0
    %1624 = vmatpush1.msra.mxu0 0.0
    %1625 = vmatprep.subr.mxu0 0.0
    %1626 = vmatpush1.msra.mxu0 0.0
    %1627 = vmatprep.subr.mxu0 0.0
    %1628 = vmatpush1.msra.mxu0 0.0
    %1629 = vmatprep.subr.mxu0 0.0
    %1630 = vmatpush1.msra.mxu0 0.0
    %1631 = vmatprep.subr.mxu0 0.0
    %1632 = vmatpush1.msra.mxu0 0.0
    %1633 = vmatprep.subr.mxu0 0.0
    %1634 = vmatpush1.msra.mxu0 0.0
    %1635 = vmatprep.subr.mxu0 0.0
    %1636 = vmatpush1.msra.mxu0 0.0
    %1637 = vmatprep.subr.mxu0 0.0
    %1638 = vmatpush1.msra.mxu0 0.0
    %1639 = vmatprep.subr.mxu0 0.0
    %1640 = vmatpush1.msra.mxu0 0.0
    %1641 = vmatprep.subr.mxu0 0.0
    %1642 = vmatpush1.msra.mxu0 0.0
    %1643 = vmatprep.subr.mxu0 0.0
    %1644 = vmatpush1.msra.mxu0 0.0
    %1645 = vmatprep.subr.mxu0 0.0
    %1646 = vmatpush1.msra.mxu0 0.0
    %1647 = vmatprep.subr.mxu0 0.0
    %1648 = vmatpush1.msra.mxu0 0.0
    %1649 = vmatprep.subr.mxu0 0.0
    %1650 = vmatpush1.msra.mxu0 0.0
    %1651 = vmatprep.subr.mxu0 0.0
    %1652 = vmatpush1.msra.mxu0 0.0
    %1653 = vmatprep.subr.mxu0 0.0
    %1654 = vmatpush1.msra.mxu0 0.0
    %1655 = vmatprep.subr.mxu0 0.0
    %1656 = vmatpush1.msra.mxu0 0.0
    %1657 = vmatprep.mubr.f32.mxu0 0.0
    %1658 = vmatmul.mubr.f32.gmra.mrb[0].mxu0 %v1513
    %v1659 = vpop.f32.mrb[0].mxu0
    %v1660 = vadd.f32 0.0, %v1659
    %v1661 = vpop.f32.mrb[0].mxu0
    %1662 = vmatprep.mubr.f32.mxu0 0.0
    %1663 = vmatmul.mubr.f32.gmra.mrb[0].mxu0 %v1516
    %v1664 = vpop.f32.mrb[0].mxu0
    %v1665 = vadd.f32 0.0, %v1664
    %v1666 = vpop.f32.mrb[0].mxu0
    %1667 = vdwg.mxu0
    %v1668 = vmul.f32 %v1585, %v1585
    %v1669 = vmul.f32 %v1590, %v1590
    %v1670 = vsub.f32 %v1660, %v1668
    %v1671 = vsub.f32 %v1665, %v1669
    %1672 = vmatprep.subr.mxu0 0.0
    %1673 = vmatpush1.msra.mxu0 %v497
    %1674 = vmatprep.subr.mxu0 0.0
    %1675 = vmatpush1.msra.mxu0 %v502
    %1676 = vmatprep.subr.mxu0 0.0
    %1677 = vmatpush1.msra.mxu0 0.0
    %1678 = vmatprep.subr.mxu0 0.0
    %1679 = vmatpush1.msra.mxu0 0.0
    %1680 = vmatprep.subr.mxu0 0.0
    %1681 = vmatpush1.msra.mxu0 0.0
    %1682 = vmatprep.subr.mxu0 0.0
    %1683 = vmatpush1.msra.mxu0 0.0
    %1684 = vmatprep.subr.mxu0 0.0
    %1685 = vmatpush1.msra.mxu0 0.0
    %1686 = vmatprep.subr.mxu0 0.0
    %1687 = vmatpush1.msra.mxu0 0.0
    %1688 = vmatprep.subr.mxu0 0.0
    %1689 = vmatpush1.msra.mxu0 0.0
    %1690 = vmatprep.subr.mxu0 0.0
    %1691 = vmatpush1.msra.mxu0 0.0
    %1692 = vmatprep.subr.mxu0 0.0
    %1693 = vmatpush1.msra.mxu0 0.0
    %1694 = vmatprep.subr.mxu0 0.0
    %1695 = vmatpush1.msra.mxu0 0.0
    %1696 = vmatprep.subr.mxu0 0.0
    %1697 = vmatpush1.msra.mxu0 0.0
    %1698 = vmatprep.subr.mxu0 0.0
    %1699 = vmatpush1.msra.mxu0 0.0
    %1700 = vmatprep.subr.mxu0 0.0
    %1701 = vmatpush1.msra.mxu0 0.0
    %1702 = vmatprep.subr.mxu0 0.0
    %1703 = vmatpush1.msra.mxu0 0.0
    %1704 = vmatprep.subr.mxu0 0.0
    %1705 = vmatpush1.msra.mxu0 0.0
    %1706 = vmatprep.subr.mxu0 0.0
    %1707 = vmatpush1.msra.mxu0 0.0
    %1708 = vmatprep.subr.mxu0 0.0
    %1709 = vmatpush1.msra.mxu0 0.0
    %1710 = vmatprep.subr.mxu0 0.0
    %1711 = vmatpush1.msra.mxu0 0.0
    %1712 = vmatprep.subr.mxu0 0.0
    %1713 = vmatpush1.msra.mxu0 0.0
    %1714 = vmatprep.subr.mxu0 0.0
    %1715 = vmatpush1.msra.mxu0 0.0
    %1716 = vmatprep.subr.mxu0 0.0
    %1717 = vmatpush1.msra.mxu0 0.0
    %1718 = vmatprep.subr.mxu0 0.0
    %1719 = vmatpush1.msra.mxu0 0.0
    %1720 = vmatprep.subr.mxu0 0.0
    %1721 = vmatpush1.msra.mxu0 0.0
    %1722 = vmatprep.subr.mxu0 0.0
    %1723 = vmatpush1.msra.mxu0 0.0
    %1724 = vmatprep.subr.mxu0 0.0
    %1725 = vmatpush1.msra.mxu0 0.0
    %1726 = vmatprep.subr.mxu0 0.0
    %1727 = vmatpush1.msra.mxu0 0.0
    %1728 = vmatprep.subr.mxu0 0.0
    %1729 = vmatpush1.msra.mxu0 0.0
    %1730 = vmatprep.subr.mxu0 0.0
    %1731 = vmatpush1.msra.mxu0 0.0
    %1732 = vmatprep.subr.mxu0 0.0
    %1733 = vmatpush1.msra.mxu0 0.0
    %1734 = vmatprep.subr.mxu0 0.0
    %1735 = vmatpush1.msra.mxu0 0.0
    %1736 = vmatprep.mubr.f32.mxu0 0.0
    %1737 = vmatmul.mubr.f32.gmra.mrb[0].mxu0 %v1513
    %v1738 = vpop.f32.mrb[0].mxu0
    %v1739 = vadd.f32 0.0, %v1738
    %v1740 = vpop.f32.mrb[0].mxu0
    %1741 = vmatprep.mubr.f32.mxu0 0.0
    %1742 = vmatmul.mubr.f32.gmra.mrb[0].mxu0 %v1516
    %v1743 = vpop.f32.mrb[0].mxu0
    %v1744 = vadd.f32 0.0, %v1743
    %v1745 = vpop.f32.mrb[0].mxu0
    %1746 = vdwg.mxu0
    %1747 = vmatprep.subr.mxu0 0.0
    %1748 = vmatpush1.msra.mxu0 %v507
    %1749 = vmatprep.subr.mxu0 0.0
    %1750 = vmatpush1.msra.mxu0 %v512
    %1751 = vmatprep.subr.mxu0 0.0
    %1752 = vmatpush1.msra.mxu0 0.0
    %1753 = vmatprep.subr.mxu0 0.0
    %1754 = vmatpush1.msra.mxu0 0.0
    %1755 = vmatprep.subr.mxu0 0.0
    %1756 = vmatpush1.msra.mxu0 0.0
    %1757 = vmatprep.subr.mxu0 0.0
    %1758 = vmatpush1.msra.mxu0 0.0
    %1759 = vmatprep.subr.mxu0 0.0
    %1760 = vmatpush1.msra.mxu0 0.0
    %1761 = vmatprep.subr.mxu0 0.0
    %1762 = vmatpush1.msra.mxu0 0.0
    %1763 = vmatprep.subr.mxu0 0.0
    %1764 = vmatpush1.msra.mxu0 0.0
    %1765 = vmatprep.subr.mxu0 0.0
    %1766 = vmatpush1.msra.mxu0 0.0
    %1767 = vmatprep.subr.mxu0 0.0
    %1768 = vmatpush1.msra.mxu0 0.0
    %1769 = vmatprep.subr.mxu0 0.0
    %1770 = vmatpush1.msra.mxu0 0.0
    %1771 = vmatprep.subr.mxu0 0.0
    %1772 = vmatpush1.msra.mxu0 0.0
    %1773 = vmatprep.subr.mxu0 0.0
    %1774 = vmatpush1.msra.mxu0 0.0
    %1775 = vmatprep.subr.mxu0 0.0
    %1776 = vmatpush1.msra.mxu0 0.0
    %1777 = vmatprep.subr.mxu0 0.0
    %1778 = vmatpush1.msra.mxu0 0.0
    %1779 = vmatprep.subr.mxu0 0.0
    %1780 = vmatpush1.msra.mxu0 0.0
    %1781 = vmatprep.subr.mxu0 0.0
    %1782 = vmatpush1.msra.mxu0 0.0
    %1783 = vmatprep.subr.mxu0 0.0
    %1784 = vmatpush1.msra.mxu0 0.0
    %1785 = vmatprep.subr.mxu0 0.0
    %1786 = vmatpush1.msra.mxu0 0.0
    %1787 = vmatprep.subr.mxu0 0.0
    %1788 = vmatpush1.msra.mxu0 0.0
    %1789 = vmatprep.subr.mxu0 0.0
    %1790 = vmatpush1.msra.mxu0 0.0
    %1791 = vmatprep.subr.mxu0 0.0
    %1792 = vmatpush1.msra.mxu0 0.0
    %1793 = vmatprep.subr.mxu0 0.0
    %1794 = vmatpush1.msra.mxu0 0.0
    %1795 = vmatprep.subr.mxu0 0.0
    %1796 = vmatpush1.msra.mxu0 0.0
    %1797 = vmatprep.subr.mxu0 0.0
    %1798 = vmatpush1.msra.mxu0 0.0
    %1799 = vmatprep.subr.mxu0 0.0
    %1800 = vmatpush1.msra.mxu0 0.0
    %1801 = vmatprep.subr.mxu0 0.0
    %1802 = vmatpush1.msra.mxu0 0.0
    %1803 = vmatprep.subr.mxu0 0.0
    %1804 = vmatpush1.msra.mxu0 0.0
    %1805 = vmatprep.subr.mxu0 0.0
    %1806 = vmatpush1.msra.mxu0 0.0
    %1807 = vmatprep.subr.mxu0 0.0
    %1808 = vmatpush1.msra.mxu0 0.0
    %1809 = vmatprep.subr.mxu0 0.0
    %1810 = vmatpush1.msra.mxu0 0.0
    %1811 = vmatprep.mubr.f32.mxu0 0.0
    %1812 = vmatmul.mubr.f32.gmra.mrb[0].mxu0 %v1513
    %v1813 = vpop.f32.mrb[0].mxu0
    %v1814 = vadd.f32 0.0, %v1813
    %v1815 = vpop.f32.mrb[0].mxu0
    %1816 = vmatprep.mubr.f32.mxu0 0.0
    %1817 = vmatmul.mubr.f32.gmra.mrb[0].mxu0 %v1516
    %v1818 = vpop.f32.mrb[0].mxu0
    %v1819 = vadd.f32 0.0, %v1818
    %v1820 = vpop.f32.mrb[0].mxu0
    %1821 = vdwg.mxu0
    %v1822 = vmul.f32 %v1739, %v1739
    %v1823 = vmul.f32 %v1744, %v1744
    %v1824 = vsub.f32 %v1814, %v1822
    %v1825 = vsub.f32 %v1819, %v1823
    %1826 = vmatprep.subr.mxu0 0.0
    %1827 = vmatpush1.msra.mxu0 %v517
    %1828 = vmatprep.subr.mxu0 0.0
    %1829 = vmatpush1.msra.mxu0 %v522
    %1830 = vmatprep.subr.mxu0 0.0
    %1831 = vmatpush1.msra.mxu0 0.0
    %1832 = vmatprep.subr.mxu0 0.0
    %1833 = vmatpush1.msra.mxu0 0.0
    %1834 = vmatprep.subr.mxu0 0.0
    %1835 = vmatpush1.msra.mxu0 0.0
    %1836 = vmatprep.subr.mxu0 0.0
    %1837 = vmatpush1.msra.mxu0 0.0
    %1838 = vmatprep.subr.mxu0 0.0
    %1839 = vmatpush1.msra.mxu0 0.0
    %1840 = vmatprep.subr.mxu0 0.0
    %1841 = vmatpush1.msra.mxu0 0.0
    %1842 = vmatprep.subr.mxu0 0.0
    %1843 = vmatpush1.msra.mxu0 0.0
    %1844 = vmatprep.subr.mxu0 0.0
    %1845 = vmatpush1.msra.mxu0 0.0
    %1846 = vmatprep.subr.mxu0 0.0
    %1847 = vmatpush1.msra.mxu0 0.0
    %1848 = vmatprep.subr.mxu0 0.0
    %1849 = vmatpush1.msra.mxu0 0.0
    %1850 = vmatprep.subr.mxu0 0.0
    %1851 = vmatpush1.msra.mxu0 0.0
    %1852 = vmatprep.subr.mxu0 0.0
    %1853 = vmatpush1.msra.mxu0 0.0
    %1854 = vmatprep.subr.mxu0 0.0
    %1855 = vmatpush1.msra.mxu0 0.0
    %1856 = vmatprep.subr.mxu0 0.0
    %1857 = vmatpush1.msra.mxu0 0.0
    %1858 = vmatprep.subr.mxu0 0.0
    %1859 = vmatpush1.msra.mxu0 0.0
    %1860 = vmatprep.subr.mxu0 0.0
    %1861 = vmatpush1.msra.mxu0 0.0
    %1862 = vmatprep.subr.mxu0 0.0
    %1863 = vmatpush1.msra.mxu0 0.0
    %1864 = vmatprep.subr.mxu0 0.0
    %1865 = vmatpush1.msra.mxu0 0.0
    %1866 = vmatprep.subr.mxu0 0.0
    %1867 = vmatpush1.msra.mxu0 0.0
    %1868 = vmatprep.subr.mxu0 0.0
    %1869 = vmatpush1.msra.mxu0 0.0
    %1870 = vmatprep.subr.mxu0 0.0
    %1871 = vmatpush1.msra.mxu0 0.0
    %1872 = vmatprep.subr.mxu0 0.0
    %1873 = vmatpush1.msra.mxu0 0.0
    %1874 = vmatprep.subr.mxu0 0.0
    %1875 = vmatpush1.msra.mxu0 0.0
    %1876 = vmatprep.subr.mxu0 0.0
    %1877 = vmatpush1.msra.mxu0 0.0
    %1878 = vmatprep.subr.mxu0 0.0
    %1879 = vmatpush1.msra.mxu0 0.0
    %1880 = vmatprep.subr.mxu0 0.0
    %1881 = vmatpush1.msra.mxu0 0.0
    %1882 = vmatprep.subr.mxu0 0.0
    %1883 = vmatpush1.msra.mxu0 0.0
    %1884 = vmatprep.subr.mxu0 0.0
    %1885 = vmatpush1.msra.mxu0 0.0
    %1886 = vmatprep.subr.mxu0 0.0
    %1887 = vmatpush1.msra.mxu0 0.0
    %1888 = vmatprep.subr.mxu0 0.0
    %1889 = vmatpush1.msra.mxu0 0.0
    %1890 = vmatprep.mubr.f32.mxu0 0.0
    %1891 = vmatmul.mubr.f32.gmra.mrb[0].mxu0 %v1513
    %v1892 = vpop.f32.mrb[0].mxu0
    %v1893 = vadd.f32 0.0, %v1892
    %v1894 = vpop.f32.mrb[0].mxu0
    %1895 = vmatprep.mubr.f32.mxu0 0.0
    %1896 = vmatmul.mubr.f32.gmra.mrb[0].mxu0 %v1516
    %v1897 = vpop.f32.mrb[0].mxu0
    %v1898 = vadd.f32 0.0, %v1897
    %v1899 = vpop.f32.mrb[0].mxu0
    %1900 = vdwg.mxu0
    %v1901 = vmul.f32 %v1739, %v1585
    %v1902 = vmul.f32 %v1744, %v1590
    %v1903 = vsub.f32 %v1893, %v1901
    %v1904 = vsub.f32 %v1898, %v1902
    %v1905 = vmul.f32 %v1739, 2.0
    %v1906 = vmul.f32 %v1744, 2.0
    %v1907 = vmul.f32 %v1905, %v1585
    %v1908 = vmul.f32 %v1906, %v1590
    %v1909 = vadd.f32 %v1907, 0.0001
    %v1910 = vadd.f32 %v1908, 0.0001
    %v1911 = vmul.f32 %v1903, 2.0
    %v1912 = vmul.f32 %v1904, 2.0
    %v1913 = vadd.f32 %v1911, 0.0009
    %v1914 = vadd.f32 %v1912, 0.0009
    %v1915 = vmul.f32 %v1909, %v1913
    %v1916 = vmul.f32 %v1910, %v1914
    %v1917 = vadd.f32 %v1822, %v1668
    %v1918 = vadd.f32 %v1823, %v1669
    %v1919 = vadd.f32 %v1917, 0.0001
    %v1920 = vadd.f32 %v1918, 0.0001
    %v1921 = vadd.f32 %v1824, %v1670
    %v1922 = vadd.f32 %v1825, %v1671
    %v1923 = vadd.f32 %v1921, 0.0009
    %v1924 = vadd.f32 %v1922, 0.0009
    %v1925 = vmul.f32 %v1919, %v1923
    %v1926 = vmul.f32 %v1920, %v1924
    %v1927 = vrcp.pop %v1925
    %v1928 = vmul.f32 %v1915, %v1927
    %v1929 = vrcp.pop %v1926
    %v1930 = vmul.f32 %v1916, %v1929
    %v1931 = vsel %vm151, %v1928, 0.0
    %v1932 = vsel %vm151, %v1930, 0.0
    %v1933 = vadd.f32 %v1931, %v1932
    %1934 = vadd.xlane.f32.xlu0 %v1933
    %v1935 = vpop.xlane.xlu0 %1934
    %v1936 = vrot.slane %v1935, 4
    %v1937 = vadd.f32 %v1935, %v1936
    %v1938 = vrot.slane %v1937, 2
    %v1939 = vadd.f32 %v1937, %v1938
    %v1940 = vrot.slane %v1939, 1
    %v1941 = vadd.f32 %v1939, %v1940
    %s1942 = vtos %v1941
    %s1943 = sadd.f32 %s1942, 0.0
    %1944 = vmatprep.subr.mxu0 0.0
    %1945 = vmatpush1.msra.mxu0 %v527
    %1946 = vmatprep.subr.mxu0 0.0
    %1947 = vmatpush1.msra.mxu0 %v532
    %1948 = vmatprep.subr.mxu0 0.0
    %1949 = vmatpush1.msra.mxu0 0.0
    %1950 = vmatprep.subr.mxu0 0.0
    %1951 = vmatpush1.msra.mxu0 0.0
    %1952 = vmatprep.subr.mxu0 0.0
    %1953 = vmatpush1.msra.mxu0 0.0
    %1954 = vmatprep.subr.mxu0 0.0
    %1955 = vmatpush1.msra.mxu0 0.0
    %1956 = vmatprep.subr.mxu0 0.0
    %1957 = vmatpush1.msra.mxu0 0.0
    %1958 = vmatprep.subr.mxu0 0.0
    %1959 = vmatpush1.msra.mxu0 0.0
    %1960 = vmatprep.subr.mxu0 0.0
    %1961 = vmatpush1.msra.mxu0 0.0
    %1962 = vmatprep.subr.mxu0 0.0
    %1963 = vmatpush1.msra.mxu0 0.0
    %1964 = vmatprep.subr.mxu0 0.0
    %1965 = vmatpush1.msra.mxu0 0.0
    %1966 = vmatprep.subr.mxu0 0.0
    %1967 = vmatpush1.msra.mxu0 0.0
    %1968 = vmatprep.subr.mxu0 0.0
    %1969 = vmatpush1.msra.mxu0 0.0
    %1970 = vmatprep.subr.mxu0 0.0
    %1971 = vmatpush1.msra.mxu0 0.0
    %1972 = vmatprep.subr.mxu0 0.0
    %1973 = vmatpush1.msra.mxu0 0.0
    %1974 = vmatprep.subr.mxu0 0.0
    %1975 = vmatpush1.msra.mxu0 0.0
    %1976 = vmatprep.subr.mxu0 0.0
    %1977 = vmatpush1.msra.mxu0 0.0
    %1978 = vmatprep.subr.mxu0 0.0
    %1979 = vmatpush1.msra.mxu0 0.0
    %1980 = vmatprep.subr.mxu0 0.0
    %1981 = vmatpush1.msra.mxu0 0.0
    %1982 = vmatprep.subr.mxu0 0.0
    %1983 = vmatpush1.msra.mxu0 0.0
    %1984 = vmatprep.subr.mxu0 0.0
    %1985 = vmatpush1.msra.mxu0 0.0
    %1986 = vmatprep.subr.mxu0 0.0
    %1987 = vmatpush1.msra.mxu0 0.0
    %1988 = vmatprep.subr.mxu0 0.0
    %1989 = vmatpush1.msra.mxu0 0.0
    %1990 = vmatprep.subr.mxu0 0.0
    %1991 = vmatpush1.msra.mxu0 0.0
    %1992 = vmatprep.subr.mxu0 0.0
    %1993 = vmatpush1.msra.mxu0 0.0
    %1994 = vmatprep.subr.mxu0 0.0
    %1995 = vmatpush1.msra.mxu0 0.0
    %1996 = vmatprep.subr.mxu0 0.0
    %1997 = vmatpush1.msra.mxu0 0.0
    %1998 = vmatprep.subr.mxu0 0.0
    %1999 = vmatpush1.msra.mxu0 0.0
    %2000 = vmatprep.subr.mxu0 0.0
    %2001 = vmatpush1.msra.mxu0 0.0
    %2002 = vmatprep.subr.mxu0 0.0
    %2003 = vmatpush1.msra.mxu0 0.0
    %2004 = vmatprep.subr.mxu0 0.0
    %2005 = vmatpush1.msra.mxu0 0.0
    %2006 = vmatprep.subr.mxu0 0.0
    %2007 = vmatpush1.msra.mxu0 0.0
    %2008 = vmatprep.mubr.f32.mxu0 0.0
    %2009 = vmatmul.mubr.f32.gmra.mrb[0].mxu0 %v1513
    %v2010 = vpop.f32.mrb[0].mxu0
    %v2011 = vadd.f32 0.0, %v2010
    %v2012 = vpop.f32.mrb[0].mxu0
    %2013 = vmatprep.mubr.f32.mxu0 0.0
    %2014 = vmatmul.mubr.f32.gmra.mrb[0].mxu0 %v1516
    %v2015 = vpop.f32.mrb[0].mxu0
    %v2016 = vadd.f32 0.0, %v2015
    %v2017 = vpop.f32.mrb[0].mxu0
    %2018 = vdwg.mxu0
    %2019 = vmatprep.subr.mxu0 0.0
    %2020 = vmatpush1.msra.mxu0 %v537
    %2021 = vmatprep.subr.mxu0 0.0
    %2022 = vmatpush1.msra.mxu0 %v542
    %2023 = vmatprep.subr.mxu0 0.0
    %2024 = vmatpush1.msra.mxu0 0.0
    %2025 = vmatprep.subr.mxu0 0.0
    %2026 = vmatpush1.msra.mxu0 0.0
    %2027 = vmatprep.subr.mxu0 0.0
    %2028 = vmatpush1.msra.mxu0 0.0
    %2029 = vmatprep.subr.mxu0 0.0
    %2030 = vmatpush1.msra.mxu0 0.0
    %2031 = vmatprep.subr.mxu0 0.0
    %2032 = vmatpush1.msra.mxu0 0.0
    %2033 = vmatprep.subr.mxu0 0.0
    %2034 = vmatpush1.msra.mxu0 0.0
    %2035 = vmatprep.subr.mxu0 0.0
    %2036 = vmatpush1.msra.mxu0 0.0
    %2037 = vmatprep.subr.mxu0 0.0
    %2038 = vmatpush1.msra.mxu0 0.0
    %2039 = vmatprep.subr.mxu0 0.0
    %2040 = vmatpush1.msra.mxu0 0.0
    %2041 = vmatprep.subr.mxu0 0.0
    %2042 = vmatpush1.msra.mxu0 0.0
    %2043 = vmatprep.subr.mxu0 0.0
    %2044 = vmatpush1.msra.mxu0 0.0
    %2045 = vmatprep.subr.mxu0 0.0
    %2046 = vmatpush1.msra.mxu0 0.0
    %2047 = vmatprep.subr.mxu0 0.0
    %2048 = vmatpush1.msra.mxu0 0.0
    %2049 = vmatprep.subr.mxu0 0.0
    %2050 = vmatpush1.msra.mxu0 0.0
    %2051 = vmatprep.subr.mxu0 0.0
    %2052 = vmatpush1.msra.mxu0 0.0
    %2053 = vmatprep.subr.mxu0 0.0
    %2054 = vmatpush1.msra.mxu0 0.0
    %2055 = vmatprep.subr.mxu0 0.0
    %2056 = vmatpush1.msra.mxu0 0.0
    %2057 = vmatprep.subr.mxu0 0.0
    %2058 = vmatpush1.msra.mxu0 0.0
    %2059 = vmatprep.subr.mxu0 0.0
    %2060 = vmatpush1.msra.mxu0 0.0
    %2061 = vmatprep.subr.mxu0 0.0
    %2062 = vmatpush1.msra.mxu0 0.0
    %2063 = vmatprep.subr.mxu0 0.0
    %2064 = vmatpush1.msra.mxu0 0.0
    %2065 = vmatprep.subr.mxu0 0.0
    %2066 = vmatpush1.msra.mxu0 0.0
    %2067 = vmatprep.subr.mxu0 0.0
    %2068 = vmatpush1.msra.mxu0 0.0
    %2069 = vmatprep.subr.mxu0 0.0
    %2070 = vmatpush1.msra.mxu0 0.0
    %2071 = vmatprep.subr.mxu0 0.0
    %2072 = vmatpush1.msra.mxu0 0.0
    %2073 = vmatprep.subr.mxu0 0.0
    %2074 = vmatpush1.msra.mxu0 0.0
    %2075 = vmatprep.subr.mxu0 0.0
    %2076 = vmatpush1.msra.mxu0 0.0
    %2077 = vmatprep.subr.mxu0 0.0
    %2078 = vmatpush1.msra.mxu0 0.0
    %2079 = vmatprep.subr.mxu0 0.0
    %2080 = vmatpush1.msra.mxu0 0.0
    %2081 = vmatprep.subr.mxu0 0.0
    %2082 = vmatpush1.msra.mxu0 0.0
    %2083 = vmatprep.mubr.f32.mxu0 0.0
    %2084 = vmatmul.mubr.f32.gmra.mrb[0].mxu0 %v1513
    %v2085 = vpop.f32.mrb[0].mxu0
    %v2086 = vadd.f32 0.0, %v2085
    %v2087 = vpop.f32.mrb[0].mxu0
    %2088 = vmatprep.mubr.f32.mxu0 0.0
    %2089 = vmatmul.mubr.f32.gmra.mrb[0].mxu0 %v1516
    %v2090 = vpop.f32.mrb[0].mxu0
    %v2091 = vadd.f32 0.0, %v2090
    %v2092 = vpop.f32.mrb[0].mxu0
    %2093 = vdwg.mxu0
    %v2094 = vmul.f32 %v2011, %v2011
    %v2095 = vmul.f32 %v2016, %v2016
    %v2096 = vsub.f32 %v2086, %v2094
    %v2097 = vsub.f32 %v2091, %v2095
    %2098 = vmatprep.subr.mxu0 0.0
    %2099 = vmatpush1.msra.mxu0 %v547
    %2100 = vmatprep.subr.mxu0 0.0
    %2101 = vmatpush1.msra.mxu0 %v552
    %2102 = vmatprep.subr.mxu0 0.0
    %2103 = vmatpush1.msra.mxu0 0.0
    %2104 = vmatprep.subr.mxu0 0.0
    %2105 = vmatpush1.msra.mxu0 0.0
    %2106 = vmatprep.subr.mxu0 0.0
    %2107 = vmatpush1.msra.mxu0 0.0
    %2108 = vmatprep.subr.mxu0 0.0
    %2109 = vmatpush1.msra.mxu0 0.0
    %2110 = vmatprep.subr.mxu0 0.0
    %2111 = vmatpush1.msra.mxu0 0.0
    %2112 = vmatprep.subr.mxu0 0.0
    %2113 = vmatpush1.msra.mxu0 0.0
    %2114 = vmatprep.subr.mxu0 0.0
    %2115 = vmatpush1.msra.mxu0 0.0
    %2116 = vmatprep.subr.mxu0 0.0
    %2117 = vmatpush1.msra.mxu0 0.0
    %2118 = vmatprep.subr.mxu0 0.0
    %2119 = vmatpush1.msra.mxu0 0.0
    %2120 = vmatprep.subr.mxu0 0.0
    %2121 = vmatpush1.msra.mxu0 0.0
    %2122 = vmatprep.subr.mxu0 0.0
    %2123 = vmatpush1.msra.mxu0 0.0
    %2124 = vmatprep.subr.mxu0 0.0
    %2125 = vmatpush1.msra.mxu0 0.0
    %2126 = vmatprep.subr.mxu0 0.0
    %2127 = vmatpush1.msra.mxu0 0.0
    %2128 = vmatprep.subr.mxu0 0.0
    %2129 = vmatpush1.msra.mxu0 0.0
    %2130 = vmatprep.subr.mxu0 0.0
    %2131 = vmatpush1.msra.mxu0 0.0
    %2132 = vmatprep.subr.mxu0 0.0
    %2133 = vmatpush1.msra.mxu0 0.0
    %2134 = vmatprep.subr.mxu0 0.0
    %2135 = vmatpush1.msra.mxu0 0.0
    %2136 = vmatprep.subr.mxu0 0.0
    %2137 = vmatpush1.msra.mxu0 0.0
    %2138 = vmatprep.subr.mxu0 0.0
    %2139 = vmatpush1.msra.mxu0 0.0
    %2140 = vmatprep.subr.mxu0 0.0
    %2141 = vmatpush1.msra.mxu0 0.0
    %2142 = vmatprep.subr.mxu0 0.0
    %2143 = vmatpush1.msra.mxu0 0.0
    %2144 = vmatprep.subr.mxu0 0.0
    %2145 = vmatpush1.msra.mxu0 0.0
    %2146 = vmatprep.subr.mxu0 0.0
    %2147 = vmatpush1.msra.mxu0 0.0
    %2148 = vmatprep.subr.mxu0 0.0
    %2149 = vmatpush1.msra.mxu0 0.0
    %2150 = vmatprep.subr.mxu0 0.0
    %2151 = vmatpush1.msra.mxu0 0.0
    %2152 = vmatprep.subr.mxu0 0.0
    %2153 = vmatpush1.msra.mxu0 0.0
    %2154 = vmatprep.subr.mxu0 0.0
    %2155 = vmatpush1.msra.mxu0 0.0
    %2156 = vmatprep.subr.mxu0 0.0
    %2157 = vmatpush1.msra.mxu0 0.0
    %2158 = vmatprep.subr.mxu0 0.0
    %2159 = vmatpush1.msra.mxu0 0.0
    %2160 = vmatprep.subr.mxu0 0.0
    %2161 = vmatpush1.msra.mxu0 0.0
    %2162 = vmatprep.mubr.f32.mxu0 0.0
    %2163 = vmatmul.mubr.f32.gmra.mrb[0].mxu0 %v1513
    %v2164 = vpop.f32.mrb[0].mxu0
    %v2165 = vadd.f32 0.0, %v2164
    %v2166 = vpop.f32.mrb[0].mxu0
    %2167 = vmatprep.mubr.f32.mxu0 0.0
    %2168 = vmatmul.mubr.f32.gmra.mrb[0].mxu0 %v1516
    %v2169 = vpop.f32.mrb[0].mxu0
    %v2170 = vadd.f32 0.0, %v2169
    %v2171 = vpop.f32.mrb[0].mxu0
    %2172 = vdwg.mxu0
    %v2173 = vmul.f32 %v2011, %v1585
    %v2174 = vmul.f32 %v2016, %v1590
    %v2175 = vsub.f32 %v2165, %v2173
    %v2176 = vsub.f32 %v2170, %v2174
    %v2177 = vmul.f32 %v2011, 2.0
    %v2178 = vmul.f32 %v2016, 2.0
    %v2179 = vmul.f32 %v2177, %v1585
    %v2180 = vmul.f32 %v2178, %v1590
    %v2181 = vadd.f32 %v2179, 0.0001
    %v2182 = vadd.f32 %v2180, 0.0001
    %v2183 = vmul.f32 %v2175, 2.0
    %v2184 = vmul.f32 %v2176, 2.0
    %v2185 = vadd.f32 %v2183, 0.0009
    %v2186 = vadd.f32 %v2184, 0.0009
    %v2187 = vmul.f32 %v2181, %v2185
    %v2188 = vmul.f32 %v2182, %v2186
    %v2189 = vadd.f32 %v2094, %v1668
    %v2190 = vadd.f32 %v2095, %v1669
    %v2191 = vadd.f32 %v2189, 0.0001
    %v2192 = vadd.f32 %v2190, 0.0001
    %v2193 = vadd.f32 %v2096, %v1670
    %v2194 = vadd.f32 %v2097, %v1671
    %v2195 = vadd.f32 %v2193, 0.0009
    %v2196 = vadd.f32 %v2194, 0.0009
    %v2197 = vmul.f32 %v2191, %v2195
    %v2198 = vmul.f32 %v2192, %v2196
    %v2199 = vrcp.pop %v2197
    %v2200 = vmul.f32 %v2187, %v2199
    %v2201 = vrcp.pop %v2198
    %v2202 = vmul.f32 %v2188, %v2201
    %v2203 = vsel %vm151, %v2200, 0.0
    %v2204 = vsel %vm151, %v2202, 0.0
    %v2205 = vadd.f32 %v2203, %v2204
    %2206 = vadd.xlane.f32.xlu0 %v2205
    %v2207 = vpop.xlane.xlu0 %2206
    %v2208 = vrot.slane %v2207, 4
    %v2209 = vadd.f32 %v2207, %v2208
    %v2210 = vrot.slane %v2209, 2
    %v2211 = vadd.f32 %v2209, %v2210
    %v2212 = vrot.slane %v2211, 1
    %v2213 = vadd.f32 %v2211, %v2212
    %s2214 = vtos %v2213
    %s2215 = sadd.f32 %s2214, 0.0
    %2216 = vmatprep.subr.mxu0 0.0
    %2217 = vmatpush1.msra.mxu0 %v557
    %2218 = vmatprep.subr.mxu0 0.0
    %2219 = vmatpush1.msra.mxu0 %v562
    %2220 = vmatprep.subr.mxu0 0.0
    %2221 = vmatpush1.msra.mxu0 0.0
    %2222 = vmatprep.subr.mxu0 0.0
    %2223 = vmatpush1.msra.mxu0 0.0
    %2224 = vmatprep.subr.mxu0 0.0
    %2225 = vmatpush1.msra.mxu0 0.0
    %2226 = vmatprep.subr.mxu0 0.0
    %2227 = vmatpush1.msra.mxu0 0.0
    %2228 = vmatprep.subr.mxu0 0.0
    %2229 = vmatpush1.msra.mxu0 0.0
    %2230 = vmatprep.subr.mxu0 0.0
    %2231 = vmatpush1.msra.mxu0 0.0
    %2232 = vmatprep.subr.mxu0 0.0
    %2233 = vmatpush1.msra.mxu0 0.0
    %2234 = vmatprep.subr.mxu0 0.0
    %2235 = vmatpush1.msra.mxu0 0.0
    %2236 = vmatprep.subr.mxu0 0.0
    %2237 = vmatpush1.msra.mxu0 0.0
    %2238 = vmatprep.subr.mxu0 0.0
    %2239 = vmatpush1.msra.mxu0 0.0
    %2240 = vmatprep.subr.mxu0 0.0
    %2241 = vmatpush1.msra.mxu0 0.0
    %2242 = vmatprep.subr.mxu0 0.0
    %2243 = vmatpush1.msra.mxu0 0.0
    %2244 = vmatprep.subr.mxu0 0.0
    %2245 = vmatpush1.msra.mxu0 0.0
    %2246 = vmatprep.subr.mxu0 0.0
    %2247 = vmatpush1.msra.mxu0 0.0
    %2248 = vmatprep.subr.mxu0 0.0
    %2249 = vmatpush1.msra.mxu0 0.0
    %2250 = vmatprep.subr.mxu0 0.0
    %2251 = vmatpush1.msra.mxu0 0.0
    %2252 = vmatprep.subr.mxu0 0.0
    %2253 = vmatpush1.msra.mxu0 0.0
    %2254 = vmatprep.subr.mxu0 0.0
    %2255 = vmatpush1.msra.mxu0 0.0
    %2256 = vmatprep.subr.mxu0 0.0
    %2257 = vmatpush1.msra.mxu0 0.0
    %2258 = vmatprep.subr.mxu0 0.0
    %2259 = vmatpush1.msra.mxu0 0.0
    %2260 = vmatprep.subr.mxu0 0.0
    %2261 = vmatpush1.msra.mxu0 0.0
    %2262 = vmatprep.subr.mxu0 0.0
    %2263 = vmatpush1.msra.mxu0 0.0
    %2264 = vmatprep.subr.mxu0 0.0
    %2265 = vmatpush1.msra.mxu0 0.0
    %2266 = vmatprep.subr.mxu0 0.0
    %2267 = vmatpush1.msra.mxu0 0.0
    %2268 = vmatprep.subr.mxu0 0.0
    %2269 = vmatpush1.msra.mxu0 0.0
    %2270 = vmatprep.subr.mxu0 0.0
    %2271 = vmatpush1.msra.mxu0 0.0
    %2272 = vmatprep.subr.mxu0 0.0
    %2273 = vmatpush1.msra.mxu0 0.0
    %2274 = vmatprep.subr.mxu0 0.0
    %2275 = vmatpush1.msra.mxu0 0.0
    %2276 = vmatprep.subr.mxu0 0.0
    %2277 = vmatpush1.msra.mxu0 0.0
    %2278 = vmatprep.subr.mxu0 0.0
    %2279 = vmatpush1.msra.mxu0 0.0
    %2280 = vmatprep.mubr.f32.mxu0 0.0
    %2281 = vmatmul.mubr.f32.gmra.mrb[0].mxu0 %v1513
    %v2282 = vpop.f32.mrb[0].mxu0
    %v2283 = vadd.f32 0.0, %v2282
    %v2284 = vpop.f32.mrb[0].mxu0
    %2285 = vmatprep.mubr.f32.mxu0 0.0
    %2286 = vmatmul.mubr.f32.gmra.mrb[0].mxu0 %v1516
    %v2287 = vpop.f32.mrb[0].mxu0
    %v2288 = vadd.f32 0.0, %v2287
    %v2289 = vpop.f32.mrb[0].mxu0
    %2290 = vdwg.mxu0
    %2291 = vmatprep.subr.mxu0 0.0
    %2292 = vmatpush1.msra.mxu0 %v567
    %2293 = vmatprep.subr.mxu0 0.0
    %2294 = vmatpush1.msra.mxu0 %v572
    %2295 = vmatprep.subr.mxu0 0.0
    %2296 = vmatpush1.msra.mxu0 0.0
    %2297 = vmatprep.subr.mxu0 0.0
    %2298 = vmatpush1.msra.mxu0 0.0
    %2299 = vmatprep.subr.mxu0 0.0
    %2300 = vmatpush1.msra.mxu0 0.0
    %2301 = vmatprep.subr.mxu0 0.0
    %2302 = vmatpush1.msra.mxu0 0.0
    %2303 = vmatprep.subr.mxu0 0.0
    %2304 = vmatpush1.msra.mxu0 0.0
    %2305 = vmatprep.subr.mxu0 0.0
    %2306 = vmatpush1.msra.mxu0 0.0
    %2307 = vmatprep.subr.mxu0 0.0
    %2308 = vmatpush1.msra.mxu0 0.0
    %2309 = vmatprep.subr.mxu0 0.0
    %2310 = vmatpush1.msra.mxu0 0.0
    %2311 = vmatprep.subr.mxu0 0.0
    %2312 = vmatpush1.msra.mxu0 0.0
    %2313 = vmatprep.subr.mxu0 0.0
    %2314 = vmatpush1.msra.mxu0 0.0
    %2315 = vmatprep.subr.mxu0 0.0
    %2316 = vmatpush1.msra.mxu0 0.0
    %2317 = vmatprep.subr.mxu0 0.0
    %2318 = vmatpush1.msra.mxu0 0.0
    %2319 = vmatprep.subr.mxu0 0.0
    %2320 = vmatpush1.msra.mxu0 0.0
    %2321 = vmatprep.subr.mxu0 0.0
    %2322 = vmatpush1.msra.mxu0 0.0
    %2323 = vmatprep.subr.mxu0 0.0
    %2324 = vmatpush1.msra.mxu0 0.0
    %2325 = vmatprep.subr.mxu0 0.0
    %2326 = vmatpush1.msra.mxu0 0.0
    %2327 = vmatprep.subr.mxu0 0.0
    %2328 = vmatpush1.msra.mxu0 0.0
    %2329 = vmatprep.subr.mxu0 0.0
    %2330 = vmatpush1.msra.mxu0 0.0
    %2331 = vmatprep.subr.mxu0 0.0
    %2332 = vmatpush1.msra.mxu0 0.0
    %2333 = vmatprep.subr.mxu0 0.0
    %2334 = vmatpush1.msra.mxu0 0.0
    %2335 = vmatprep.subr.mxu0 0.0
    %2336 = vmatpush1.msra.mxu0 0.0
    %2337 = vmatprep.subr.mxu0 0.0
    %2338 = vmatpush1.msra.mxu0 0.0
    %2339 = vmatprep.subr.mxu0 0.0
    %2340 = vmatpush1.msra.mxu0 0.0
    %2341 = vmatprep.subr.mxu0 0.0
    %2342 = vmatpush1.msra.mxu0 0.0
    %2343 = vmatprep.subr.mxu0 0.0
    %2344 = vmatpush1.msra.mxu0 0.0
    %2345 = vmatprep.subr.mxu0 0.0
    %2346 = vmatpush1.msra.mxu0 0.0
    %2347 = vmatprep.subr.mxu0 0.0
    %2348 = vmatpush1.msra.mxu0 0.0
    %2349 = vmatprep.subr.mxu0 0.0
    %2350 = vmatpush1.msra.mxu0 0.0
    %2351 = vmatprep.subr.mxu0 0.0
    %2352 = vmatpush1.msra.mxu0 0.0
    %2353 = vmatprep.subr.mxu0 0.0
    %2354 = vmatpush1.msra.mxu0 0.0
    %2355 = vmatprep.mubr.f32.mxu0 0.0
    %2356 = vmatmul.mubr.f32.gmra.mrb[0].mxu0 %v1513
    %v2357 = vpop.f32.mrb[0].mxu0
    %v2358 = vadd.f32 0.0, %v2357
    %v2359 = vpop.f32.mrb[0].mxu0
    %2360 = vmatprep.mubr.f32.mxu0 0.0
    %2361 = vmatmul.mubr.f32.gmra.mrb[0].mxu0 %v1516
    %v2362 = vpop.f32.mrb[0].mxu0
    %v2363 = vadd.f32 0.0, %v2362
    %v2364 = vpop.f32.mrb[0].mxu0
    %2365 = vdwg.mxu0
    %v2366 = vmul.f32 %v2283, %v2283
    %v2367 = vmul.f32 %v2288, %v2288
    %v2368 = vsub.f32 %v2358, %v2366
    %v2369 = vsub.f32 %v2363, %v2367
    %2370 = vmatprep.subr.mxu0 0.0
    %2371 = vmatpush1.msra.mxu0 %v577
    %2372 = vmatprep.subr.mxu0 0.0
    %2373 = vmatpush1.msra.mxu0 %v582
    %2374 = vmatprep.subr.mxu0 0.0
    %2375 = vmatpush1.msra.mxu0 0.0
    %2376 = vmatprep.subr.mxu0 0.0
    %2377 = vmatpush1.msra.mxu0 0.0
    %2378 = vmatprep.subr.mxu0 0.0
    %2379 = vmatpush1.msra.mxu0 0.0
    %2380 = vmatprep.subr.mxu0 0.0
    %2381 = vmatpush1.msra.mxu0 0.0
    %2382 = vmatprep.subr.mxu0 0.0
    %2383 = vmatpush1.msra.mxu0 0.0
    %2384 = vmatprep.subr.mxu0 0.0
    %2385 = vmatpush1.msra.mxu0 0.0
    %2386 = vmatprep.subr.mxu0 0.0
    %2387 = vmatpush1.msra.mxu0 0.0
    %2388 = vmatprep.subr.mxu0 0.0
    %2389 = vmatpush1.msra.mxu0 0.0
    %2390 = vmatprep.subr.mxu0 0.0
    %2391 = vmatpush1.msra.mxu0 0.0
    %2392 = vmatprep.subr.mxu0 0.0
    %2393 = vmatpush1.msra.mxu0 0.0
    %2394 = vmatprep.subr.mxu0 0.0
    %2395 = vmatpush1.msra.mxu0 0.0
    %2396 = vmatprep.subr.mxu0 0.0
    %2397 = vmatpush1.msra.mxu0 0.0
    %2398 = vmatprep.subr.mxu0 0.0
    %2399 = vmatpush1.msra.mxu0 0.0
    %2400 = vmatprep.subr.mxu0 0.0
    %2401 = vmatpush1.msra.mxu0 0.0
    %2402 = vmatprep.subr.mxu0 0.0
    %2403 = vmatpush1.msra.mxu0 0.0
    %2404 = vmatprep.subr.mxu0 0.0
    %2405 = vmatpush1.msra.mxu0 0.0
    %2406 = vmatprep.subr.mxu0 0.0
    %2407 = vmatpush1.msra.mxu0 0.0
    %2408 = vmatprep.subr.mxu0 0.0
    %2409 = vmatpush1.msra.mxu0 0.0
    %2410 = vmatprep.subr.mxu0 0.0
    %2411 = vmatpush1.msra.mxu0 0.0
    %2412 = vmatprep.subr.mxu0 0.0
    %2413 = vmatpush1.msra.mxu0 0.0
    %2414 = vmatprep.subr.mxu0 0.0
    %2415 = vmatpush1.msra.mxu0 0.0
    %2416 = vmatprep.subr.mxu0 0.0
    %2417 = vmatpush1.msra.mxu0 0.0
    %2418 = vmatprep.subr.mxu0 0.0
    %2419 = vmatpush1.msra.mxu0 0.0
    %2420 = vmatprep.subr.mxu0 0.0
    %2421 = vmatpush1.msra.mxu0 0.0
    %2422 = vmatprep.subr.mxu0 0.0
    %2423 = vmatpush1.msra.mxu0 0.0
    %2424 = vmatprep.subr.mxu0 0.0
    %2425 = vmatpush1.msra.mxu0 0.0
    %2426 = vmatprep.subr.mxu0 0.0
    %2427 = vmatpush1.msra.mxu0 0.0
    %2428 = vmatprep.subr.mxu0 0.0
    %2429 = vmatpush1.msra.mxu0 0.0
    %2430 = vmatprep.subr.mxu0 0.0
    %2431 = vmatpush1.msra.mxu0 0.0
    %2432 = vmatprep.subr.mxu0 0.0
    %2433 = vmatpush1.msra.mxu0 0.0
    %2434 = vmatprep.mubr.f32.mxu0 0.0
    %2435 = vmatmul.mubr.f32.gmra.mrb[0].mxu0 %v1513
    %v2436 = vpop.f32.mrb[0].mxu0
    %v2437 = vadd.f32 0.0, %v2436
    %v2438 = vpop.f32.mrb[0].mxu0
    %2439 = vmatprep.mubr.f32.mxu0 0.0
    %2440 = vmatmul.mubr.f32.gmra.mrb[0].mxu0 %v1516
    %v2441 = vpop.f32.mrb[0].mxu0
    %v2442 = vadd.f32 0.0, %v2441
    %v2443 = vpop.f32.mrb[0].mxu0
    %2444 = vdwg.mxu0
    %v2445 = vmul.f32 %v2283, %v1585
    %v2446 = vmul.f32 %v2288, %v1590
    %v2447 = vsub.f32 %v2437, %v2445
    %v2448 = vsub.f32 %v2442, %v2446
    %v2449 = vmul.f32 %v2283, 2.0
    %v2450 = vmul.f32 %v2288, 2.0
    %v2451 = vmul.f32 %v2449, %v1585
    %v2452 = vmul.f32 %v2450, %v1590
    %v2453 = vadd.f32 %v2451, 0.0001
    %v2454 = vadd.f32 %v2452, 0.0001
    %v2455 = vmul.f32 %v2447, 2.0
    %v2456 = vmul.f32 %v2448, 2.0
    %v2457 = vadd.f32 %v2455, 0.0009
    %v2458 = vadd.f32 %v2456, 0.0009
    %v2459 = vmul.f32 %v2453, %v2457
    %v2460 = vmul.f32 %v2454, %v2458
    %v2461 = vadd.f32 %v2366, %v1668
    %v2462 = vadd.f32 %v2367, %v1669
    %v2463 = vadd.f32 %v2461, 0.0001
    %v2464 = vadd.f32 %v2462, 0.0001
    %v2465 = vadd.f32 %v2368, %v1670
    %v2466 = vadd.f32 %v2369, %v1671
    %v2467 = vadd.f32 %v2465, 0.0009
    %v2468 = vadd.f32 %v2466, 0.0009
    %v2469 = vmul.f32 %v2463, %v2467
    %v2470 = vmul.f32 %v2464, %v2468
    %v2471 = vrcp.pop %v2469
    %v2472 = vmul.f32 %v2459, %v2471
    %v2473 = vrcp.pop %v2470
    %v2474 = vmul.f32 %v2460, %v2473
    %v2475 = vsel %vm151, %v2472, 0.0
    %v2476 = vsel %vm151, %v2474, 0.0
    %v2477 = vadd.f32 %v2475, %v2476
    %2478 = vadd.xlane.f32.xlu0 %v2477
    %v2479 = vpop.xlane.xlu0 %2478
    %v2480 = vrot.slane %v2479, 4
    %v2481 = vadd.f32 %v2479, %v2480
    %v2482 = vrot.slane %v2481, 2
    %v2483 = vadd.f32 %v2481, %v2482
    %v2484 = vrot.slane %v2483, 1
    %v2485 = vadd.f32 %v2483, %v2484
    %s2486 = vtos %v2485
    %s2487 = sadd.f32 %s2486, 0.0
    %2488 = vmatprep.subr.mxu0 0.0
    %2489 = vmatpush1.msra.mxu0 %v840
    %2490 = vmatprep.subr.mxu0 0.0
    %2491 = vmatpush1.msra.mxu0 %v845
    %2492 = vmatprep.subr.mxu0 0.0
    %2493 = vmatpush1.msra.mxu0 0.0
    %2494 = vmatprep.subr.mxu0 0.0
    %2495 = vmatpush1.msra.mxu0 0.0
    %2496 = vmatprep.subr.mxu0 0.0
    %2497 = vmatpush1.msra.mxu0 0.0
    %2498 = vmatprep.subr.mxu0 0.0
    %2499 = vmatpush1.msra.mxu0 0.0
    %2500 = vmatprep.subr.mxu0 0.0
    %2501 = vmatpush1.msra.mxu0 0.0
    %2502 = vmatprep.subr.mxu0 0.0
    %2503 = vmatpush1.msra.mxu0 0.0
    %2504 = vmatprep.subr.mxu0 0.0
    %2505 = vmatpush1.msra.mxu0 0.0
    %2506 = vmatprep.subr.mxu0 0.0
    %2507 = vmatpush1.msra.mxu0 0.0
    %2508 = vmatprep.subr.mxu0 0.0
    %2509 = vmatpush1.msra.mxu0 0.0
    %2510 = vmatprep.subr.mxu0 0.0
    %2511 = vmatpush1.msra.mxu0 0.0
    %2512 = vmatprep.subr.mxu0 0.0
    %2513 = vmatpush1.msra.mxu0 0.0
    %2514 = vmatprep.subr.mxu0 0.0
    %2515 = vmatpush1.msra.mxu0 0.0
    %2516 = vmatprep.subr.mxu0 0.0
    %2517 = vmatpush1.msra.mxu0 0.0
    %2518 = vmatprep.subr.mxu0 0.0
    %2519 = vmatpush1.msra.mxu0 0.0
    %2520 = vmatprep.subr.mxu0 0.0
    %2521 = vmatpush1.msra.mxu0 0.0
    %2522 = vmatprep.subr.mxu0 0.0
    %2523 = vmatpush1.msra.mxu0 0.0
    %2524 = vmatprep.subr.mxu0 0.0
    %2525 = vmatpush1.msra.mxu0 0.0
    %2526 = vmatprep.subr.mxu0 0.0
    %2527 = vmatpush1.msra.mxu0 0.0
    %2528 = vmatprep.subr.mxu0 0.0
    %2529 = vmatpush1.msra.mxu0 0.0
    %2530 = vmatprep.subr.mxu0 0.0
    %2531 = vmatpush1.msra.mxu0 0.0
    %2532 = vmatprep.subr.mxu0 0.0
    %2533 = vmatpush1.msra.mxu0 0.0
    %2534 = vmatprep.subr.mxu0 0.0
    %2535 = vmatpush1.msra.mxu0 0.0
    %2536 = vmatprep.subr.mxu0 0.0
    %2537 = vmatpush1.msra.mxu0 0.0
    %2538 = vmatprep.subr.mxu0 0.0
    %2539 = vmatpush1.msra.mxu0 0.0
    %2540 = vmatprep.subr.mxu0 0.0
    %2541 = vmatpush1.msra.mxu0 0.0
    %2542 = vmatprep.subr.mxu0 0.0
    %2543 = vmatpush1.msra.mxu0 0.0
    %2544 = vmatprep.subr.mxu0 0.0
    %2545 = vmatpush1.msra.mxu0 0.0
    %2546 = vmatprep.subr.mxu0 0.0
    %2547 = vmatpush1.msra.mxu0 0.0
    %2548 = vmatprep.subr.mxu0 0.0
    %2549 = vmatpush1.msra.mxu0 0.0
    %2550 = vmatprep.subr.mxu0 0.0
    %2551 = vmatpush1.msra.mxu0 0.0
    %2552 = vmatprep.mubr.f32.mxu0 0.0
    %2553 = vmatmul.mubr.f32.gmra.mrb[0].mxu0 %v994
    %v2554 = vpop.f32.mrb[0].mxu0
    %v2555 = vadd.f32 0.0, %v2554
    %v2556 = vpop.f32.mrb[0].mxu0
    %2557 = vmatprep.mubr.f32.mxu0 0.0
    %2558 = vmatmul.mubr.f32.gmra.mrb[0].mxu0 %v997
    %v2559 = vpop.f32.mrb[0].mxu0
    %v2560 = vadd.f32 0.0, %v2559
    %v2561 = vpop.f32.mrb[0].mxu0
    %2562 = vdwg.mxu0
    %2563 = vmatprep.subr.mxu0 0.0
    %2564 = vmatpush1.msra.mxu0 %v965
    %2565 = vmatprep.subr.mxu0 0.0
    %2566 = vmatpush1.msra.mxu0 %v970
    %2567 = vmatprep.subr.mxu0 0.0
    %2568 = vmatpush1.msra.mxu0 0.0
    %2569 = vmatprep.subr.mxu0 0.0
    %2570 = vmatpush1.msra.mxu0 0.0
    %2571 = vmatprep.subr.mxu0 0.0
    %2572 = vmatpush1.msra.mxu0 0.0
    %2573 = vmatprep.subr.mxu0 0.0
    %2574 = vmatpush1.msra.mxu0 0.0
    %2575 = vmatprep.subr.mxu0 0.0
    %2576 = vmatpush1.msra.mxu0 0.0
    %2577 = vmatprep.subr.mxu0 0.0
    %2578 = vmatpush1.msra.mxu0 0.0
    %2579 = vmatprep.subr.mxu0 0.0
    %2580 = vmatpush1.msra.mxu0 0.0
    %2581 = vmatprep.subr.mxu0 0.0
    %2582 = vmatpush1.msra.mxu0 0.0
    %2583 = vmatprep.subr.mxu0 0.0
    %2584 = vmatpush1.msra.mxu0 0.0
    %2585 = vmatprep.subr.mxu0 0.0
    %2586 = vmatpush1.msra.mxu0 0.0
    %2587 = vmatprep.subr.mxu0 0.0
    %2588 = vmatpush1.msra.mxu0 0.0
    %2589 = vmatprep.subr.mxu0 0.0
    %2590 = vmatpush1.msra.mxu0 0.0
    %2591 = vmatprep.subr.mxu0 0.0
    %2592 = vmatpush1.msra.mxu0 0.0
    %2593 = vmatprep.subr.mxu0 0.0
    %2594 = vmatpush1.msra.mxu0 0.0
    %2595 = vmatprep.subr.mxu0 0.0
    %2596 = vmatpush1.msra.mxu0 0.0
    %2597 = vmatprep.subr.mxu0 0.0
    %2598 = vmatpush1.msra.mxu0 0.0
    %2599 = vmatprep.subr.mxu0 0.0
    %2600 = vmatpush1.msra.mxu0 0.0
    %2601 = vmatprep.subr.mxu0 0.0
    %2602 = vmatpush1.msra.mxu0 0.0
    %2603 = vmatprep.subr.mxu0 0.0
    %2604 = vmatpush1.msra.mxu0 0.0
    %2605 = vmatprep.subr.mxu0 0.0
    %2606 = vmatpush1.msra.mxu0 0.0
    %2607 = vmatprep.subr.mxu0 0.0
    %2608 = vmatpush1.msra.mxu0 0.0
    %2609 = vmatprep.subr.mxu0 0.0
    %2610 = vmatpush1.msra.mxu0 0.0
    %2611 = vmatprep.subr.mxu0 0.0
    %2612 = vmatpush1.msra.mxu0 0.0
    %2613 = vmatprep.subr.mxu0 0.0
    %2614 = vmatpush1.msra.mxu0 0.0
    %2615 = vmatprep.subr.mxu0 0.0
    %2616 = vmatpush1.msra.mxu0 0.0
    %2617 = vmatprep.subr.mxu0 0.0
    %2618 = vmatpush1.msra.mxu0 0.0
    %2619 = vmatprep.subr.mxu0 0.0
    %2620 = vmatpush1.msra.mxu0 0.0
    %2621 = vmatprep.subr.mxu0 0.0
    %2622 = vmatpush1.msra.mxu0 0.0
    %2623 = vmatprep.subr.mxu0 0.0
    %2624 = vmatpush1.msra.mxu0 0.0
    %2625 = vmatprep.subr.mxu0 0.0
    %2626 = vmatpush1.msra.mxu0 0.0
    %2627 = vmatprep.mubr.f32.mxu0 0.0
    %2628 = vmatmul.mubr.f32.gmra.mrb[0].mxu0 %v1075
    %v2629 = vpop.f32.mrb[0].mxu0
    %v2630 = vadd.f32 0.0, %v2629
    %v2631 = vpop.f32.mrb[0].mxu0
    %2632 = vmatprep.mubr.f32.mxu0 0.0
    %2633 = vmatmul.mubr.f32.gmra.mrb[0].mxu0 %v1078
    %v2634 = vpop.f32.mrb[0].mxu0
    %v2635 = vadd.f32 0.0, %v2634
    %v2636 = vpop.f32.mrb[0].mxu0
    %2637 = vdwg.mxu0
    %v2638 = vand.u32 2147483647, %v2555
    %v2639 = vand.u32 2147483647, %v2560
    %v2640 = vand.u32 2147483647, %v2630
    %v2641 = vand.u32 2147483647, %v2635
    %v2642 = vadd.f32 %v2638, %v2640
    %v2643 = vadd.f32 %v2639, %v2641
    %v2644 = vsel %vm151, %v2642, 0.0
    %v2645 = vsel %vm151, %v2643, 0.0
    %v2646 = vadd.f32 %v2644, %v2645
    %2647 = vadd.xlane.f32.xlu0 %v2646
    %v2648 = vpop.xlane.xlu0 %2647
    %v2649 = vrot.slane %v2648, 4
    %v2650 = vadd.f32 %v2648, %v2649
    %v2651 = vrot.slane %v2650, 2
    %v2652 = vadd.f32 %v2650, %v2651
    %v2653 = vrot.slane %v2652, 1
    %v2654 = vadd.f32 %v2652, %v2653
    %s2655 = vtos %v2654
    %s2656 = sadd.f32 %s1173, %s2655
    %2657 = vmatprep.subr.mxu0 0.0
    %2658 = vmatpush1.msra.mxu0 %v850
    %2659 = vmatprep.subr.mxu0 0.0
    %2660 = vmatpush1.msra.mxu0 %v855
    %2661 = vmatprep.subr.mxu0 0.0
    %2662 = vmatpush1.msra.mxu0 0.0
    %2663 = vmatprep.subr.mxu0 0.0
    %2664 = vmatpush1.msra.mxu0 0.0
    %2665 = vmatprep.subr.mxu0 0.0
    %2666 = vmatpush1.msra.mxu0 0.0
    %2667 = vmatprep.subr.mxu0 0.0
    %2668 = vmatpush1.msra.mxu0 0.0
    %2669 = vmatprep.subr.mxu0 0.0
    %2670 = vmatpush1.msra.mxu0 0.0
    %2671 = vmatprep.subr.mxu0 0.0
    %2672 = vmatpush1.msra.mxu0 0.0
    %2673 = vmatprep.subr.mxu0 0.0
    %2674 = vmatpush1.msra.mxu0 0.0
    %2675 = vmatprep.subr.mxu0 0.0
    %2676 = vmatpush1.msra.mxu0 0.0
    %2677 = vmatprep.subr.mxu0 0.0
    %2678 = vmatpush1.msra.mxu0 0.0
    %2679 = vmatprep.subr.mxu0 0.0
    %2680 = vmatpush1.msra.mxu0 0.0
    %2681 = vmatprep.subr.mxu0 0.0
    %2682 = vmatpush1.msra.mxu0 0.0
    %2683 = vmatprep.subr.mxu0 0.0
    %2684 = vmatpush1.msra.mxu0 0.0
    %2685 = vmatprep.subr.mxu0 0.0
    %2686 = vmatpush1.msra.mxu0 0.0
    %2687 = vmatprep.subr.mxu0 0.0
    %2688 = vmatpush1.msra.mxu0 0.0
    %2689 = vmatprep.subr.mxu0 0.0
    %2690 = vmatpush1.msra.mxu0 0.0
    %2691 = vmatprep.subr.mxu0 0.0
    %2692 = vmatpush1.msra.mxu0 0.0
    %2693 = vmatprep.subr.mxu0 0.0
    %2694 = vmatpush1.msra.mxu0 0.0
    %2695 = vmatprep.subr.mxu0 0.0
    %2696 = vmatpush1.msra.mxu0 0.0
    %2697 = vmatprep.subr.mxu0 0.0
    %2698 = vmatpush1.msra.mxu0 0.0
    %2699 = vmatprep.subr.mxu0 0.0
    %2700 = vmatpush1.msra.mxu0 0.0
    %2701 = vmatprep.subr.mxu0 0.0
    %2702 = vmatpush1.msra.mxu0 0.0
    %2703 = vmatprep.subr.mxu0 0.0
    %2704 = vmatpush1.msra.mxu0 0.0
    %2705 = vmatprep.subr.mxu0 0.0
    %2706 = vmatpush1.msra.mxu0 0.0
    %2707 = vmatprep.subr.mxu0 0.0
    %2708 = vmatpush1.msra.mxu0 0.0
    %2709 = vmatprep.subr.mxu0 0.0
    %2710 = vmatpush1.msra.mxu0 0.0
    %2711 = vmatprep.subr.mxu0 0.0
    %2712 = vmatpush1.msra.mxu0 0.0
    %2713 = vmatprep.subr.mxu0 0.0
    %2714 = vmatpush1.msra.mxu0 0.0
    %2715 = vmatprep.subr.mxu0 0.0
    %2716 = vmatpush1.msra.mxu0 0.0
    %2717 = vmatprep.subr.mxu0 0.0
    %2718 = vmatpush1.msra.mxu0 0.0
    %2719 = vmatprep.subr.mxu0 0.0
    %2720 = vmatpush1.msra.mxu0 0.0
    %2721 = vmatprep.mubr.f32.mxu0 0.0
    %2722 = vmatmul.mubr.f32.gmra.mrb[0].mxu0 %v994
    %v2723 = vpop.f32.mrb[0].mxu0
    %v2724 = vadd.f32 0.0, %v2723
    %v2725 = vpop.f32.mrb[0].mxu0
    %2726 = vmatprep.mubr.f32.mxu0 0.0
    %2727 = vmatmul.mubr.f32.gmra.mrb[0].mxu0 %v997
    %v2728 = vpop.f32.mrb[0].mxu0
    %v2729 = vadd.f32 0.0, %v2728
    %v2730 = vpop.f32.mrb[0].mxu0
    %2731 = vdwg.mxu0
    %2732 = vmatprep.subr.mxu0 0.0
    %2733 = vmatpush1.msra.mxu0 %v975
    %2734 = vmatprep.subr.mxu0 0.0
    %2735 = vmatpush1.msra.mxu0 %v980
    %2736 = vmatprep.subr.mxu0 0.0
    %2737 = vmatpush1.msra.mxu0 0.0
    %2738 = vmatprep.subr.mxu0 0.0
    %2739 = vmatpush1.msra.mxu0 0.0
    %2740 = vmatprep.subr.mxu0 0.0
    %2741 = vmatpush1.msra.mxu0 0.0
    %2742 = vmatprep.subr.mxu0 0.0
    %2743 = vmatpush1.msra.mxu0 0.0
    %2744 = vmatprep.subr.mxu0 0.0
    %2745 = vmatpush1.msra.mxu0 0.0
    %2746 = vmatprep.subr.mxu0 0.0
    %2747 = vmatpush1.msra.mxu0 0.0
    %2748 = vmatprep.subr.mxu0 0.0
    %2749 = vmatpush1.msra.mxu0 0.0
    %2750 = vmatprep.subr.mxu0 0.0
    %2751 = vmatpush1.msra.mxu0 0.0
    %2752 = vmatprep.subr.mxu0 0.0
    %2753 = vmatpush1.msra.mxu0 0.0
    %2754 = vmatprep.subr.mxu0 0.0
    %2755 = vmatpush1.msra.mxu0 0.0
    %2756 = vmatprep.subr.mxu0 0.0
    %2757 = vmatpush1.msra.mxu0 0.0
    %2758 = vmatprep.subr.mxu0 0.0
    %2759 = vmatpush1.msra.mxu0 0.0
    %2760 = vmatprep.subr.mxu0 0.0
    %2761 = vmatpush1.msra.mxu0 0.0
    %2762 = vmatprep.subr.mxu0 0.0
    %2763 = vmatpush1.msra.mxu0 0.0
    %2764 = vmatprep.subr.mxu0 0.0
    %2765 = vmatpush1.msra.mxu0 0.0
    %2766 = vmatprep.subr.mxu0 0.0
    %2767 = vmatpush1.msra.mxu0 0.0
    %2768 = vmatprep.subr.mxu0 0.0
    %2769 = vmatpush1.msra.mxu0 0.0
    %2770 = vmatprep.subr.mxu0 0.0
    %2771 = vmatpush1.msra.mxu0 0.0
    %2772 = vmatprep.subr.mxu0 0.0
    %2773 = vmatpush1.msra.mxu0 0.0
    %2774 = vmatprep.subr.mxu0 0.0
    %2775 = vmatpush1.msra.mxu0 0.0
    %2776 = vmatprep.subr.mxu0 0.0
    %2777 = vmatpush1.msra.mxu0 0.0
    %2778 = vmatprep.subr.mxu0 0.0
    %2779 = vmatpush1.msra.mxu0 0.0
    %2780 = vmatprep.subr.mxu0 0.0
    %2781 = vmatpush1.msra.mxu0 0.0
    %2782 = vmatprep.subr.mxu0 0.0
    %2783 = vmatpush1.msra.mxu0 0.0
    %2784 = vmatprep.subr.mxu0 0.0
    %2785 = vmatpush1.msra.mxu0 0.0
    %2786 = vmatprep.subr.mxu0 0.0
    %2787 = vmatpush1.msra.mxu0 0.0
    %2788 = vmatprep.subr.mxu0 0.0
    %2789 = vmatpush1.msra.mxu0 0.0
    %2790 = vmatprep.subr.mxu0 0.0
    %2791 = vmatpush1.msra.mxu0 0.0
    %2792 = vmatprep.subr.mxu0 0.0
    %2793 = vmatpush1.msra.mxu0 0.0
    %2794 = vmatprep.subr.mxu0 0.0
    %2795 = vmatpush1.msra.mxu0 0.0
    %2796 = vmatprep.mubr.f32.mxu0 0.0
    %2797 = vmatmul.mubr.f32.gmra.mrb[0].mxu0 %v1075
    %v2798 = vpop.f32.mrb[0].mxu0
    %v2799 = vadd.f32 0.0, %v2798
    %v2800 = vpop.f32.mrb[0].mxu0
    %2801 = vmatprep.mubr.f32.mxu0 0.0
    %2802 = vmatmul.mubr.f32.gmra.mrb[0].mxu0 %v1078
    %v2803 = vpop.f32.mrb[0].mxu0
    %v2804 = vadd.f32 0.0, %v2803
    %v2805 = vpop.f32.mrb[0].mxu0
    %2806 = vdwg.mxu0
    %v2807 = vand.u32 2147483647, %v2724
    %v2808 = vand.u32 2147483647, %v2729
    %v2809 = vand.u32 2147483647, %v2799
    %v2810 = vand.u32 2147483647, %v2804
    %v2811 = vadd.f32 %v2807, %v2809
    %v2812 = vadd.f32 %v2808, %v2810
    %v2813 = vsel %vm151, %v2811, 0.0
    %v2814 = vsel %vm151, %v2812, 0.0
    %v2815 = vadd.f32 %v2813, %v2814
    %2816 = vadd.xlane.f32.xlu0 %v2815
    %v2817 = vpop.xlane.xlu0 %2816
    %v2818 = vrot.slane %v2817, 4
    %v2819 = vadd.f32 %v2817, %v2818
    %v2820 = vrot.slane %v2819, 2
    %v2821 = vadd.f32 %v2819, %v2820
    %v2822 = vrot.slane %v2821, 1
    %v2823 = vadd.f32 %v2821, %v2822
    %s2824 = vtos %v2823
    %s2825 = sadd.f32 %s1342, %s2824
    %2826 = vmatprep.subr.mxu0 0.0
    %2827 = vmatpush1.msra.mxu0 %v860
    %2828 = vmatprep.subr.mxu0 0.0
    %2829 = vmatpush1.msra.mxu0 %v865
    %2830 = vmatprep.subr.mxu0 0.0
    %2831 = vmatpush1.msra.mxu0 0.0
    %2832 = vmatprep.subr.mxu0 0.0
    %2833 = vmatpush1.msra.mxu0 0.0
    %2834 = vmatprep.subr.mxu0 0.0
    %2835 = vmatpush1.msra.mxu0 0.0
    %2836 = vmatprep.subr.mxu0 0.0
    %2837 = vmatpush1.msra.mxu0 0.0
    %2838 = vmatprep.subr.mxu0 0.0
    %2839 = vmatpush1.msra.mxu0 0.0
    %2840 = vmatprep.subr.mxu0 0.0
    %2841 = vmatpush1.msra.mxu0 0.0
    %2842 = vmatprep.subr.mxu0 0.0
    %2843 = vmatpush1.msra.mxu0 0.0
    %2844 = vmatprep.subr.mxu0 0.0
    %2845 = vmatpush1.msra.mxu0 0.0
    %2846 = vmatprep.subr.mxu0 0.0
    %2847 = vmatpush1.msra.mxu0 0.0
    %2848 = vmatprep.subr.mxu0 0.0
    %2849 = vmatpush1.msra.mxu0 0.0
    %2850 = vmatprep.subr.mxu0 0.0
    %2851 = vmatpush1.msra.mxu0 0.0
    %2852 = vmatprep.subr.mxu0 0.0
    %2853 = vmatpush1.msra.mxu0 0.0
    %2854 = vmatprep.subr.mxu0 0.0
    %2855 = vmatpush1.msra.mxu0 0.0
    %2856 = vmatprep.subr.mxu0 0.0
    %2857 = vmatpush1.msra.mxu0 0.0
    %2858 = vmatprep.subr.mxu0 0.0
    %2859 = vmatpush1.msra.mxu0 0.0
    %2860 = vmatprep.subr.mxu0 0.0
    %2861 = vmatpush1.msra.mxu0 0.0
    %2862 = vmatprep.subr.mxu0 0.0
    %2863 = vmatpush1.msra.mxu0 0.0
    %2864 = vmatprep.subr.mxu0 0.0
    %2865 = vmatpush1.msra.mxu0 0.0
    %2866 = vmatprep.subr.mxu0 0.0
    %2867 = vmatpush1.msra.mxu0 0.0
    %2868 = vmatprep.subr.mxu0 0.0
    %2869 = vmatpush1.msra.mxu0 0.0
    %2870 = vmatprep.subr.mxu0 0.0
    %2871 = vmatpush1.msra.mxu0 0.0
    %2872 = vmatprep.subr.mxu0 0.0
    %2873 = vmatpush1.msra.mxu0 0.0
    %2874 = vmatprep.subr.mxu0 0.0
    %2875 = vmatpush1.msra.mxu0 0.0
    %2876 = vmatprep.subr.mxu0 0.0
    %2877 = vmatpush1.msra.mxu0 0.0
    %2878 = vmatprep.subr.mxu0 0.0
    %2879 = vmatpush1.msra.mxu0 0.0
    %2880 = vmatprep.subr.mxu0 0.0
    %2881 = vmatpush1.msra.mxu0 0.0
    %2882 = vmatprep.subr.mxu0 0.0
    %2883 = vmatpush1.msra.mxu0 0.0
    %2884 = vmatprep.subr.mxu0 0.0
    %2885 = vmatpush1.msra.mxu0 0.0
    %2886 = vmatprep.subr.mxu0 0.0
    %2887 = vmatpush1.msra.mxu0 0.0
    %2888 = vmatprep.subr.mxu0 0.0
    %2889 = vmatpush1.msra.mxu0 0.0
    %2890 = vmatprep.mubr.f32.mxu0 0.0
    %2891 = vmatmul.mubr.f32.gmra.mrb[0].mxu0 %v994
    %v2892 = vpop.f32.mrb[0].mxu0
    %v2893 = vadd.f32 0.0, %v2892
    %v2894 = vpop.f32.mrb[0].mxu0
    %2895 = vmatprep.mubr.f32.mxu0 0.0
    %2896 = vmatmul.mubr.f32.gmra.mrb[0].mxu0 %v997
    %v2897 = vpop.f32.mrb[0].mxu0
    %v2898 = vadd.f32 0.0, %v2897
    %v2899 = vpop.f32.mrb[0].mxu0
    %2900 = vdwg.mxu0
    %2901 = vmatprep.subr.mxu0 0.0
    %2902 = vmatpush1.msra.mxu0 %v985
    %2903 = vmatprep.subr.mxu0 0.0
    %2904 = vmatpush1.msra.mxu0 %v990
    %2905 = vmatprep.subr.mxu0 0.0
    %2906 = vmatpush1.msra.mxu0 0.0
    %2907 = vmatprep.subr.mxu0 0.0
    %2908 = vmatpush1.msra.mxu0 0.0
    %2909 = vmatprep.subr.mxu0 0.0
    %2910 = vmatpush1.msra.mxu0 0.0
    %2911 = vmatprep.subr.mxu0 0.0
    %2912 = vmatpush1.msra.mxu0 0.0
    %2913 = vmatprep.subr.mxu0 0.0
    %2914 = vmatpush1.msra.mxu0 0.0
    %2915 = vmatprep.subr.mxu0 0.0
    %2916 = vmatpush1.msra.mxu0 0.0
    %2917 = vmatprep.subr.mxu0 0.0
    %2918 = vmatpush1.msra.mxu0 0.0
    %2919 = vmatprep.subr.mxu0 0.0
    %2920 = vmatpush1.msra.mxu0 0.0
    %2921 = vmatprep.subr.mxu0 0.0
    %2922 = vmatpush1.msra.mxu0 0.0
    %2923 = vmatprep.subr.mxu0 0.0
    %2924 = vmatpush1.msra.mxu0 0.0
    %2925 = vmatprep.subr.mxu0 0.0
    %2926 = vmatpush1.msra.mxu0 0.0
    %2927 = vmatprep.subr.mxu0 0.0
    %2928 = vmatpush1.msra.mxu0 0.0
    %2929 = vmatprep.subr.mxu0 0.0
    %2930 = vmatpush1.msra.mxu0 0.0
    %2931 = vmatprep.subr.mxu0 0.0
    %2932 = vmatpush1.msra.mxu0 0.0
    %2933 = vmatprep.subr.mxu0 0.0
    %2934 = vmatpush1.msra.mxu0 0.0
    %2935 = vmatprep.subr.mxu0 0.0
    %2936 = vmatpush1.msra.mxu0 0.0
    %2937 = vmatprep.subr.mxu0 0.0
    %2938 = vmatpush1.msra.mxu0 0.0
    %2939 = vmatprep.subr.mxu0 0.0
    %2940 = vmatpush1.msra.mxu0 0.0
    %2941 = vmatprep.subr.mxu0 0.0
    %2942 = vmatpush1.msra.mxu0 0.0
    %2943 = vmatprep.subr.mxu0 0.0
    %2944 = vmatpush1.msra.mxu0 0.0
    %2945 = vmatprep.subr.mxu0 0.0
    %2946 = vmatpush1.msra.mxu0 0.0
    %2947 = vmatprep.subr.mxu0 0.0
    %2948 = vmatpush1.msra.mxu0 0.0
    %2949 = vmatprep.subr.mxu0 0.0
    %2950 = vmatpush1.msra.mxu0 0.0
    %2951 = vmatprep.subr.mxu0 0.0
    %2952 = vmatpush1.msra.mxu0 0.0
    %2953 = vmatprep.subr.mxu0 0.0
    %2954 = vmatpush1.msra.mxu0 0.0
    %2955 = vmatprep.subr.mxu0 0.0
    %2956 = vmatpush1.msra.mxu0 0.0
    %2957 = vmatprep.subr.mxu0 0.0
    %2958 = vmatpush1.msra.mxu0 0.0
    %2959 = vmatprep.subr.mxu0 0.0
    %2960 = vmatpush1.msra.mxu0 0.0
    %2961 = vmatprep.subr.mxu0 0.0
    %2962 = vmatpush1.msra.mxu0 0.0
    %2963 = vmatprep.subr.mxu0 0.0
    %2964 = vmatpush1.msra.mxu0 0.0
    %2965 = vmatprep.mubr.f32.mxu0 0.0
    %2966 = vmatmul.mubr.f32.gmra.mrb[0].mxu0 %v1075
    %v2967 = vpop.f32.mrb[0].mxu0
    %v2968 = vadd.f32 0.0, %v2967
    %v2969 = vpop.f32.mrb[0].mxu0
    %2970 = vmatprep.mubr.f32.mxu0 0.0
    %2971 = vmatmul.mubr.f32.gmra.mrb[0].mxu0 %v1078
    %v2972 = vpop.f32.mrb[0].mxu0
    %v2973 = vadd.f32 0.0, %v2972
    %v2974 = vpop.f32.mrb[0].mxu0
    %2975 = vdwg.mxu0
    %v2976 = vand.u32 2147483647, %v2893
    %v2977 = vand.u32 2147483647, %v2898
    %v2978 = vand.u32 2147483647, %v2968
    %v2979 = vand.u32 2147483647, %v2973
    %v2980 = vadd.f32 %v2976, %v2978
    %v2981 = vadd.f32 %v2977, %v2979
    %v2982 = vsel %vm151, %v2980, 0.0
    %v2983 = vsel %vm151, %v2981, 0.0
    %v2984 = vadd.f32 %v2982, %v2983
    %2985 = vadd.xlane.f32.xlu0 %v2984
    %v2986 = vpop.xlane.xlu0 %2985
    %v2987 = vrot.slane %v2986, 4
    %v2988 = vadd.f32 %v2986, %v2987
    %v2989 = vrot.slane %v2988, 2
    %v2990 = vadd.f32 %v2988, %v2989
    %v2991 = vrot.slane %v2990, 1
    %v2992 = vadd.f32 %v2990, %v2991
    %s2993 = vtos %v2992
    %s2994 = sadd.f32 %s1511, %s2993
    %2995 = vmatprep.subr.mxu0 0.0
    %2996 = vmatpush1.msra.mxu0 %v587
    %2997 = vmatprep.subr.mxu0 0.0
    %2998 = vmatpush1.msra.mxu0 %v592
    %2999 = vmatprep.subr.mxu0 0.0
    %3000 = vmatpush1.msra.mxu0 0.0
    %3001 = vmatprep.subr.mxu0 0.0
    %3002 = vmatpush1.msra.mxu0 0.0
    %3003 = vmatprep.subr.mxu0 0.0
    %3004 = vmatpush1.msra.mxu0 0.0
    %3005 = vmatprep.subr.mxu0 0.0
    %3006 = vmatpush1.msra.mxu0 0.0
    %3007 = vmatprep.subr.mxu0 0.0
    %3008 = vmatpush1.msra.mxu0 0.0
    %3009 = vmatprep.subr.mxu0 0.0
    %3010 = vmatpush1.msra.mxu0 0.0
    %3011 = vmatprep.subr.mxu0 0.0
    %3012 = vmatpush1.msra.mxu0 0.0
    %3013 = vmatprep.subr.mxu0 0.0
    %3014 = vmatpush1.msra.mxu0 0.0
    %3015 = vmatprep.subr.mxu0 0.0
    %3016 = vmatpush1.msra.mxu0 0.0
    %3017 = vmatprep.subr.mxu0 0.0
    %3018 = vmatpush1.msra.mxu0 0.0
    %3019 = vmatprep.subr.mxu0 0.0
    %3020 = vmatpush1.msra.mxu0 0.0
    %3021 = vmatprep.subr.mxu0 0.0
    %3022 = vmatpush1.msra.mxu0 0.0
    %3023 = vmatprep.subr.mxu0 0.0
    %3024 = vmatpush1.msra.mxu0 0.0
    %3025 = vmatprep.subr.mxu0 0.0
    %3026 = vmatpush1.msra.mxu0 0.0
    %3027 = vmatprep.subr.mxu0 0.0
    %3028 = vmatpush1.msra.mxu0 0.0
    %3029 = vmatprep.subr.mxu0 0.0
    %3030 = vmatpush1.msra.mxu0 0.0
    %3031 = vmatprep.subr.mxu0 0.0
    %3032 = vmatpush1.msra.mxu0 0.0
    %3033 = vmatprep.subr.mxu0 0.0
    %3034 = vmatpush1.msra.mxu0 0.0
    %3035 = vmatprep.subr.mxu0 0.0
    %3036 = vmatpush1.msra.mxu0 0.0
    %3037 = vmatprep.subr.mxu0 0.0
    %3038 = vmatpush1.msra.mxu0 0.0
    %3039 = vmatprep.subr.mxu0 0.0
    %3040 = vmatpush1.msra.mxu0 0.0
    %3041 = vmatprep.subr.mxu0 0.0
    %3042 = vmatpush1.msra.mxu0 0.0
    %3043 = vmatprep.subr.mxu0 0.0
    %3044 = vmatpush1.msra.mxu0 0.0
    %3045 = vmatprep.subr.mxu0 0.0
    %3046 = vmatpush1.msra.mxu0 0.0
    %3047 = vmatprep.subr.mxu0 0.0
    %3048 = vmatpush1.msra.mxu0 0.0
    %3049 = vmatprep.subr.mxu0 0.0
    %3050 = vmatpush1.msra.mxu0 0.0
    %3051 = vmatprep.subr.mxu0 0.0
    %3052 = vmatpush1.msra.mxu0 0.0
    %3053 = vmatprep.subr.mxu0 0.0
    %3054 = vmatpush1.msra.mxu0 0.0
    %3055 = vmatprep.subr.mxu0 0.0
    %3056 = vmatpush1.msra.mxu0 0.0
    %3057 = vmatprep.subr.mxu0 0.0
    %3058 = vmatpush1.msra.mxu0 0.0
    %3059 = vmatprep.mubr.f32.mxu0 0.0
    %3060 = vmatmul.mubr.f32.gmra.mrb[0].mxu0 %v1513
    %v3061 = vpop.f32.mrb[0].mxu0
    %v3062 = vadd.f32 0.0, %v3061
    %v3063 = vpop.f32.mrb[0].mxu0
    %3064 = vmatprep.mubr.f32.mxu0 0.0
    %3065 = vmatmul.mubr.f32.gmra.mrb[0].mxu0 %v1516
    %v3066 = vpop.f32.mrb[0].mxu0
    %v3067 = vadd.f32 0.0, %v3066
    %v3068 = vpop.f32.mrb[0].mxu0
    %3069 = vdwg.mxu0
    %3070 = vmatprep.subr.mxu0 0.0
    %3071 = vmatpush1.msra.mxu0 %v597
    %3072 = vmatprep.subr.mxu0 0.0
    %3073 = vmatpush1.msra.mxu0 %v602
    %3074 = vmatprep.subr.mxu0 0.0
    %3075 = vmatpush1.msra.mxu0 0.0
    %3076 = vmatprep.subr.mxu0 0.0
    %3077 = vmatpush1.msra.mxu0 0.0
    %3078 = vmatprep.subr.mxu0 0.0
    %3079 = vmatpush1.msra.mxu0 0.0
    %3080 = vmatprep.subr.mxu0 0.0
    %3081 = vmatpush1.msra.mxu0 0.0
    %3082 = vmatprep.subr.mxu0 0.0
    %3083 = vmatpush1.msra.mxu0 0.0
    %3084 = vmatprep.subr.mxu0 0.0
    %3085 = vmatpush1.msra.mxu0 0.0
    %3086 = vmatprep.subr.mxu0 0.0
    %3087 = vmatpush1.msra.mxu0 0.0
    %3088 = vmatprep.subr.mxu0 0.0
    %3089 = vmatpush1.msra.mxu0 0.0
    %3090 = vmatprep.subr.mxu0 0.0
    %3091 = vmatpush1.msra.mxu0 0.0
    %3092 = vmatprep.subr.mxu0 0.0
    %3093 = vmatpush1.msra.mxu0 0.0
    %3094 = vmatprep.subr.mxu0 0.0
    %3095 = vmatpush1.msra.mxu0 0.0
    %3096 = vmatprep.subr.mxu0 0.0
    %3097 = vmatpush1.msra.mxu0 0.0
    %3098 = vmatprep.subr.mxu0 0.0
    %3099 = vmatpush1.msra.mxu0 0.0
    %3100 = vmatprep.subr.mxu0 0.0
    %3101 = vmatpush1.msra.mxu0 0.0
    %3102 = vmatprep.subr.mxu0 0.0
    %3103 = vmatpush1.msra.mxu0 0.0
    %3104 = vmatprep.subr.mxu0 0.0
    %3105 = vmatpush1.msra.mxu0 0.0
    %3106 = vmatprep.subr.mxu0 0.0
    %3107 = vmatpush1.msra.mxu0 0.0
    %3108 = vmatprep.subr.mxu0 0.0
    %3109 = vmatpush1.msra.mxu0 0.0
    %3110 = vmatprep.subr.mxu0 0.0
    %3111 = vmatpush1.msra.mxu0 0.0
    %3112 = vmatprep.subr.mxu0 0.0
    %3113 = vmatpush1.msra.mxu0 0.0
    %3114 = vmatprep.subr.mxu0 0.0
    %3115 = vmatpush1.msra.mxu0 0.0
    %3116 = vmatprep.subr.mxu0 0.0
    %3117 = vmatpush1.msra.mxu0 0.0
    %3118 = vmatprep.subr.mxu0 0.0
    %3119 = vmatpush1.msra.mxu0 0.0
    %3120 = vmatprep.subr.mxu0 0.0
    %3121 = vmatpush1.msra.mxu0 0.0
    %3122 = vmatprep.subr.mxu0 0.0
    %3123 = vmatpush1.msra.mxu0 0.0
    %3124 = vmatprep.subr.mxu0 0.0
    %3125 = vmatpush1.msra.mxu0 0.0
    %3126 = vmatprep.subr.mxu0 0.0
    %3127 = vmatpush1.msra.mxu0 0.0
    %3128 = vmatprep.subr.mxu0 0.0
    %3129 = vmatpush1.msra.mxu0 0.0
    %3130 = vmatprep.subr.mxu0 0.0
    %3131 = vmatpush1.msra.mxu0 0.0
    %3132 = vmatprep.subr.mxu0 0.0
    %3133 = vmatpush1.msra.mxu0 0.0
    %3134 = vmatprep.mubr.f32.mxu0 0.0
    %3135 = vmatmul.mubr.f32.gmra.mrb[0].mxu0 %v1513
    %v3136 = vpop.f32.mrb[0].mxu0
    %v3137 = vadd.f32 0.0, %v3136
    %v3138 = vpop.f32.mrb[0].mxu0
    %3139 = vmatprep.mubr.f32.mxu0 0.0
    %3140 = vmatmul.mubr.f32.gmra.mrb[0].mxu0 %v1516
    %v3141 = vpop.f32.mrb[0].mxu0
    %v3142 = vadd.f32 0.0, %v3141
    %v3143 = vpop.f32.mrb[0].mxu0
    %3144 = vdwg.mxu0
    %v3145 = vmul.f32 %v3062, %v3062
    %v3146 = vmul.f32 %v3067, %v3067
    %v3147 = vsub.f32 %v3137, %v3145
    %v3148 = vsub.f32 %v3142, %v3146
    %3149 = vmatprep.subr.mxu0 0.0
    %3150 = vmatpush1.msra.mxu0 %v607
    %3151 = vmatprep.subr.mxu0 0.0
    %3152 = vmatpush1.msra.mxu0 %v612
    %3153 = vmatprep.subr.mxu0 0.0
    %3154 = vmatpush1.msra.mxu0 0.0
    %3155 = vmatprep.subr.mxu0 0.0
    %3156 = vmatpush1.msra.mxu0 0.0
    %3157 = vmatprep.subr.mxu0 0.0
    %3158 = vmatpush1.msra.mxu0 0.0
    %3159 = vmatprep.subr.mxu0 0.0
    %3160 = vmatpush1.msra.mxu0 0.0
    %3161 = vmatprep.subr.mxu0 0.0
    %3162 = vmatpush1.msra.mxu0 0.0
    %3163 = vmatprep.subr.mxu0 0.0
    %3164 = vmatpush1.msra.mxu0 0.0
    %3165 = vmatprep.subr.mxu0 0.0
    %3166 = vmatpush1.msra.mxu0 0.0
    %3167 = vmatprep.subr.mxu0 0.0
    %3168 = vmatpush1.msra.mxu0 0.0
    %3169 = vmatprep.subr.mxu0 0.0
    %3170 = vmatpush1.msra.mxu0 0.0
    %3171 = vmatprep.subr.mxu0 0.0
    %3172 = vmatpush1.msra.mxu0 0.0
    %3173 = vmatprep.subr.mxu0 0.0
    %3174 = vmatpush1.msra.mxu0 0.0
    %3175 = vmatprep.subr.mxu0 0.0
    %3176 = vmatpush1.msra.mxu0 0.0
    %3177 = vmatprep.subr.mxu0 0.0
    %3178 = vmatpush1.msra.mxu0 0.0
    %3179 = vmatprep.subr.mxu0 0.0
    %3180 = vmatpush1.msra.mxu0 0.0
    %3181 = vmatprep.subr.mxu0 0.0
    %3182 = vmatpush1.msra.mxu0 0.0
    %3183 = vmatprep.subr.mxu0 0.0
    %3184 = vmatpush1.msra.mxu0 0.0
    %3185 = vmatprep.subr.mxu0 0.0
    %3186 = vmatpush1.msra.mxu0 0.0
    %3187 = vmatprep.subr.mxu0 0.0
    %3188 = vmatpush1.msra.mxu0 0.0
    %3189 = vmatprep.subr.mxu0 0.0
    %3190 = vmatpush1.msra.mxu0 0.0
    %3191 = vmatprep.subr.mxu0 0.0
    %3192 = vmatpush1.msra.mxu0 0.0
    %3193 = vmatprep.subr.mxu0 0.0
    %3194 = vmatpush1.msra.mxu0 0.0
    %3195 = vmatprep.subr.mxu0 0.0
    %3196 = vmatpush1.msra.mxu0 0.0
    %3197 = vmatprep.subr.mxu0 0.0
    %3198 = vmatpush1.msra.mxu0 0.0
    %3199 = vmatprep.subr.mxu0 0.0
    %3200 = vmatpush1.msra.mxu0 0.0
    %3201 = vmatprep.subr.mxu0 0.0
    %3202 = vmatpush1.msra.mxu0 0.0
    %3203 = vmatprep.subr.mxu0 0.0
    %3204 = vmatpush1.msra.mxu0 0.0
    %3205 = vmatprep.subr.mxu0 0.0
    %3206 = vmatpush1.msra.mxu0 0.0
    %3207 = vmatprep.subr.mxu0 0.0
    %3208 = vmatpush1.msra.mxu0 0.0
    %3209 = vmatprep.subr.mxu0 0.0
    %3210 = vmatpush1.msra.mxu0 0.0
    %3211 = vmatprep.subr.mxu0 0.0
    %3212 = vmatpush1.msra.mxu0 0.0
    %3213 = vmatprep.mubr.f32.mxu0 0.0
    %3214 = vmatmul.mubr.f32.gmra.mrb[0].mxu0 %v1513
    %v3215 = vpop.f32.mrb[0].mxu0
    %v3216 = vadd.f32 0.0, %v3215
    %v3217 = vpop.f32.mrb[0].mxu0
    %3218 = vmatprep.mubr.f32.mxu0 0.0
    %3219 = vmatmul.mubr.f32.gmra.mrb[0].mxu0 %v1516
    %v3220 = vpop.f32.mrb[0].mxu0
    %v3221 = vadd.f32 0.0, %v3220
    %v3222 = vpop.f32.mrb[0].mxu0
    %3223 = vdwg.mxu0
    %3224 = vmatprep.subr.mxu0 0.0
    %3225 = vmatpush1.msra.mxu0 %v617
    %3226 = vmatprep.subr.mxu0 0.0
    %3227 = vmatpush1.msra.mxu0 %v622
    %3228 = vmatprep.subr.mxu0 0.0
    %3229 = vmatpush1.msra.mxu0 0.0
    %3230 = vmatprep.subr.mxu0 0.0
    %3231 = vmatpush1.msra.mxu0 0.0
    %3232 = vmatprep.subr.mxu0 0.0
    %3233 = vmatpush1.msra.mxu0 0.0
    %3234 = vmatprep.subr.mxu0 0.0
    %3235 = vmatpush1.msra.mxu0 0.0
    %3236 = vmatprep.subr.mxu0 0.0
    %3237 = vmatpush1.msra.mxu0 0.0
    %3238 = vmatprep.subr.mxu0 0.0
    %3239 = vmatpush1.msra.mxu0 0.0
    %3240 = vmatprep.subr.mxu0 0.0
    %3241 = vmatpush1.msra.mxu0 0.0
    %3242 = vmatprep.subr.mxu0 0.0
    %3243 = vmatpush1.msra.mxu0 0.0
    %3244 = vmatprep.subr.mxu0 0.0
    %3245 = vmatpush1.msra.mxu0 0.0
    %3246 = vmatprep.subr.mxu0 0.0
    %3247 = vmatpush1.msra.mxu0 0.0
    %3248 = vmatprep.subr.mxu0 0.0
    %3249 = vmatpush1.msra.mxu0 0.0
    %3250 = vmatprep.subr.mxu0 0.0
    %3251 = vmatpush1.msra.mxu0 0.0
    %3252 = vmatprep.subr.mxu0 0.0
    %3253 = vmatpush1.msra.mxu0 0.0
    %3254 = vmatprep.subr.mxu0 0.0
    %3255 = vmatpush1.msra.mxu0 0.0
    %3256 = vmatprep.subr.mxu0 0.0
    %3257 = vmatpush1.msra.mxu0 0.0
    %3258 = vmatprep.subr.mxu0 0.0
    %3259 = vmatpush1.msra.mxu0 0.0
    %3260 = vmatprep.subr.mxu0 0.0
    %3261 = vmatpush1.msra.mxu0 0.0
    %3262 = vmatprep.subr.mxu0 0.0
    %3263 = vmatpush1.msra.mxu0 0.0
    %3264 = vmatprep.subr.mxu0 0.0
    %3265 = vmatpush1.msra.mxu0 0.0
    %3266 = vmatprep.subr.mxu0 0.0
    %3267 = vmatpush1.msra.mxu0 0.0
    %3268 = vmatprep.subr.mxu0 0.0
    %3269 = vmatpush1.msra.mxu0 0.0
    %3270 = vmatprep.subr.mxu0 0.0
    %3271 = vmatpush1.msra.mxu0 0.0
    %3272 = vmatprep.subr.mxu0 0.0
    %3273 = vmatpush1.msra.mxu0 0.0
    %3274 = vmatprep.subr.mxu0 0.0
    %3275 = vmatpush1.msra.mxu0 0.0
    %3276 = vmatprep.subr.mxu0 0.0
    %3277 = vmatpush1.msra.mxu0 0.0
    %3278 = vmatprep.subr.mxu0 0.0
    %3279 = vmatpush1.msra.mxu0 0.0
    %3280 = vmatprep.subr.mxu0 0.0
    %3281 = vmatpush1.msra.mxu0 0.0
    %3282 = vmatprep.subr.mxu0 0.0
    %3283 = vmatpush1.msra.mxu0 0.0
    %3284 = vmatprep.subr.mxu0 0.0
    %3285 = vmatpush1.msra.mxu0 0.0
    %3286 = vmatprep.subr.mxu0 0.0
    %3287 = vmatpush1.msra.mxu0 0.0
    %3288 = vmatprep.mubr.f32.mxu0 0.0
    %3289 = vmatmul.mubr.f32.gmra.mrb[0].mxu0 %v1513
    %v3290 = vpop.f32.mrb[0].mxu0
    %v3291 = vadd.f32 0.0, %v3290
    %v3292 = vpop.f32.mrb[0].mxu0
    %3293 = vmatprep.mubr.f32.mxu0 0.0
    %3294 = vmatmul.mubr.f32.gmra.mrb[0].mxu0 %v1516
    %v3295 = vpop.f32.mrb[0].mxu0
    %v3296 = vadd.f32 0.0, %v3295
    %v3297 = vpop.f32.mrb[0].mxu0
    %3298 = vdwg.mxu0
    %v3299 = vmul.f32 %v3216, %v3216
    %v3300 = vmul.f32 %v3221, %v3221
    %v3301 = vsub.f32 %v3291, %v3299
    %v3302 = vsub.f32 %v3296, %v3300
    %3303 = vmatprep.subr.mxu0 0.0
    %3304 = vmatpush1.msra.mxu0 %v627
    %3305 = vmatprep.subr.mxu0 0.0
    %3306 = vmatpush1.msra.mxu0 %v632
    %3307 = vmatprep.subr.mxu0 0.0
    %3308 = vmatpush1.msra.mxu0 0.0
    %3309 = vmatprep.subr.mxu0 0.0
    %3310 = vmatpush1.msra.mxu0 0.0
    %3311 = vmatprep.subr.mxu0 0.0
    %3312 = vmatpush1.msra.mxu0 0.0
    %3313 = vmatprep.subr.mxu0 0.0
    %3314 = vmatpush1.msra.mxu0 0.0
    %3315 = vmatprep.subr.mxu0 0.0
    %3316 = vmatpush1.msra.mxu0 0.0
    %3317 = vmatprep.subr.mxu0 0.0
    %3318 = vmatpush1.msra.mxu0 0.0
    %3319 = vmatprep.subr.mxu0 0.0
    %3320 = vmatpush1.msra.mxu0 0.0
    %3321 = vmatprep.subr.mxu0 0.0
    %3322 = vmatpush1.msra.mxu0 0.0
    %3323 = vmatprep.subr.mxu0 0.0
    %3324 = vmatpush1.msra.mxu0 0.0
    %3325 = vmatprep.subr.mxu0 0.0
    %3326 = vmatpush1.msra.mxu0 0.0
    %3327 = vmatprep.subr.mxu0 0.0
    %3328 = vmatpush1.msra.mxu0 0.0
    %3329 = vmatprep.subr.mxu0 0.0
    %3330 = vmatpush1.msra.mxu0 0.0
    %3331 = vmatprep.subr.mxu0 0.0
    %3332 = vmatpush1.msra.mxu0 0.0
    %3333 = vmatprep.subr.mxu0 0.0
    %3334 = vmatpush1.msra.mxu0 0.0
    %3335 = vmatprep.subr.mxu0 0.0
    %3336 = vmatpush1.msra.mxu0 0.0
    %3337 = vmatprep.subr.mxu0 0.0
    %3338 = vmatpush1.msra.mxu0 0.0
    %3339 = vmatprep.subr.mxu0 0.0
    %3340 = vmatpush1.msra.mxu0 0.0
    %3341 = vmatprep.subr.mxu0 0.0
    %3342 = vmatpush1.msra.mxu0 0.0
    %3343 = vmatprep.subr.mxu0 0.0
    %3344 = vmatpush1.msra.mxu0 0.0
    %3345 = vmatprep.subr.mxu0 0.0
    %3346 = vmatpush1.msra.mxu0 0.0
    %3347 = vmatprep.subr.mxu0 0.0
    %3348 = vmatpush1.msra.mxu0 0.0
    %3349 = vmatprep.subr.mxu0 0.0
    %3350 = vmatpush1.msra.mxu0 0.0
    %3351 = vmatprep.subr.mxu0 0.0
    %3352 = vmatpush1.msra.mxu0 0.0
    %3353 = vmatprep.subr.mxu0 0.0
    %3354 = vmatpush1.msra.mxu0 0.0
    %3355 = vmatprep.subr.mxu0 0.0
    %3356 = vmatpush1.msra.mxu0 0.0
    %3357 = vmatprep.subr.mxu0 0.0
    %3358 = vmatpush1.msra.mxu0 0.0
    %3359 = vmatprep.subr.mxu0 0.0
    %3360 = vmatpush1.msra.mxu0 0.0
    %3361 = vmatprep.subr.mxu0 0.0
    %3362 = vmatpush1.msra.mxu0 0.0
    %3363 = vmatprep.subr.mxu0 0.0
    %3364 = vmatpush1.msra.mxu0 0.0
    %3365 = vmatprep.subr.mxu0 0.0
    %3366 = vmatpush1.msra.mxu0 0.0
    %3367 = vmatprep.mubr.f32.mxu0 0.0
    %3368 = vmatmul.mubr.f32.gmra.mrb[0].mxu0 %v1513
    %v3369 = vpop.f32.mrb[0].mxu0
    %v3370 = vadd.f32 0.0, %v3369
    %v3371 = vpop.f32.mrb[0].mxu0
    %3372 = vmatprep.mubr.f32.mxu0 0.0
    %3373 = vmatmul.mubr.f32.gmra.mrb[0].mxu0 %v1516
    %v3374 = vpop.f32.mrb[0].mxu0
    %v3375 = vadd.f32 0.0, %v3374
    %v3376 = vpop.f32.mrb[0].mxu0
    %3377 = vdwg.mxu0
    %v3378 = vmul.f32 %v3216, %v3062
    %v3379 = vmul.f32 %v3221, %v3067
    %v3380 = vsub.f32 %v3370, %v3378
    %v3381 = vsub.f32 %v3375, %v3379
    %v3382 = vmul.f32 %v3216, 2.0
    %v3383 = vmul.f32 %v3221, 2.0
    %v3384 = vmul.f32 %v3382, %v3062
    %v3385 = vmul.f32 %v3383, %v3067
    %v3386 = vadd.f32 %v3384, 0.0001
    %v3387 = vadd.f32 %v3385, 0.0001
    %v3388 = vmul.f32 %v3380, 2.0
    %v3389 = vmul.f32 %v3381, 2.0
    %v3390 = vadd.f32 %v3388, 0.0009
    %v3391 = vadd.f32 %v3389, 0.0009
    %v3392 = vmul.f32 %v3386, %v3390
    %v3393 = vmul.f32 %v3387, %v3391
    %v3394 = vadd.f32 %v3299, %v3145
    %v3395 = vadd.f32 %v3300, %v3146
    %v3396 = vadd.f32 %v3394, 0.0001
    %v3397 = vadd.f32 %v3395, 0.0001
    %v3398 = vadd.f32 %v3301, %v3147
    %v3399 = vadd.f32 %v3302, %v3148
    %v3400 = vadd.f32 %v3398, 0.0009
    %v3401 = vadd.f32 %v3399, 0.0009
    %v3402 = vmul.f32 %v3396, %v3400
    %v3403 = vmul.f32 %v3397, %v3401
    %v3404 = vrcp.pop %v3402
    %v3405 = vmul.f32 %v3392, %v3404
    %v3406 = vrcp.pop %v3403
    %v3407 = vmul.f32 %v3393, %v3406
    %v3408 = vsel %vm151, %v3405, 0.0
    %v3409 = vsel %vm151, %v3407, 0.0
    %v3410 = vadd.f32 %v3408, %v3409
    %3411 = vadd.xlane.f32.xlu0 %v3410
    %v3412 = vpop.xlane.xlu0 %3411
    %v3413 = vrot.slane %v3412, 4
    %v3414 = vadd.f32 %v3412, %v3413
    %v3415 = vrot.slane %v3414, 2
    %v3416 = vadd.f32 %v3414, %v3415
    %v3417 = vrot.slane %v3416, 1
    %v3418 = vadd.f32 %v3416, %v3417
    %s3419 = vtos %v3418
    %s3420 = sadd.f32 %s1943, %s3419
    %3421 = vmatprep.subr.mxu0 0.0
    %3422 = vmatpush1.msra.mxu0 %v637
    %3423 = vmatprep.subr.mxu0 0.0
    %3424 = vmatpush1.msra.mxu0 %v642
    %3425 = vmatprep.subr.mxu0 0.0
    %3426 = vmatpush1.msra.mxu0 0.0
    %3427 = vmatprep.subr.mxu0 0.0
    %3428 = vmatpush1.msra.mxu0 0.0
    %3429 = vmatprep.subr.mxu0 0.0
    %3430 = vmatpush1.msra.mxu0 0.0
    %3431 = vmatprep.subr.mxu0 0.0
    %3432 = vmatpush1.msra.mxu0 0.0
    %3433 = vmatprep.subr.mxu0 0.0
    %3434 = vmatpush1.msra.mxu0 0.0
    %3435 = vmatprep.subr.mxu0 0.0
    %3436 = vmatpush1.msra.mxu0 0.0
    %3437 = vmatprep.subr.mxu0 0.0
    %3438 = vmatpush1.msra.mxu0 0.0
    %3439 = vmatprep.subr.mxu0 0.0
    %3440 = vmatpush1.msra.mxu0 0.0
    %3441 = vmatprep.subr.mxu0 0.0
    %3442 = vmatpush1.msra.mxu0 0.0
    %3443 = vmatprep.subr.mxu0 0.0
    %3444 = vmatpush1.msra.mxu0 0.0
    %3445 = vmatprep.subr.mxu0 0.0
    %3446 = vmatpush1.msra.mxu0 0.0
    %3447 = vmatprep.subr.mxu0 0.0
    %3448 = vmatpush1.msra.mxu0 0.0
    %3449 = vmatprep.subr.mxu0 0.0
    %3450 = vmatpush1.msra.mxu0 0.0
    %3451 = vmatprep.subr.mxu0 0.0
    %3452 = vmatpush1.msra.mxu0 0.0
    %3453 = vmatprep.subr.mxu0 0.0
    %3454 = vmatpush1.msra.mxu0 0.0
    %3455 = vmatprep.subr.mxu0 0.0
    %3456 = vmatpush1.msra.mxu0 0.0
    %3457 = vmatprep.subr.mxu0 0.0
    %3458 = vmatpush1.msra.mxu0 0.0
    %3459 = vmatprep.subr.mxu0 0.0
    %3460 = vmatpush1.msra.mxu0 0.0
    %3461 = vmatprep.subr.mxu0 0.0
    %3462 = vmatpush1.msra.mxu0 0.0
    %3463 = vmatprep.subr.mxu0 0.0
    %3464 = vmatpush1.msra.mxu0 0.0
    %3465 = vmatprep.subr.mxu0 0.0
    %3466 = vmatpush1.msra.mxu0 0.0
    %3467 = vmatprep.subr.mxu0 0.0
    %3468 = vmatpush1.msra.mxu0 0.0
    %3469 = vmatprep.subr.mxu0 0.0
    %3470 = vmatpush1.msra.mxu0 0.0
    %3471 = vmatprep.subr.mxu0 0.0
    %3472 = vmatpush1.msra.mxu0 0.0
    %3473 = vmatprep.subr.mxu0 0.0
    %3474 = vmatpush1.msra.mxu0 0.0
    %3475 = vmatprep.subr.mxu0 0.0
    %3476 = vmatpush1.msra.mxu0 0.0
    %3477 = vmatprep.subr.mxu0 0.0
    %3478 = vmatpush1.msra.mxu0 0.0
    %3479 = vmatprep.subr.mxu0 0.0
    %3480 = vmatpush1.msra.mxu0 0.0
    %3481 = vmatprep.subr.mxu0 0.0
    %3482 = vmatpush1.msra.mxu0 0.0
    %3483 = vmatprep.subr.mxu0 0.0
    %3484 = vmatpush1.msra.mxu0 0.0
    %3485 = vmatprep.mubr.f32.mxu0 0.0
    %3486 = vmatmul.mubr.f32.gmra.mrb[0].mxu0 %v1513
    %v3487 = vpop.f32.mrb[0].mxu0
    %v3488 = vadd.f32 0.0, %v3487
    %v3489 = vpop.f32.mrb[0].mxu0
    %3490 = vmatprep.mubr.f32.mxu0 0.0
    %3491 = vmatmul.mubr.f32.gmra.mrb[0].mxu0 %v1516
    %v3492 = vpop.f32.mrb[0].mxu0
    %v3493 = vadd.f32 0.0, %v3492
    %v3494 = vpop.f32.mrb[0].mxu0
    %3495 = vdwg.mxu0
    %3496 = vmatprep.subr.mxu0 0.0
    %3497 = vmatpush1.msra.mxu0 %v647
    %3498 = vmatprep.subr.mxu0 0.0
    %3499 = vmatpush1.msra.mxu0 %v652
    %3500 = vmatprep.subr.mxu0 0.0
    %3501 = vmatpush1.msra.mxu0 0.0
    %3502 = vmatprep.subr.mxu0 0.0
    %3503 = vmatpush1.msra.mxu0 0.0
    %3504 = vmatprep.subr.mxu0 0.0
    %3505 = vmatpush1.msra.mxu0 0.0
    %3506 = vmatprep.subr.mxu0 0.0
    %3507 = vmatpush1.msra.mxu0 0.0
    %3508 = vmatprep.subr.mxu0 0.0
    %3509 = vmatpush1.msra.mxu0 0.0
    %3510 = vmatprep.subr.mxu0 0.0
    %3511 = vmatpush1.msra.mxu0 0.0
    %3512 = vmatprep.subr.mxu0 0.0
    %3513 = vmatpush1.msra.mxu0 0.0
    %3514 = vmatprep.subr.mxu0 0.0
    %3515 = vmatpush1.msra.mxu0 0.0
    %3516 = vmatprep.subr.mxu0 0.0
    %3517 = vmatpush1.msra.mxu0 0.0
    %3518 = vmatprep.subr.mxu0 0.0
    %3519 = vmatpush1.msra.mxu0 0.0
    %3520 = vmatprep.subr.mxu0 0.0
    %3521 = vmatpush1.msra.mxu0 0.0
    %3522 = vmatprep.subr.mxu0 0.0
    %3523 = vmatpush1.msra.mxu0 0.0
    %3524 = vmatprep.subr.mxu0 0.0
    %3525 = vmatpush1.msra.mxu0 0.0
    %3526 = vmatprep.subr.mxu0 0.0
    %3527 = vmatpush1.msra.mxu0 0.0
    %3528 = vmatprep.subr.mxu0 0.0
    %3529 = vmatpush1.msra.mxu0 0.0
    %3530 = vmatprep.subr.mxu0 0.0
    %3531 = vmatpush1.msra.mxu0 0.0
    %3532 = vmatprep.subr.mxu0 0.0
    %3533 = vmatpush1.msra.mxu0 0.0
    %3534 = vmatprep.subr.mxu0 0.0
    %3535 = vmatpush1.msra.mxu0 0.0
    %3536 = vmatprep.subr.mxu0 0.0
    %3537 = vmatpush1.msra.mxu0 0.0
    %3538 = vmatprep.subr.mxu0 0.0
    %3539 = vmatpush1.msra.mxu0 0.0
    %3540 = vmatprep.subr.mxu0 0.0
    %3541 = vmatpush1.msra.mxu0 0.0
    %3542 = vmatprep.subr.mxu0 0.0
    %3543 = vmatpush1.msra.mxu0 0.0
    %3544 = vmatprep.subr.mxu0 0.0
    %3545 = vmatpush1.msra.mxu0 0.0
    %3546 = vmatprep.subr.mxu0 0.0
    %3547 = vmatpush1.msra.mxu0 0.0
    %3548 = vmatprep.subr.mxu0 0.0
    %3549 = vmatpush1.msra.mxu0 0.0
    %3550 = vmatprep.subr.mxu0 0.0
    %3551 = vmatpush1.msra.mxu0 0.0
    %3552 = vmatprep.subr.mxu0 0.0
    %3553 = vmatpush1.msra.mxu0 0.0
    %3554 = vmatprep.subr.mxu0 0.0
    %3555 = vmatpush1.msra.mxu0 0.0
    %3556 = vmatprep.subr.mxu0 0.0
    %3557 = vmatpush1.msra.mxu0 0.0
    %3558 = vmatprep.subr.mxu0 0.0
    %3559 = vmatpush1.msra.mxu0 0.0
    %3560 = vmatprep.mubr.f32.mxu0 0.0
    %3561 = vmatmul.mubr.f32.gmra.mrb[0].mxu0 %v1513
    %v3562 = vpop.f32.mrb[0].mxu0
    %v3563 = vadd.f32 0.0, %v3562
    %v3564 = vpop.f32.mrb[0].mxu0
    %3565 = vmatprep.mubr.f32.mxu0 0.0
    %3566 = vmatmul.mubr.f32.gmra.mrb[0].mxu0 %v1516
    %v3567 = vpop.f32.mrb[0].mxu0
    %v3568 = vadd.f32 0.0, %v3567
    %v3569 = vpop.f32.mrb[0].mxu0
    %3570 = vdwg.mxu0
    %v3571 = vmul.f32 %v3488, %v3488
    %v3572 = vmul.f32 %v3493, %v3493
    %v3573 = vsub.f32 %v3563, %v3571
    %v3574 = vsub.f32 %v3568, %v3572
    %3575 = vmatprep.subr.mxu0 0.0
    %3576 = vmatpush1.msra.mxu0 %v657
    %3577 = vmatprep.subr.mxu0 0.0
    %3578 = vmatpush1.msra.mxu0 %v662
    %3579 = vmatprep.subr.mxu0 0.0
    %3580 = vmatpush1.msra.mxu0 0.0
    %3581 = vmatprep.subr.mxu0 0.0
    %3582 = vmatpush1.msra.mxu0 0.0
    %3583 = vmatprep.subr.mxu0 0.0
    %3584 = vmatpush1.msra.mxu0 0.0
    %3585 = vmatprep.subr.mxu0 0.0
    %3586 = vmatpush1.msra.mxu0 0.0
    %3587 = vmatprep.subr.mxu0 0.0
    %3588 = vmatpush1.msra.mxu0 0.0
    %3589 = vmatprep.subr.mxu0 0.0
    %3590 = vmatpush1.msra.mxu0 0.0
    %3591 = vmatprep.subr.mxu0 0.0
    %3592 = vmatpush1.msra.mxu0 0.0
    %3593 = vmatprep.subr.mxu0 0.0
    %3594 = vmatpush1.msra.mxu0 0.0
    %3595 = vmatprep.subr.mxu0 0.0
    %3596 = vmatpush1.msra.mxu0 0.0
    %3597 = vmatprep.subr.mxu0 0.0
    %3598 = vmatpush1.msra.mxu0 0.0
    %3599 = vmatprep.subr.mxu0 0.0
    %3600 = vmatpush1.msra.mxu0 0.0
    %3601 = vmatprep.subr.mxu0 0.0
    %3602 = vmatpush1.msra.mxu0 0.0
    %3603 = vmatprep.subr.mxu0 0.0
    %3604 = vmatpush1.msra.mxu0 0.0
    %3605 = vmatprep.subr.mxu0 0.0
    %3606 = vmatpush1.msra.mxu0 0.0
    %3607 = vmatprep.subr.mxu0 0.0
    %3608 = vmatpush1.msra.mxu0 0.0
    %3609 = vmatprep.subr.mxu0 0.0
    %3610 = vmatpush1.msra.mxu0 0.0
    %3611 = vmatprep.subr.mxu0 0.0
    %3612 = vmatpush1.msra.mxu0 0.0
    %3613 = vmatprep.subr.mxu0 0.0
    %3614 = vmatpush1.msra.mxu0 0.0
    %3615 = vmatprep.subr.mxu0 0.0
    %3616 = vmatpush1.msra.mxu0 0.0
    %3617 = vmatprep.subr.mxu0 0.0
    %3618 = vmatpush1.msra.mxu0 0.0
    %3619 = vmatprep.subr.mxu0 0.0
    %3620 = vmatpush1.msra.mxu0 0.0
    %3621 = vmatprep.subr.mxu0 0.0
    %3622 = vmatpush1.msra.mxu0 0.0
    %3623 = vmatprep.subr.mxu0 0.0
    %3624 = vmatpush1.msra.mxu0 0.0
    %3625 = vmatprep.subr.mxu0 0.0
    %3626 = vmatpush1.msra.mxu0 0.0
    %3627 = vmatprep.subr.mxu0 0.0
    %3628 = vmatpush1.msra.mxu0 0.0
    %3629 = vmatprep.subr.mxu0 0.0
    %3630 = vmatpush1.msra.mxu0 0.0
    %3631 = vmatprep.subr.mxu0 0.0
    %3632 = vmatpush1.msra.mxu0 0.0
    %3633 = vmatprep.subr.mxu0 0.0
    %3634 = vmatpush1.msra.mxu0 0.0
    %3635 = vmatprep.subr.mxu0 0.0
    %3636 = vmatpush1.msra.mxu0 0.0
    %3637 = vmatprep.subr.mxu0 0.0
    %3638 = vmatpush1.msra.mxu0 0.0
    %3639 = vmatprep.mubr.f32.mxu0 0.0
    %3640 = vmatmul.mubr.f32.gmra.mrb[0].mxu0 %v1513
    %v3641 = vpop.f32.mrb[0].mxu0
    %v3642 = vadd.f32 0.0, %v3641
    %v3643 = vpop.f32.mrb[0].mxu0
    %3644 = vmatprep.mubr.f32.mxu0 0.0
    %3645 = vmatmul.mubr.f32.gmra.mrb[0].mxu0 %v1516
    %v3646 = vpop.f32.mrb[0].mxu0
    %v3647 = vadd.f32 0.0, %v3646
    %v3648 = vpop.f32.mrb[0].mxu0
    %3649 = vdwg.mxu0
    %v3650 = vmul.f32 %v3488, %v3062
    %v3651 = vmul.f32 %v3493, %v3067
    %v3652 = vsub.f32 %v3642, %v3650
    %v3653 = vsub.f32 %v3647, %v3651
    %v3654 = vmul.f32 %v3488, 2.0
    %v3655 = vmul.f32 %v3493, 2.0
    %v3656 = vmul.f32 %v3654, %v3062
    %v3657 = vmul.f32 %v3655, %v3067
    %v3658 = vadd.f32 %v3656, 0.0001
    %v3659 = vadd.f32 %v3657, 0.0001
    %v3660 = vmul.f32 %v3652, 2.0
    %v3661 = vmul.f32 %v3653, 2.0
    %v3662 = vadd.f32 %v3660, 0.0009
    %v3663 = vadd.f32 %v3661, 0.0009
    %v3664 = vmul.f32 %v3658, %v3662
    %v3665 = vmul.f32 %v3659, %v3663
    %v3666 = vadd.f32 %v3571, %v3145
    %v3667 = vadd.f32 %v3572, %v3146
    %v3668 = vadd.f32 %v3666, 0.0001
    %v3669 = vadd.f32 %v3667, 0.0001
    %v3670 = vadd.f32 %v3573, %v3147
    %v3671 = vadd.f32 %v3574, %v3148
    %v3672 = vadd.f32 %v3670, 0.0009
    %v3673 = vadd.f32 %v3671, 0.0009
    %v3674 = vmul.f32 %v3668, %v3672
    %v3675 = vmul.f32 %v3669, %v3673
    %v3676 = vrcp.pop %v3674
    %v3677 = vmul.f32 %v3664, %v3676
    %v3678 = vrcp.pop %v3675
    %v3679 = vmul.f32 %v3665, %v3678
    %v3680 = vsel %vm151, %v3677, 0.0
    %v3681 = vsel %vm151, %v3679, 0.0
    %v3682 = vadd.f32 %v3680, %v3681
    %3683 = vadd.xlane.f32.xlu0 %v3682
    %v3684 = vpop.xlane.xlu0 %3683
    %v3685 = vrot.slane %v3684, 4
    %v3686 = vadd.f32 %v3684, %v3685
    %v3687 = vrot.slane %v3686, 2
    %v3688 = vadd.f32 %v3686, %v3687
    %v3689 = vrot.slane %v3688, 1
    %v3690 = vadd.f32 %v3688, %v3689
    %s3691 = vtos %v3690
    %s3692 = sadd.f32 %s2215, %s3691
    %3693 = vmatprep.subr.mxu0 0.0
    %3694 = vmatpush1.msra.mxu0 %v667
    %3695 = vmatprep.subr.mxu0 0.0
    %3696 = vmatpush1.msra.mxu0 %v672
    %3697 = vmatprep.subr.mxu0 0.0
    %3698 = vmatpush1.msra.mxu0 0.0
    %3699 = vmatprep.subr.mxu0 0.0
    %3700 = vmatpush1.msra.mxu0 0.0
    %3701 = vmatprep.subr.mxu0 0.0
    %3702 = vmatpush1.msra.mxu0 0.0
    %3703 = vmatprep.subr.mxu0 0.0
    %3704 = vmatpush1.msra.mxu0 0.0
    %3705 = vmatprep.subr.mxu0 0.0
    %3706 = vmatpush1.msra.mxu0 0.0
    %3707 = vmatprep.subr.mxu0 0.0
    %3708 = vmatpush1.msra.mxu0 0.0
    %3709 = vmatprep.subr.mxu0 0.0
    %3710 = vmatpush1.msra.mxu0 0.0
    %3711 = vmatprep.subr.mxu0 0.0
    %3712 = vmatpush1.msra.mxu0 0.0
    %3713 = vmatprep.subr.mxu0 0.0
    %3714 = vmatpush1.msra.mxu0 0.0
    %3715 = vmatprep.subr.mxu0 0.0
    %3716 = vmatpush1.msra.mxu0 0.0
    %3717 = vmatprep.subr.mxu0 0.0
    %3718 = vmatpush1.msra.mxu0 0.0
    %3719 = vmatprep.subr.mxu0 0.0
    %3720 = vmatpush1.msra.mxu0 0.0
    %3721 = vmatprep.subr.mxu0 0.0
    %3722 = vmatpush1.msra.mxu0 0.0
    %3723 = vmatprep.subr.mxu0 0.0
    %3724 = vmatpush1.msra.mxu0 0.0
    %3725 = vmatprep.subr.mxu0 0.0
    %3726 = vmatpush1.msra.mxu0 0.0
    %3727 = vmatprep.subr.mxu0 0.0
    %3728 = vmatpush1.msra.mxu0 0.0
    %3729 = vmatprep.subr.mxu0 0.0
    %3730 = vmatpush1.msra.mxu0 0.0
    %3731 = vmatprep.subr.mxu0 0.0
    %3732 = vmatpush1.msra.mxu0 0.0
    %3733 = vmatprep.subr.mxu0 0.0
    %3734 = vmatpush1.msra.mxu0 0.0
    %3735 = vmatprep.subr.mxu0 0.0
    %3736 = vmatpush1.msra.mxu0 0.0
    %3737 = vmatprep.subr.mxu0 0.0
    %3738 = vmatpush1.msra.mxu0 0.0
    %3739 = vmatprep.subr.mxu0 0.0
    %3740 = vmatpush1.msra.mxu0 0.0
    %3741 = vmatprep.subr.mxu0 0.0
    %3742 = vmatpush1.msra.mxu0 0.0
    %3743 = vmatprep.subr.mxu0 0.0
    %3744 = vmatpush1.msra.mxu0 0.0
    %3745 = vmatprep.subr.mxu0 0.0
    %3746 = vmatpush1.msra.mxu0 0.0
    %3747 = vmatprep.subr.mxu0 0.0
    %3748 = vmatpush1.msra.mxu0 0.0
    %3749 = vmatprep.subr.mxu0 0.0
    %3750 = vmatpush1.msra.mxu0 0.0
    %3751 = vmatprep.subr.mxu0 0.0
    %3752 = vmatpush1.msra.mxu0 0.0
    %3753 = vmatprep.subr.mxu0 0.0
    %3754 = vmatpush1.msra.mxu0 0.0
    %3755 = vmatprep.subr.mxu0 0.0
    %3756 = vmatpush1.msra.mxu0 0.0
    %3757 = vmatprep.mubr.f32.mxu0 0.0
    %3758 = vmatmul.mubr.f32.gmra.mrb[0].mxu0 %v1513
    %v3759 = vpop.f32.mrb[0].mxu0
    %v3760 = vadd.f32 0.0, %v3759
    %v3761 = vpop.f32.mrb[0].mxu0
    %3762 = vmatprep.mubr.f32.mxu0 0.0
    %3763 = vmatmul.mubr.f32.gmra.mrb[0].mxu0 %v1516
    %v3764 = vpop.f32.mrb[0].mxu0
    %v3765 = vadd.f32 0.0, %v3764
    %v3766 = vpop.f32.mrb[0].mxu0
    %3767 = vdwg.mxu0
    %3768 = vmatprep.subr.mxu0 0.0
    %3769 = vmatpush1.msra.mxu0 %v677
    %3770 = vmatprep.subr.mxu0 0.0
    %3771 = vmatpush1.msra.mxu0 %v682
    %3772 = vmatprep.subr.mxu0 0.0
    %3773 = vmatpush1.msra.mxu0 0.0
    %3774 = vmatprep.subr.mxu0 0.0
    %3775 = vmatpush1.msra.mxu0 0.0
    %3776 = vmatprep.subr.mxu0 0.0
    %3777 = vmatpush1.msra.mxu0 0.0
    %3778 = vmatprep.subr.mxu0 0.0
    %3779 = vmatpush1.msra.mxu0 0.0
    %3780 = vmatprep.subr.mxu0 0.0
    %3781 = vmatpush1.msra.mxu0 0.0
    %3782 = vmatprep.subr.mxu0 0.0
    %3783 = vmatpush1.msra.mxu0 0.0
    %3784 = vmatprep.subr.mxu0 0.0
    %3785 = vmatpush1.msra.mxu0 0.0
    %3786 = vmatprep.subr.mxu0 0.0
    %3787 = vmatpush1.msra.mxu0 0.0
    %3788 = vmatprep.subr.mxu0 0.0
    %3789 = vmatpush1.msra.mxu0 0.0
    %3790 = vmatprep.subr.mxu0 0.0
    %3791 = vmatpush1.msra.mxu0 0.0
    %3792 = vmatprep.subr.mxu0 0.0
    %3793 = vmatpush1.msra.mxu0 0.0
    %3794 = vmatprep.subr.mxu0 0.0
    %3795 = vmatpush1.msra.mxu0 0.0
    %3796 = vmatprep.subr.mxu0 0.0
    %3797 = vmatpush1.msra.mxu0 0.0
    %3798 = vmatprep.subr.mxu0 0.0
    %3799 = vmatpush1.msra.mxu0 0.0
    %3800 = vmatprep.subr.mxu0 0.0
    %3801 = vmatpush1.msra.mxu0 0.0
    %3802 = vmatprep.subr.mxu0 0.0
    %3803 = vmatpush1.msra.mxu0 0.0
    %3804 = vmatprep.subr.mxu0 0.0
    %3805 = vmatpush1.msra.mxu0 0.0
    %3806 = vmatprep.subr.mxu0 0.0
    %3807 = vmatpush1.msra.mxu0 0.0
    %3808 = vmatprep.subr.mxu0 0.0
    %3809 = vmatpush1.msra.mxu0 0.0
    %3810 = vmatprep.subr.mxu0 0.0
    %3811 = vmatpush1.msra.mxu0 0.0
    %3812 = vmatprep.subr.mxu0 0.0
    %3813 = vmatpush1.msra.mxu0 0.0
    %3814 = vmatprep.subr.mxu0 0.0
    %3815 = vmatpush1.msra.mxu0 0.0
    %3816 = vmatprep.subr.mxu0 0.0
    %3817 = vmatpush1.msra.mxu0 0.0
    %3818 = vmatprep.subr.mxu0 0.0
    %3819 = vmatpush1.msra.mxu0 0.0
    %3820 = vmatprep.subr.mxu0 0.0
    %3821 = vmatpush1.msra.mxu0 0.0
    %3822 = vmatprep.subr.mxu0 0.0
    %3823 = vmatpush1.msra.mxu0 0.0
    %3824 = vmatprep.subr.mxu0 0.0
    %3825 = vmatpush1.msra.mxu0 0.0
    %3826 = vmatprep.subr.mxu0 0.0
    %3827 = vmatpush1.msra.mxu0 0.0
    %3828 = vmatprep.subr.mxu0 0.0
    %3829 = vmatpush1.msra.mxu0 0.0
    %3830 = vmatprep.subr.mxu0 0.0
    %3831 = vmatpush1.msra.mxu0 0.0
    %3832 = vmatprep.mubr.f32.mxu0 0.0
    %3833 = vmatmul.mubr.f32.gmra.mrb[0].mxu0 %v1513
    %v3834 = vpop.f32.mrb[0].mxu0
    %v3835 = vadd.f32 0.0, %v3834
    %v3836 = vpop.f32.mrb[0].mxu0
    %3837 = vmatprep.mubr.f32.mxu0 0.0
    %3838 = vmatmul.mubr.f32.gmra.mrb[0].mxu0 %v1516
    %v3839 = vpop.f32.mrb[0].mxu0
    %v3840 = vadd.f32 0.0, %v3839
    %v3841 = vpop.f32.mrb[0].mxu0
    %3842 = vdwg.mxu0
    %v3843 = vmul.f32 %v3760, %v3760
    %v3844 = vmul.f32 %v3765, %v3765
    %v3845 = vsub.f32 %v3835, %v3843
    %v3846 = vsub.f32 %v3840, %v3844
    %3847 = vmatprep.subr.mxu0 0.0
    %3848 = vmatpush1.msra.mxu0 %v687
    %3849 = vmatprep.subr.mxu0 0.0
    %3850 = vmatpush1.msra.mxu0 %v692
    %3851 = vmatprep.subr.mxu0 0.0
    %3852 = vmatpush1.msra.mxu0 0.0
    %3853 = vmatprep.subr.mxu0 0.0
    %3854 = vmatpush1.msra.mxu0 0.0
    %3855 = vmatprep.subr.mxu0 0.0
    %3856 = vmatpush1.msra.mxu0 0.0
    %3857 = vmatprep.subr.mxu0 0.0
    %3858 = vmatpush1.msra.mxu0 0.0
    %3859 = vmatprep.subr.mxu0 0.0
    %3860 = vmatpush1.msra.mxu0 0.0
    %3861 = vmatprep.subr.mxu0 0.0
    %3862 = vmatpush1.msra.mxu0 0.0
    %3863 = vmatprep.subr.mxu0 0.0
    %3864 = vmatpush1.msra.mxu0 0.0
    %3865 = vmatprep.subr.mxu0 0.0
    %3866 = vmatpush1.msra.mxu0 0.0
    %3867 = vmatprep.subr.mxu0 0.0
    %3868 = vmatpush1.msra.mxu0 0.0
    %3869 = vmatprep.subr.mxu0 0.0
    %3870 = vmatpush1.msra.mxu0 0.0
    %3871 = vmatprep.subr.mxu0 0.0
    %3872 = vmatpush1.msra.mxu0 0.0
    %3873 = vmatprep.subr.mxu0 0.0
    %3874 = vmatpush1.msra.mxu0 0.0
    %3875 = vmatprep.subr.mxu0 0.0
    %3876 = vmatpush1.msra.mxu0 0.0
    %3877 = vmatprep.subr.mxu0 0.0
    %3878 = vmatpush1.msra.mxu0 0.0
    %3879 = vmatprep.subr.mxu0 0.0
    %3880 = vmatpush1.msra.mxu0 0.0
    %3881 = vmatprep.subr.mxu0 0.0
    %3882 = vmatpush1.msra.mxu0 0.0
    %3883 = vmatprep.subr.mxu0 0.0
    %3884 = vmatpush1.msra.mxu0 0.0
    %3885 = vmatprep.subr.mxu0 0.0
    %3886 = vmatpush1.msra.mxu0 0.0
    %3887 = vmatprep.subr.mxu0 0.0
    %3888 = vmatpush1.msra.mxu0 0.0
    %3889 = vmatprep.subr.mxu0 0.0
    %3890 = vmatpush1.msra.mxu0 0.0
    %3891 = vmatprep.subr.mxu0 0.0
    %3892 = vmatpush1.msra.mxu0 0.0
    %3893 = vmatprep.subr.mxu0 0.0
    %3894 = vmatpush1.msra.mxu0 0.0
    %3895 = vmatprep.subr.mxu0 0.0
    %3896 = vmatpush1.msra.mxu0 0.0
    %3897 = vmatprep.subr.mxu0 0.0
    %3898 = vmatpush1.msra.mxu0 0.0
    %3899 = vmatprep.subr.mxu0 0.0
    %3900 = vmatpush1.msra.mxu0 0.0
    %3901 = vmatprep.subr.mxu0 0.0
    %3902 = vmatpush1.msra.mxu0 0.0
    %3903 = vmatprep.subr.mxu0 0.0
    %3904 = vmatpush1.msra.mxu0 0.0
    %3905 = vmatprep.subr.mxu0 0.0
    %3906 = vmatpush1.msra.mxu0 0.0
    %3907 = vmatprep.subr.mxu0 0.0
    %3908 = vmatpush1.msra.mxu0 0.0
    %3909 = vmatprep.subr.mxu0 0.0
    %3910 = vmatpush1.msra.mxu0 0.0
    %3911 = vmatprep.mubr.f32.mxu0 0.0
    %3912 = vmatmul.mubr.f32.gmra.mrb[0].mxu0 %v1513
    %v3913 = vpop.f32.mrb[0].mxu0
    %v3914 = vadd.f32 0.0, %v3913
    %v3915 = vpop.f32.mrb[0].mxu0
    %3916 = vmatprep.mubr.f32.mxu0 0.0
    %3917 = vmatmul.mubr.f32.gmra.mrb[0].mxu0 %v1516
    %v3918 = vpop.f32.mrb[0].mxu0
    %v3919 = vadd.f32 0.0, %v3918
    %v3920 = vpop.f32.mrb[0].mxu0
    %3921 = vdwg.mxu0
    %v3922 = vmul.f32 %v3760, %v3062
    %v3923 = vmul.f32 %v3765, %v3067
    %v3924 = vsub.f32 %v3914, %v3922
    %v3925 = vsub.f32 %v3919, %v3923
    %v3926 = vmul.f32 %v3760, 2.0
    %v3927 = vmul.f32 %v3765, 2.0
    %v3928 = vmul.f32 %v3926, %v3062
    %v3929 = vmul.f32 %v3927, %v3067
    %v3930 = vadd.f32 %v3928, 0.0001
    %v3931 = vadd.f32 %v3929, 0.0001
    %v3932 = vmul.f32 %v3924, 2.0
    %v3933 = vmul.f32 %v3925, 2.0
    %v3934 = vadd.f32 %v3932, 0.0009
    %v3935 = vadd.f32 %v3933, 0.0009
    %v3936 = vmul.f32 %v3930, %v3934
    %v3937 = vmul.f32 %v3931, %v3935
    %v3938 = vadd.f32 %v3843, %v3145
    %v3939 = vadd.f32 %v3844, %v3146
    %v3940 = vadd.f32 %v3938, 0.0001
    %v3941 = vadd.f32 %v3939, 0.0001
    %v3942 = vadd.f32 %v3845, %v3147
    %v3943 = vadd.f32 %v3846, %v3148
    %v3944 = vadd.f32 %v3942, 0.0009
    %v3945 = vadd.f32 %v3943, 0.0009
    %v3946 = vmul.f32 %v3940, %v3944
    %v3947 = vmul.f32 %v3941, %v3945
    %v3948 = vrcp.pop %v3946
    %v3949 = vmul.f32 %v3936, %v3948
    %v3950 = vrcp.pop %v3947
    %v3951 = vmul.f32 %v3937, %v3950
    %v3952 = vsel %vm151, %v3949, 0.0
    %v3953 = vsel %vm151, %v3951, 0.0
    %v3954 = vadd.f32 %v3952, %v3953
    %3955 = vadd.xlane.f32.xlu0 %v3954
    %v3956 = vpop.xlane.xlu0 %3955
    %v3957 = vrot.slane %v3956, 4
    %v3958 = vadd.f32 %v3956, %v3957
    %v3959 = vrot.slane %v3958, 2
    %v3960 = vadd.f32 %v3958, %v3959
    %v3961 = vrot.slane %v3960, 1
    %v3962 = vadd.f32 %v3960, %v3961
    %s3963 = vtos %v3962
    %s3964 = sadd.f32 %s2487, %s3963
    %v3965 = vlaneseq
    %v3966 = vshrl.u32 %v3965, 7
    %v3967 = vlaneseq
    %v3968 = vand.u32 %v3967, 127
    %vm3969 = vcmp.eq.s32.totalorder %v3966, 0
    %vm3970 = vcmp.eq.s32.totalorder %v3968, 0
    %vm3971 = vmand %vm3969, %vm3970
    %v3972 = vstv %s2656
    %v3973 = vsel %vm3971, %v3972, 0.0
    %vm3974 = vcmp.eq.s32.totalorder %v3968, 1
    %vm3975 = vmand %vm3969, %vm3974
    %v3976 = vstv %s2825
    %v3977 = vsel %vm3975, %v3976, %v3973
    %vm3978 = vcmp.eq.s32.totalorder %v3968, 2
    %vm3979 = vmand %vm3969, %vm3978
    %v3980 = vstv %s2994
    %v3981 = vsel %vm3979, %v3980, %v3977
    %vm3982 = vcmp.eq.s32.totalorder %v3968, 3
    %vm3983 = vmand %vm3969, %vm3982
    %v3984 = vstv %s3420
    %v3985 = vsel %vm3983, %v3984, %v3981
    %vm3986 = vcmp.eq.s32.totalorder %v3968, 4
    %vm3987 = vmand %vm3969, %vm3986
    %v3988 = vstv %s3692
    %v3989 = vsel %vm3987, %v3988, %v3985
    %vm3990 = vcmp.eq.s32.totalorder %v3968, 5
    %vm3991 = vmand %vm3969, %vm3990
    %v3992 = vstv %s3964
    %v3993 = vsel %vm3991, %v3992, %v3989
    %3994 = vst [vmem:[%s10] sm:$0xff] %v3993
    // Predicated region
    $region66: #{l_ssim.1} parent=1 // pred_check
      _
    $region67: #{l_ssim.1} parent=1 // pred_check_branch
      %3996 = sbr.rel (0) target = $region69
    $region68: #{l_ssim.1} parent=1 // pred_region
      _
    $region69: #{l_ssim.1} parent=1 // pred_fallthru
      _
    // Predicated region
    $region70: #{l_ssim.1} parent=1 // pred_check
      _
    $region71: #{l_ssim.1} parent=1 // pred_check_branch
      %3998 = sbr.rel (0) target = $region73
    $region72: #{l_ssim.1} parent=1 // pred_region
      _
    $region73: #{l_ssim.1} parent=1 // pred_fallthru
      _
    %3999 = vsyncpa [#allocation5], 1
    %4000 = vsyncpa [#allocation7], 1
    %4001 = vsyncpa [#allocation10], 1
    %4002 = vsyncpa [#allocation13], 1

</llo_original>
